<compile_context>
chip_gen: v6e
topology: v6e:2x2x1
jax: 0.10.0
libtpu: 0.0.40
codegen_flags: <defaults>
</compile_context>

<pallas_src>
import functools

import numpy as np

import jax
import jax.numpy as jnp
from jax import lax
from jax.experimental import pallas as pl
from jax.experimental.pallas import tpu as pltpu  # noqa: F401  (TPU backend)

LN_EPS = 1e-5
MASK_VALUE = float(jnp.finfo(jnp.float32).min)


# ----------------------------------------------------------------------------
# Fused Pallas kernel
# ----------------------------------------------------------------------------
def _attention_layer(x, mask_bias, num_heads,
                     wq_ref, bq_ref, wk_ref, bk_ref, wv_ref, bv_ref,
                     wo_ref, bo_ref, gamma_ref, beta_ref):
    """One SelfAttentionLayer on flattened activations.

    x:         (T, E) f32, T = B*S (batch separation via mask_bias)
    mask_bias: (T, T) f32, 0 where attention allowed, finfo.min elsewhere
    wq/wk/wv:  (H, E, d) bf16   (q scale already folded into wq / bq)
    bq/bk/bv:  (H, 1, d) f32
    wo:        (H, d, E) bf16   (per-head slice of output projection)
    bo/gamma/beta: (1, E) f32
    """
    T, E = x.shape
    xb = x.astype(jnp.bfloat16)
    attn = jnp.zeros((T, E), jnp.float32)

    for h in range(num_heads):  # static unroll; per-head weights -> no lane slices
        q = jnp.dot(xb, wq_ref[h], preferred_element_type=jnp.float32) + bq_ref[h]
        k = jnp.dot(xb, wk_ref[h], preferred_element_type=jnp.float32) + bk_ref[h]
        v = jnp.dot(xb, wv_ref[h], preferred_element_type=jnp.float32) + bv_ref[h]

        # scores: contract head_dim of both operands directly (no explicit k.T)
        s = lax.dot_general(q.astype(jnp.bfloat16), k.astype(jnp.bfloat16),
                            (((1,), (1,)), ((), ())),
                            preferred_element_type=jnp.float32)        # (T, T)
        s = s + mask_bias                                              # additive causal mask

        m = jnp.max(s, axis=-1, keepdims=True)
        p = jnp.exp(s - m)
        p = p * pl.reciprocal(jnp.sum(p, axis=-1, keepdims=True), approx=True)

        pv = jnp.dot(p.astype(jnp.bfloat16), v.astype(jnp.bfloat16),
                     preferred_element_type=jnp.float32)               # (T, d)

        # sum over heads of (pv @ Wo_h) == concat(heads) @ Wo  -> no concat needed
        attn = attn + jnp.dot(pv.astype(jnp.bfloat16), wo_ref[h],
                              preferred_element_type=jnp.float32)      # (T, E)

    attn = attn + bo_ref[...]

    # residual + LayerNorm (eps = 1e-5, PyTorch default, biased variance)
    y = x + attn
    mean = jnp.mean(y, axis=-1, keepdims=True)
    var = jnp.mean((y - mean) ** 2, axis=-1, keepdims=True)
    return (y - mean) * lax.rsqrt(var + LN_EPS) * gamma_ref[...] + beta_ref[...]


def fused_transformer_kernel(num_heads, num_layers, *refs):
    """refs = [x, mask_bias, 10*num_layers layer refs..., out_w, out_b, o_ref]."""
    x_ref, bias_ref = refs[0], refs[1]
    layer_refs = refs[2:2 + 10 * num_layers]
    wout_ref, bout_ref, o_ref = refs[-3], refs[-2], refs[-1]

    x = x_ref[...]                # (T, E) f32
    bias = bias_ref[...]          # (T, T) f32

    for l in range(num_layers):
        lr = layer_refs[10 * l:10 * (l + 1)]
        x = _attention_layer(x, bias, num_heads, *lr)

    # vocab projection, lane-dense padded output (T, Vpad)
    logits = jnp.dot(x.astype(jnp.bfloat16), wout_ref[...],
                     preferred_element_type=jnp.float32) + bout_ref[...]
    o_ref[...] = logits


# ----------------------------------------------------------------------------
# Wrapper
# ----------------------------------------------------------------------------
def transformer_forward(params, input_ids, attention_mask):
    """Full TransformerModel forward. input_ids: (B, S) int32 -> (B, S, V) f32."""
    del attention_mask  # unused (see note at top)
    B, S = input_ids.shape
    E = params["embedding_dim"]
    V = params["vocab_size"]
    H = params["num_heads"]
    T = B * S

    # Embedding gather + positional add: XLA glue (single fused tiny op).
    tok = params["embeddings"][input_ids]                 # (B, S, E)
    pos = params["position_embeddings"][:S]               # (S, E)
    x = (tok + pos[None, :, :]).reshape(T, E)             # dropout = identity (eval)

    # Block-diagonal causal additive mask built on host:
    # allowed iff same batch element and col <= row.
    r = np.arange(T)
    allowed = ((r[:, None] // S) == (r[None, :] // S)) & (r[None, :] <= r[:, None])
    mask_bias = jnp.asarray(np.where(allowed, 0.0, MASK_VALUE).astype(np.float32))

    args = [x, mask_bias]
    for layer in params["layers"]:
        args.extend(layer)
    args += [params["out_w"], params["out_b"]]

    vpad = params["out_w"].shape[1]
    out = pl.pallas_call(
        functools.partial(fused_transformer_kernel, H, len(params["layers"])),
        out_shape=jax.ShapeDtypeStruct((T, vpad), jnp.float32),
    )(*args)

    return out[:, :V].reshape(B, S, V)


# ----------------------------------------------------------------------------
# Deterministic parameter construction (already in kernel layout)
# ----------------------------------------------------------------------------
def make_params(key, vocab_size, max_len, embedding_dim, num_heads, num_layers=2):
    E, H = embedding_dim, num_heads
    d = E // H
    scale = d ** (-0.5)
    vpad = max(128, ((vocab_size + 127) // 128) * 128)

    keys = jax.random.split(key, 3 + 4 * num_layers)
    ki = iter(keys)

    def dense(k, shape, s=0.02):
        return (s * jax.random.normal(k, shape)).astype(jnp.float32)

    params = {
        "embedding_dim": E,
        "vocab_size": vocab_size,
        "num_heads": H,
        "embeddings": dense(next(ki), (vocab_size, E)),
        "position_embeddings": dense(next(ki), (max_len, E)),
        "layers": [],
    }

    # Output projection stored (in, out), zero-padded on vocab axis to a
    # multiple of 128 so the kernel's final store is unmasked / lane-dense.
    ow = dense(next(ki), (E, vocab_size))
    out_w = jnp.zeros((E, vpad), jnp.bfloat16)
    params["out_w"] = out_w.at[:, :vocab_size].set(ow.astype(jnp.bfloat16))
    params["out_b"] = jnp.zeros((1, vpad), jnp.float32)

    def split_heads_in_out(w):      # (E_in, E_out) -> (H, E_in, d), bf16
        return jnp.transpose(w.reshape(E, H, d), (1, 0, 2)).astype(jnp.bfloat16)

    for _ in range(num_layers):
        kq, kk, kv, ko = next(ki), next(ki), next(ki), next(ki)
        wq = dense(kq, (E, E)) * scale        # q scale constant-folded into Wq
        wk = dense(kk, (E, E))
        wv = dense(kv, (E, E))
        wo = dense(ko, (E, E))
        layer = (
            split_heads_in_out(wq), jnp.zeros((H, 1, d), jnp.float32),   # Q (+ folded-scale bias)
            split_heads_in_out(wk), jnp.zeros((H, 1, d), jnp.float32),   # K
            split_heads_in_out(wv), jnp.zeros((H, 1, d), jnp.float32),   # V
            wo.reshape(H, d, E).astype(jnp.bfloat16),                    # O per-head slices
            jnp.zeros((1, E), jnp.float32),                              # O bias
            jnp.ones((1, E), jnp.float32),                               # LN gamma
            jnp.zeros((1, E), jnp.float32),                              # LN beta
        )
        params["layers"].append(layer)
    return params


# ----------------------------------------------------------------------------
if __name__ == "__main__":
    VOCAB = 64
    MAX_LEN = 16
    EMBED = 32
    HEADS = 4
    B, S = 2, 8

    key = jax.random.PRNGKey(0)
    pkey, dkey = jax.random.split(key)
    params = make_params(pkey, VOCAB, MAX_LEN, EMBED, HEADS)

    input_ids = jax.random.randint(dkey, (B, S), 0, VOCAB, dtype=jnp.int32)
    attention_mask = jnp.ones((B, S), jnp.int32)

    logits = transformer_forward(params, input_ids, attention_mask)
    logits = jax.block_until_ready(logits)

    assert logits.shape == (B, S, VOCAB), logits.shape
    assert logits.dtype == jnp.float32
    assert bool(jnp.all(jnp.isfinite(logits)))
    print("KERNEL_OK")
</pallas_src>

<mosaic_0001>
module attributes {stable_mosaic.version = 11 : i64} {
  func.func @fused_transformer_kernel(%arg0: memref<16x32xf32, #tpu.memory_space<vmem>>, %arg1: memref<16x16xf32, #tpu.memory_space<vmem>>, %arg2: memref<4x32x8xbf16, #tpu.memory_space<vmem>>, %arg3: memref<4x1x8xf32, #tpu.memory_space<vmem>>, %arg4: memref<4x32x8xbf16, #tpu.memory_space<vmem>>, %arg5: memref<4x1x8xf32, #tpu.memory_space<vmem>>, %arg6: memref<4x32x8xbf16, #tpu.memory_space<vmem>>, %arg7: memref<4x1x8xf32, #tpu.memory_space<vmem>>, %arg8: memref<4x8x32xbf16, #tpu.memory_space<vmem>>, %arg9: memref<1x32xf32, #tpu.memory_space<vmem>>, %arg10: memref<1x32xf32, #tpu.memory_space<vmem>>, %arg11: memref<1x32xf32, #tpu.memory_space<vmem>>, %arg12: memref<4x32x8xbf16, #tpu.memory_space<vmem>>, %arg13: memref<4x1x8xf32, #tpu.memory_space<vmem>>, %arg14: memref<4x32x8xbf16, #tpu.memory_space<vmem>>, %arg15: memref<4x1x8xf32, #tpu.memory_space<vmem>>, %arg16: memref<4x32x8xbf16, #tpu.memory_space<vmem>>, %arg17: memref<4x1x8xf32, #tpu.memory_space<vmem>>, %arg18: memref<4x8x32xbf16, #tpu.memory_space<vmem>>, %arg19: memref<1x32xf32, #tpu.memory_space<vmem>>, %arg20: memref<1x32xf32, #tpu.memory_space<vmem>>, %arg21: memref<1x32xf32, #tpu.memory_space<vmem>>, %arg22: memref<32x128xbf16, #tpu.memory_space<vmem>>, %arg23: memref<1x128xf32, #tpu.memory_space<vmem>>, %arg24: memref<16x128xf32, #tpu.memory_space<vmem>>) attributes {dimension_semantics = [], scalar_prefetch = 0 : i64, scratch_operands = 0 : i64, tpu.core_type = #tpu.core_type<tc>} {
    %c0 = arith.constant 0 : index
    %c0_0 = arith.constant 0 : index
    %0 = vector.load %arg0[%c0, %c0_0] : memref<16x32xf32, #tpu.memory_space<vmem>>, vector<16x32xf32>
    %c0_1 = arith.constant 0 : index
    %c0_2 = arith.constant 0 : index
    %1 = vector.load %arg1[%c0_1, %c0_2] : memref<16x16xf32, #tpu.memory_space<vmem>>, vector<16x16xf32>
    %2 = arith.truncf %0 : vector<16x32xf32> to vector<16x32xbf16>
    %cst = arith.constant 0.000000e+00 : f32
    %3 = vector.broadcast %cst : f32 to vector<16x32xf32>
    %c0_3 = arith.constant 0 : index
    %c0_4 = arith.constant 0 : index
    %c0_5 = arith.constant 0 : index
    %4 = vector.load %arg2[%c0_3, %c0_4, %c0_5] : memref<4x32x8xbf16, #tpu.memory_space<vmem>>, vector<1x32x8xbf16>
    %5 = vector.shape_cast %4 : vector<1x32x8xbf16> to vector<32x8xbf16>
    %cst_6 = arith.constant dense<0.000000e+00> : vector<16x8xf32>
    %6 = tpu.matmul %2, %5, %cst_6 {dimension_numbers = #tpu.dot_dimension_numbers<[1], [0], [0], [1], [0, 0, 1, 1], [], []>} : vector<16x32xbf16>, vector<32x8xbf16>, vector<16x8xf32> -> vector<16x8xf32>
    %c0_7 = arith.constant 0 : index
    %c0_8 = arith.constant 0 : index
    %c0_9 = arith.constant 0 : index
    %7 = vector.load %arg3[%c0_7, %c0_8, %c0_9] : memref<4x1x8xf32, #tpu.memory_space<vmem>>, vector<1x1x8xf32>
    %8 = vector.shape_cast %7 : vector<1x1x8xf32> to vector<1x8xf32>
    %9 = vector.broadcast %8 : vector<1x8xf32> to vector<16x8xf32>
    %10 = arith.addf %6, %9 : vector<16x8xf32>
    %c0_10 = arith.constant 0 : index
    %c0_11 = arith.constant 0 : index
    %c0_12 = arith.constant 0 : index
    %11 = vector.load %arg4[%c0_10, %c0_11, %c0_12] : memref<4x32x8xbf16, #tpu.memory_space<vmem>>, vector<1x32x8xbf16>
    %12 = vector.shape_cast %11 : vector<1x32x8xbf16> to vector<32x8xbf16>
    %cst_13 = arith.constant dense<0.000000e+00> : vector<16x8xf32>
    %13 = tpu.matmul %2, %12, %cst_13 {dimension_numbers = #tpu.dot_dimension_numbers<[1], [0], [0], [1], [0, 0, 1, 1], [], []>} : vector<16x32xbf16>, vector<32x8xbf16>, vector<16x8xf32> -> vector<16x8xf32>
    %c0_14 = arith.constant 0 : index
    %c0_15 = arith.constant 0 : index
    %c0_16 = arith.constant 0 : index
    %14 = vector.load %arg5[%c0_14, %c0_15, %c0_16] : memref<4x1x8xf32, #tpu.memory_space<vmem>>, vector<1x1x8xf32>
    %15 = vector.shape_cast %14 : vector<1x1x8xf32> to vector<1x8xf32>
    %16 = vector.broadcast %15 : vector<1x8xf32> to vector<16x8xf32>
    %17 = arith.addf %13, %16 : vector<16x8xf32>
    %c0_17 = arith.constant 0 : index
    %c0_18 = arith.constant 0 : index
    %c0_19 = arith.constant 0 : index
    %18 = vector.load %arg6[%c0_17, %c0_18, %c0_19] : memref<4x32x8xbf16, #tpu.memory_space<vmem>>, vector<1x32x8xbf16>
    %19 = vector.shape_cast %18 : vector<1x32x8xbf16> to vector<32x8xbf16>
    %cst_20 = arith.constant dense<0.000000e+00> : vector<16x8xf32>
    %20 = tpu.matmul %2, %19, %cst_20 {dimension_numbers = #tpu.dot_dimension_numbers<[1], [0], [0], [1], [0, 0, 1, 1], [], []>} : vector<16x32xbf16>, vector<32x8xbf16>, vector<16x8xf32> -> vector<16x8xf32>
    %c0_21 = arith.constant 0 : index
    %c0_22 = arith.constant 0 : index
    %c0_23 = arith.constant 0 : index
    %21 = vector.load %arg7[%c0_21, %c0_22, %c0_23] : memref<4x1x8xf32, #tpu.memory_space<vmem>>, vector<1x1x8xf32>
    %22 = vector.shape_cast %21 : vector<1x1x8xf32> to vector<1x8xf32>
    %23 = vector.broadcast %22 : vector<1x8xf32> to vector<16x8xf32>
    %24 = arith.addf %20, %23 : vector<16x8xf32>
    %25 = arith.truncf %10 : vector<16x8xf32> to vector<16x8xbf16>
    %26 = arith.truncf %17 : vector<16x8xf32> to vector<16x8xbf16>
    %cst_24 = arith.constant dense<0.000000e+00> : vector<16x16xf32>
    %27 = tpu.matmul %25, %26, %cst_24 {dimension_numbers = #tpu.dot_dimension_numbers<[1], [1], [0], [0], [0, 0, 1, 0], [], []>} : vector<16x8xbf16>, vector<16x8xbf16>, vector<16x16xf32> -> vector<16x16xf32>
    %28 = arith.addf %27, %1 : vector<16x16xf32>
    %cst_25 = arith.constant dense<0xFF800000> : vector<16xf32>
    %29 = vector.multi_reduction <maximumf>, %28, %cst_25 [1] : vector<16x16xf32> to vector<16xf32>
    %30 = vector.shape_cast %29 : vector<16xf32> to vector<16x1xf32>
    %31 = vector.broadcast %30 : vector<16x1xf32> to vector<16x16xf32>
    %32 = arith.subf %28, %31 : vector<16x16xf32>
    %33 = math.exp %32 : vector<16x16xf32>
    %cst_26 = arith.constant dense<0.000000e+00> : vector<16xf32>
    %34 = vector.multi_reduction <add>, %33, %cst_26 [1] : vector<16x16xf32> to vector<16xf32>
    %35 = vector.shape_cast %34 : vector<16xf32> to vector<16x1xf32>
    %36 = tpu.reciprocal %35 {approx = true} : vector<16x1xf32> -> vector<16x1xf32>
    %37 = vector.broadcast %36 : vector<16x1xf32> to vector<16x16xf32>
    %38 = arith.mulf %33, %37 : vector<16x16xf32>
    %39 = arith.truncf %38 : vector<16x16xf32> to vector<16x16xbf16>
    %40 = arith.truncf %24 : vector<16x8xf32> to vector<16x8xbf16>
    %cst_27 = arith.constant dense<0.000000e+00> : vector<16x8xf32>
    %41 = tpu.matmul %39, %40, %cst_27 {dimension_numbers = #tpu.dot_dimension_numbers<[1], [0], [0], [1], [0, 0, 1, 1], [], []>} : vector<16x16xbf16>, vector<16x8xbf16>, vector<16x8xf32> -> vector<16x8xf32>
    %42 = arith.truncf %41 : vector<16x8xf32> to vector<16x8xbf16>
    %c0_28 = arith.constant 0 : index
    %c0_29 = arith.constant 0 : index
    %c0_30 = arith.constant 0 : index
    %43 = vector.load %arg8[%c0_28, %c0_29, %c0_30] : memref<4x8x32xbf16, #tpu.memory_space<vmem>>, vector<1x8x32xbf16>
    %44 = vector.shape_cast %43 : vector<1x8x32xbf16> to vector<8x32xbf16>
    %cst_31 = arith.constant dense<0.000000e+00> : vector<16x32xf32>
    %45 = tpu.matmul %42, %44, %cst_31 {dimension_numbers = #tpu.dot_dimension_numbers<[1], [0], [0], [1], [0, 0, 1, 1], [], []>} : vector<16x8xbf16>, vector<8x32xbf16>, vector<16x32xf32> -> vector<16x32xf32>
    %46 = arith.addf %3, %45 : vector<16x32xf32>
    %c1 = arith.constant 1 : index
    %c0_32 = arith.constant 0 : index
    %c0_33 = arith.constant 0 : index
    %47 = vector.load %arg2[%c1, %c0_32, %c0_33] : memref<4x32x8xbf16, #tpu.memory_space<vmem>>, vector<1x32x8xbf16>
    %48 = vector.shape_cast %47 : vector<1x32x8xbf16> to vector<32x8xbf16>
    %cst_34 = arith.constant dense<0.000000e+00> : vector<16x8xf32>
    %49 = tpu.matmul %2, %48, %cst_34 {dimension_numbers = #tpu.dot_dimension_numbers<[1], [0], [0], [1], [0, 0, 1, 1], [], []>} : vector<16x32xbf16>, vector<32x8xbf16>, vector<16x8xf32> -> vector<16x8xf32>
    %c1_35 = arith.constant 1 : index
    %c0_36 = arith.constant 0 : index
    %c0_37 = arith.constant 0 : index
    %50 = vector.load %arg3[%c1_35, %c0_36, %c0_37] : memref<4x1x8xf32, #tpu.memory_space<vmem>>, vector<1x1x8xf32>
    %51 = vector.shape_cast %50 : vector<1x1x8xf32> to vector<1x8xf32>
    %52 = vector.broadcast %51 : vector<1x8xf32> to vector<16x8xf32>
    %53 = arith.addf %49, %52 : vector<16x8xf32>
    %c1_38 = arith.constant 1 : index
    %c0_39 = arith.constant 0 : index
    %c0_40 = arith.constant 0 : index
    %54 = vector.load %arg4[%c1_38, %c0_39, %c0_40] : memref<4x32x8xbf16, #tpu.memory_space<vmem>>, vector<1x32x8xbf16>
    %55 = vector.shape_cast %54 : vector<1x32x8xbf16> to vector<32x8xbf16>
    %cst_41 = arith.constant dense<0.000000e+00> : vector<16x8xf32>
    %56 = tpu.matmul %2, %55, %cst_41 {dimension_numbers = #tpu.dot_dimension_numbers<[1], [0], [0], [1], [0, 0, 1, 1], [], []>} : vector<16x32xbf16>, vector<32x8xbf16>, vector<16x8xf32> -> vector<16x8xf32>
    %c1_42 = arith.constant 1 : index
    %c0_43 = arith.constant 0 : index
    %c0_44 = arith.constant 0 : index
    %57 = vector.load %arg5[%c1_42, %c0_43, %c0_44] : memref<4x1x8xf32, #tpu.memory_space<vmem>>, vector<1x1x8xf32>
    %58 = vector.shape_cast %57 : vector<1x1x8xf32> to vector<1x8xf32>
    %59 = vector.broadcast %58 : vector<1x8xf32> to vector<16x8xf32>
    %60 = arith.addf %56, %59 : vector<16x8xf32>
    %c1_45 = arith.constant 1 : index
    %c0_46 = arith.constant 0 : index
    %c0_47 = arith.constant 0 : index
    %61 = vector.load %arg6[%c1_45, %c0_46, %c0_47] : memref<4x32x8xbf16, #tpu.memory_space<vmem>>, vector<1x32x8xbf16>
    %62 = vector.shape_cast %61 : vector<1x32x8xbf16> to vector<32x8xbf16>
    %cst_48 = arith.constant dense<0.000000e+00> : vector<16x8xf32>
    %63 = tpu.matmul %2, %62, %cst_48 {dimension_numbers = #tpu.dot_dimension_numbers<[1], [0], [0], [1], [0, 0, 1, 1], [], []>} : vector<16x32xbf16>, vector<32x8xbf16>, vector<16x8xf32> -> vector<16x8xf32>
    %c1_49 = arith.constant 1 : index
    %c0_50 = arith.constant 0 : index
    %c0_51 = arith.constant 0 : index
    %64 = vector.load %arg7[%c1_49, %c0_50, %c0_51] : memref<4x1x8xf32, #tpu.memory_space<vmem>>, vector<1x1x8xf32>
    %65 = vector.shape_cast %64 : vector<1x1x8xf32> to vector<1x8xf32>
    %66 = vector.broadcast %65 : vector<1x8xf32> to vector<16x8xf32>
    %67 = arith.addf %63, %66 : vector<16x8xf32>
    %68 = arith.truncf %53 : vector<16x8xf32> to vector<16x8xbf16>
    %69 = arith.truncf %60 : vector<16x8xf32> to vector<16x8xbf16>
    %cst_52 = arith.constant dense<0.000000e+00> : vector<16x16xf32>
    %70 = tpu.matmul %68, %69, %cst_52 {dimension_numbers = #tpu.dot_dimension_numbers<[1], [1], [0], [0], [0, 0, 1, 0], [], []>} : vector<16x8xbf16>, vector<16x8xbf16>, vector<16x16xf32> -> vector<16x16xf32>
    %71 = arith.addf %70, %1 : vector<16x16xf32>
    %cst_53 = arith.constant dense<0xFF800000> : vector<16xf32>
    %72 = vector.multi_reduction <maximumf>, %71, %cst_53 [1] : vector<16x16xf32> to vector<16xf32>
    %73 = vector.shape_cast %72 : vector<16xf32> to vector<16x1xf32>
    %74 = vector.broadcast %73 : vector<16x1xf32> to vector<16x16xf32>
    %75 = arith.subf %71, %74 : vector<16x16xf32>
    %76 = math.exp %75 : vector<16x16xf32>
    %cst_54 = arith.constant dense<0.000000e+00> : vector<16xf32>
    %77 = vector.multi_reduction <add>, %76, %cst_54 [1] : vector<16x16xf32> to vector<16xf32>
    %78 = vector.shape_cast %77 : vector<16xf32> to vector<16x1xf32>
    %79 = tpu.reciprocal %78 {approx = true} : vector<16x1xf32> -> vector<16x1xf32>
    %80 = vector.broadcast %79 : vector<16x1xf32> to vector<16x16xf32>
    %81 = arith.mulf %76, %80 : vector<16x16xf32>
    %82 = arith.truncf %81 : vector<16x16xf32> to vector<16x16xbf16>
    %83 = arith.truncf %67 : vector<16x8xf32> to vector<16x8xbf16>
    %cst_55 = arith.constant dense<0.000000e+00> : vector<16x8xf32>
    %84 = tpu.matmul %82, %83, %cst_55 {dimension_numbers = #tpu.dot_dimension_numbers<[1], [0], [0], [1], [0, 0, 1, 1], [], []>} : vector<16x16xbf16>, vector<16x8xbf16>, vector<16x8xf32> -> vector<16x8xf32>
    %85 = arith.truncf %84 : vector<16x8xf32> to vector<16x8xbf16>
    %c1_56 = arith.constant 1 : index
    %c0_57 = arith.constant 0 : index
    %c0_58 = arith.constant 0 : index
    %86 = vector.load %arg8[%c1_56, %c0_57, %c0_58] : memref<4x8x32xbf16, #tpu.memory_space<vmem>>, vector<1x8x32xbf16>
    %87 = vector.shape_cast %86 : vector<1x8x32xbf16> to vector<8x32xbf16>
    %cst_59 = arith.constant dense<0.000000e+00> : vector<16x32xf32>
    %88 = tpu.matmul %85, %87, %cst_59 {dimension_numbers = #tpu.dot_dimension_numbers<[1], [0], [0], [1], [0, 0, 1, 1], [], []>} : vector<16x8xbf16>, vector<8x32xbf16>, vector<16x32xf32> -> vector<16x32xf32>
    %89 = arith.addf %46, %88 : vector<16x32xf32>
    %c2 = arith.constant 2 : index
    %c0_60 = arith.constant 0 : index
    %c0_61 = arith.constant 0 : index
    %90 = vector.load %arg2[%c2, %c0_60, %c0_61] : memref<4x32x8xbf16, #tpu.memory_space<vmem>>, vector<1x32x8xbf16>
    %91 = vector.shape_cast %90 : vector<1x32x8xbf16> to vector<32x8xbf16>
    %cst_62 = arith.constant dense<0.000000e+00> : vector<16x8xf32>
    %92 = tpu.matmul %2, %91, %cst_62 {dimension_numbers = #tpu.dot_dimension_numbers<[1], [0], [0], [1], [0, 0, 1, 1], [], []>} : vector<16x32xbf16>, vector<32x8xbf16>, vector<16x8xf32> -> vector<16x8xf32>
    %c2_63 = arith.constant 2 : index
    %c0_64 = arith.constant 0 : index
    %c0_65 = arith.constant 0 : index
    %93 = vector.load %arg3[%c2_63, %c0_64, %c0_65] : memref<4x1x8xf32, #tpu.memory_space<vmem>>, vector<1x1x8xf32>
    %94 = vector.shape_cast %93 : vector<1x1x8xf32> to vector<1x8xf32>
    %95 = vector.broadcast %94 : vector<1x8xf32> to vector<16x8xf32>
    %96 = arith.addf %92, %95 : vector<16x8xf32>
    %c2_66 = arith.constant 2 : index
    %c0_67 = arith.constant 0 : index
    %c0_68 = arith.constant 0 : index
    %97 = vector.load %arg4[%c2_66, %c0_67, %c0_68] : memref<4x32x8xbf16, #tpu.memory_space<vmem>>, vector<1x32x8xbf16>
    %98 = vector.shape_cast %97 : vector<1x32x8xbf16> to vector<32x8xbf16>
    %cst_69 = arith.constant dense<0.000000e+00> : vector<16x8xf32>
    %99 = tpu.matmul %2, %98, %cst_69 {dimension_numbers = #tpu.dot_dimension_numbers<[1], [0], [0], [1], [0, 0, 1, 1], [], []>} : vector<16x32xbf16>, vector<32x8xbf16>, vector<16x8xf32> -> vector<16x8xf32>
    %c2_70 = arith.constant 2 : index
    %c0_71 = arith.constant 0 : index
    %c0_72 = arith.constant 0 : index
    %100 = vector.load %arg5[%c2_70, %c0_71, %c0_72] : memref<4x1x8xf32, #tpu.memory_space<vmem>>, vector<1x1x8xf32>
    %101 = vector.shape_cast %100 : vector<1x1x8xf32> to vector<1x8xf32>
    %102 = vector.broadcast %101 : vector<1x8xf32> to vector<16x8xf32>
    %103 = arith.addf %99, %102 : vector<16x8xf32>
    %c2_73 = arith.constant 2 : index
    %c0_74 = arith.constant 0 : index
    %c0_75 = arith.constant 0 : index
    %104 = vector.load %arg6[%c2_73, %c0_74, %c0_75] : memref<4x32x8xbf16, #tpu.memory_space<vmem>>, vector<1x32x8xbf16>
    %105 = vector.shape_cast %104 : vector<1x32x8xbf16> to vector<32x8xbf16>
    %cst_76 = arith.constant dense<0.000000e+00> : vector<16x8xf32>
    %106 = tpu.matmul %2, %105, %cst_76 {dimension_numbers = #tpu.dot_dimension_numbers<[1], [0], [0], [1], [0, 0, 1, 1], [], []>} : vector<16x32xbf16>, vector<32x8xbf16>, vector<16x8xf32> -> vector<16x8xf32>
    %c2_77 = arith.constant 2 : index
    %c0_78 = arith.constant 0 : index
    %c0_79 = arith.constant 0 : index
    %107 = vector.load %arg7[%c2_77, %c0_78, %c0_79] : memref<4x1x8xf32, #tpu.memory_space<vmem>>, vector<1x1x8xf32>
    %108 = vector.shape_cast %107 : vector<1x1x8xf32> to vector<1x8xf32>
    %109 = vector.broadcast %108 : vector<1x8xf32> to vector<16x8xf32>
    %110 = arith.addf %106, %109 : vector<16x8xf32>
    %111 = arith.truncf %96 : vector<16x8xf32> to vector<16x8xbf16>
    %112 = arith.truncf %103 : vector<16x8xf32> to vector<16x8xbf16>
    %cst_80 = arith.constant dense<0.000000e+00> : vector<16x16xf32>
    %113 = tpu.matmul %111, %112, %cst_80 {dimension_numbers = #tpu.dot_dimension_numbers<[1], [1], [0], [0], [0, 0, 1, 0], [], []>} : vector<16x8xbf16>, vector<16x8xbf16>, vector<16x16xf32> -> vector<16x16xf32>
    %114 = arith.addf %113, %1 : vector<16x16xf32>
    %cst_81 = arith.constant dense<0xFF800000> : vector<16xf32>
    %115 = vector.multi_reduction <maximumf>, %114, %cst_81 [1] : vector<16x16xf32> to vector<16xf32>
    %116 = vector.shape_cast %115 : vector<16xf32> to vector<16x1xf32>
    %117 = vector.broadcast %116 : vector<16x1xf32> to vector<16x16xf32>
    %118 = arith.subf %114, %117 : vector<16x16xf32>
    %119 = math.exp %118 : vector<16x16xf32>
    %cst_82 = arith.constant dense<0.000000e+00> : vector<16xf32>
    %120 = vector.multi_reduction <add>, %119, %cst_82 [1] : vector<16x16xf32> to vector<16xf32>
    %121 = vector.shape_cast %120 : vector<16xf32> to vector<16x1xf32>
    %122 = tpu.reciprocal %121 {approx = true} : vector<16x1xf32> -> vector<16x1xf32>
    %123 = vector.broadcast %122 : vector<16x1xf32> to vector<16x16xf32>
    %124 = arith.mulf %119, %123 : vector<16x16xf32>
    %125 = arith.truncf %124 : vector<16x16xf32> to vector<16x16xbf16>
    %126 = arith.truncf %110 : vector<16x8xf32> to vector<16x8xbf16>
    %cst_83 = arith.constant dense<0.000000e+00> : vector<16x8xf32>
    %127 = tpu.matmul %125, %126, %cst_83 {dimension_numbers = #tpu.dot_dimension_numbers<[1], [0], [0], [1], [0, 0, 1, 1], [], []>} : vector<16x16xbf16>, vector<16x8xbf16>, vector<16x8xf32> -> vector<16x8xf32>
    %128 = arith.truncf %127 : vector<16x8xf32> to vector<16x8xbf16>
    %c2_84 = arith.constant 2 : index
    %c0_85 = arith.constant 0 : index
    %c0_86 = arith.constant 0 : index
    %129 = vector.load %arg8[%c2_84, %c0_85, %c0_86] : memref<4x8x32xbf16, #tpu.memory_space<vmem>>, vector<1x8x32xbf16>
    %130 = vector.shape_cast %129 : vector<1x8x32xbf16> to vector<8x32xbf16>
    %cst_87 = arith.constant dense<0.000000e+00> : vector<16x32xf32>
    %131 = tpu.matmul %128, %130, %cst_87 {dimension_numbers = #tpu.dot_dimension_numbers<[1], [0], [0], [1], [0, 0, 1, 1], [], []>} : vector<16x8xbf16>, vector<8x32xbf16>, vector<16x32xf32> -> vector<16x32xf32>
    %132 = arith.addf %89, %131 : vector<16x32xf32>
    %c3 = arith.constant 3 : index
    %c0_88 = arith.constant 0 : index
    %c0_89 = arith.constant 0 : index
    %133 = vector.load %arg2[%c3, %c0_88, %c0_89] : memref<4x32x8xbf16, #tpu.memory_space<vmem>>, vector<1x32x8xbf16>
    %134 = vector.shape_cast %133 : vector<1x32x8xbf16> to vector<32x8xbf16>
    %cst_90 = arith.constant dense<0.000000e+00> : vector<16x8xf32>
    %135 = tpu.matmul %2, %134, %cst_90 {dimension_numbers = #tpu.dot_dimension_numbers<[1], [0], [0], [1], [0, 0, 1, 1], [], []>} : vector<16x32xbf16>, vector<32x8xbf16>, vector<16x8xf32> -> vector<16x8xf32>
    %c3_91 = arith.constant 3 : index
    %c0_92 = arith.constant 0 : index
    %c0_93 = arith.constant 0 : index
    %136 = vector.load %arg3[%c3_91, %c0_92, %c0_93] : memref<4x1x8xf32, #tpu.memory_space<vmem>>, vector<1x1x8xf32>
    %137 = vector.shape_cast %136 : vector<1x1x8xf32> to vector<1x8xf32>
    %138 = vector.broadcast %137 : vector<1x8xf32> to vector<16x8xf32>
    %139 = arith.addf %135, %138 : vector<16x8xf32>
    %c3_94 = arith.constant 3 : index
    %c0_95 = arith.constant 0 : index
    %c0_96 = arith.constant 0 : index
    %140 = vector.load %arg4[%c3_94, %c0_95, %c0_96] : memref<4x32x8xbf16, #tpu.memory_space<vmem>>, vector<1x32x8xbf16>
    %141 = vector.shape_cast %140 : vector<1x32x8xbf16> to vector<32x8xbf16>
    %cst_97 = arith.constant dense<0.000000e+00> : vector<16x8xf32>
    %142 = tpu.matmul %2, %141, %cst_97 {dimension_numbers = #tpu.dot_dimension_numbers<[1], [0], [0], [1], [0, 0, 1, 1], [], []>} : vector<16x32xbf16>, vector<32x8xbf16>, vector<16x8xf32> -> vector<16x8xf32>
    %c3_98 = arith.constant 3 : index
    %c0_99 = arith.constant 0 : index
    %c0_100 = arith.constant 0 : index
    %143 = vector.load %arg5[%c3_98, %c0_99, %c0_100] : memref<4x1x8xf32, #tpu.memory_space<vmem>>, vector<1x1x8xf32>
    %144 = vector.shape_cast %143 : vector<1x1x8xf32> to vector<1x8xf32>
    %145 = vector.broadcast %144 : vector<1x8xf32> to vector<16x8xf32>
    %146 = arith.addf %142, %145 : vector<16x8xf32>
    %c3_101 = arith.constant 3 : index
    %c0_102 = arith.constant 0 : index
    %c0_103 = arith.constant 0 : index
    %147 = vector.load %arg6[%c3_101, %c0_102, %c0_103] : memref<4x32x8xbf16, #tpu.memory_space<vmem>>, vector<1x32x8xbf16>
    %148 = vector.shape_cast %147 : vector<1x32x8xbf16> to vector<32x8xbf16>
    %cst_104 = arith.constant dense<0.000000e+00> : vector<16x8xf32>
    %149 = tpu.matmul %2, %148, %cst_104 {dimension_numbers = #tpu.dot_dimension_numbers<[1], [0], [0], [1], [0, 0, 1, 1], [], []>} : vector<16x32xbf16>, vector<32x8xbf16>, vector<16x8xf32> -> vector<16x8xf32>
    %c3_105 = arith.constant 3 : index
    %c0_106 = arith.constant 0 : index
    %c0_107 = arith.constant 0 : index
    %150 = vector.load %arg7[%c3_105, %c0_106, %c0_107] : memref<4x1x8xf32, #tpu.memory_space<vmem>>, vector<1x1x8xf32>
    %151 = vector.shape_cast %150 : vector<1x1x8xf32> to vector<1x8xf32>
    %152 = vector.broadcast %151 : vector<1x8xf32> to vector<16x8xf32>
    %153 = arith.addf %149, %152 : vector<16x8xf32>
    %154 = arith.truncf %139 : vector<16x8xf32> to vector<16x8xbf16>
    %155 = arith.truncf %146 : vector<16x8xf32> to vector<16x8xbf16>
    %cst_108 = arith.constant dense<0.000000e+00> : vector<16x16xf32>
    %156 = tpu.matmul %154, %155, %cst_108 {dimension_numbers = #tpu.dot_dimension_numbers<[1], [1], [0], [0], [0, 0, 1, 0], [], []>} : vector<16x8xbf16>, vector<16x8xbf16>, vector<16x16xf32> -> vector<16x16xf32>
    %157 = arith.addf %156, %1 : vector<16x16xf32>
    %cst_109 = arith.constant dense<0xFF800000> : vector<16xf32>
    %158 = vector.multi_reduction <maximumf>, %157, %cst_109 [1] : vector<16x16xf32> to vector<16xf32>
    %159 = vector.shape_cast %158 : vector<16xf32> to vector<16x1xf32>
    %160 = vector.broadcast %159 : vector<16x1xf32> to vector<16x16xf32>
    %161 = arith.subf %157, %160 : vector<16x16xf32>
    %162 = math.exp %161 : vector<16x16xf32>
    %cst_110 = arith.constant dense<0.000000e+00> : vector<16xf32>
    %163 = vector.multi_reduction <add>, %162, %cst_110 [1] : vector<16x16xf32> to vector<16xf32>
    %164 = vector.shape_cast %163 : vector<16xf32> to vector<16x1xf32>
    %165 = tpu.reciprocal %164 {approx = true} : vector<16x1xf32> -> vector<16x1xf32>
    %166 = vector.broadcast %165 : vector<16x1xf32> to vector<16x16xf32>
    %167 = arith.mulf %162, %166 : vector<16x16xf32>
    %168 = arith.truncf %167 : vector<16x16xf32> to vector<16x16xbf16>
    %169 = arith.truncf %153 : vector<16x8xf32> to vector<16x8xbf16>
    %cst_111 = arith.constant dense<0.000000e+00> : vector<16x8xf32>
    %170 = tpu.matmul %168, %169, %cst_111 {dimension_numbers = #tpu.dot_dimension_numbers<[1], [0], [0], [1], [0, 0, 1, 1], [], []>} : vector<16x16xbf16>, vector<16x8xbf16>, vector<16x8xf32> -> vector<16x8xf32>
    %171 = arith.truncf %170 : vector<16x8xf32> to vector<16x8xbf16>
    %c3_112 = arith.constant 3 : index
    %c0_113 = arith.constant 0 : index
    %c0_114 = arith.constant 0 : index
    %172 = vector.load %arg8[%c3_112, %c0_113, %c0_114] : memref<4x8x32xbf16, #tpu.memory_space<vmem>>, vector<1x8x32xbf16>
    %173 = vector.shape_cast %172 : vector<1x8x32xbf16> to vector<8x32xbf16>
    %cst_115 = arith.constant dense<0.000000e+00> : vector<16x32xf32>
    %174 = tpu.matmul %171, %173, %cst_115 {dimension_numbers = #tpu.dot_dimension_numbers<[1], [0], [0], [1], [0, 0, 1, 1], [], []>} : vector<16x8xbf16>, vector<8x32xbf16>, vector<16x32xf32> -> vector<16x32xf32>
    %175 = arith.addf %132, %174 : vector<16x32xf32>
    %c0_116 = arith.constant 0 : index
    %c0_117 = arith.constant 0 : index
    %176 = vector.load %arg9[%c0_116, %c0_117] : memref<1x32xf32, #tpu.memory_space<vmem>>, vector<1x32xf32>
    %177 = vector.broadcast %176 : vector<1x32xf32> to vector<16x32xf32>
    %178 = arith.addf %175, %177 : vector<16x32xf32>
    %179 = arith.addf %0, %178 : vector<16x32xf32>
    %cst_118 = arith.constant dense<0.000000e+00> : vector<16xf32>
    %180 = vector.multi_reduction <add>, %179, %cst_118 [1] : vector<16x32xf32> to vector<16xf32>
    %181 = vector.shape_cast %180 : vector<16xf32> to vector<16x1xf32>
    %cst_119 = arith.constant 3.200000e+01 : f32
    %182 = vector.broadcast %cst_119 : f32 to vector<16x1xf32>
    %183 = arith.divf %181, %182 : vector<16x1xf32>
    %184 = vector.broadcast %183 : vector<16x1xf32> to vector<16x32xf32>
    %185 = arith.subf %179, %184 : vector<16x32xf32>
    %186 = arith.mulf %185, %185 : vector<16x32xf32>
    %cst_120 = arith.constant dense<0.000000e+00> : vector<16xf32>
    %187 = vector.multi_reduction <add>, %186, %cst_120 [1] : vector<16x32xf32> to vector<16xf32>
    %188 = vector.shape_cast %187 : vector<16xf32> to vector<16x1xf32>
    %cst_121 = arith.constant 3.200000e+01 : f32
    %189 = vector.broadcast %cst_121 : f32 to vector<16x1xf32>
    %190 = arith.divf %188, %189 : vector<16x1xf32>
    %191 = vector.broadcast %183 : vector<16x1xf32> to vector<16x32xf32>
    %192 = arith.subf %179, %191 : vector<16x32xf32>
    %cst_122 = arith.constant 9.99999974E-6 : f32
    %193 = vector.broadcast %cst_122 : f32 to vector<16x1xf32>
    %194 = arith.addf %190, %193 : vector<16x1xf32>
    %195 = math.rsqrt %194 : vector<16x1xf32>
    %196 = vector.broadcast %195 : vector<16x1xf32> to vector<16x32xf32>
    %197 = arith.mulf %192, %196 : vector<16x32xf32>
    %c0_123 = arith.constant 0 : index
    %c0_124 = arith.constant 0 : index
    %198 = vector.load %arg10[%c0_123, %c0_124] : memref<1x32xf32, #tpu.memory_space<vmem>>, vector<1x32xf32>
    %199 = vector.broadcast %198 : vector<1x32xf32> to vector<16x32xf32>
    %200 = arith.mulf %197, %199 : vector<16x32xf32>
    %c0_125 = arith.constant 0 : index
    %c0_126 = arith.constant 0 : index
    %201 = vector.load %arg11[%c0_125, %c0_126] : memref<1x32xf32, #tpu.memory_space<vmem>>, vector<1x32xf32>
    %202 = vector.broadcast %201 : vector<1x32xf32> to vector<16x32xf32>
    %203 = arith.addf %200, %202 : vector<16x32xf32>
    %204 = arith.truncf %203 : vector<16x32xf32> to vector<16x32xbf16>
    %cst_127 = arith.constant 0.000000e+00 : f32
    %205 = vector.broadcast %cst_127 : f32 to vector<16x32xf32>
    %c0_128 = arith.constant 0 : index
    %c0_129 = arith.constant 0 : index
    %c0_130 = arith.constant 0 : index
    %206 = vector.load %arg12[%c0_128, %c0_129, %c0_130] : memref<4x32x8xbf16, #tpu.memory_space<vmem>>, vector<1x32x8xbf16>
    %207 = vector.shape_cast %206 : vector<1x32x8xbf16> to vector<32x8xbf16>
    %cst_131 = arith.constant dense<0.000000e+00> : vector<16x8xf32>
    %208 = tpu.matmul %204, %207, %cst_131 {dimension_numbers = #tpu.dot_dimension_numbers<[1], [0], [0], [1], [0, 0, 1, 1], [], []>} : vector<16x32xbf16>, vector<32x8xbf16>, vector<16x8xf32> -> vector<16x8xf32>
    %c0_132 = arith.constant 0 : index
    %c0_133 = arith.constant 0 : index
    %c0_134 = arith.constant 0 : index
    %209 = vector.load %arg13[%c0_132, %c0_133, %c0_134] : memref<4x1x8xf32, #tpu.memory_space<vmem>>, vector<1x1x8xf32>
    %210 = vector.shape_cast %209 : vector<1x1x8xf32> to vector<1x8xf32>
    %211 = vector.broadcast %210 : vector<1x8xf32> to vector<16x8xf32>
    %212 = arith.addf %208, %211 : vector<16x8xf32>
    %c0_135 = arith.constant 0 : index
    %c0_136 = arith.constant 0 : index
    %c0_137 = arith.constant 0 : index
    %213 = vector.load %arg14[%c0_135, %c0_136, %c0_137] : memref<4x32x8xbf16, #tpu.memory_space<vmem>>, vector<1x32x8xbf16>
    %214 = vector.shape_cast %213 : vector<1x32x8xbf16> to vector<32x8xbf16>
    %cst_138 = arith.constant dense<0.000000e+00> : vector<16x8xf32>
    %215 = tpu.matmul %204, %214, %cst_138 {dimension_numbers = #tpu.dot_dimension_numbers<[1], [0], [0], [1], [0, 0, 1, 1], [], []>} : vector<16x32xbf16>, vector<32x8xbf16>, vector<16x8xf32> -> vector<16x8xf32>
    %c0_139 = arith.constant 0 : index
    %c0_140 = arith.constant 0 : index
    %c0_141 = arith.constant 0 : index
    %216 = vector.load %arg15[%c0_139, %c0_140, %c0_141] : memref<4x1x8xf32, #tpu.memory_space<vmem>>, vector<1x1x8xf32>
    %217 = vector.shape_cast %216 : vector<1x1x8xf32> to vector<1x8xf32>
    %218 = vector.broadcast %217 : vector<1x8xf32> to vector<16x8xf32>
    %219 = arith.addf %215, %218 : vector<16x8xf32>
    %c0_142 = arith.constant 0 : index
    %c0_143 = arith.constant 0 : index
    %c0_144 = arith.constant 0 : index
    %220 = vector.load %arg16[%c0_142, %c0_143, %c0_144] : memref<4x32x8xbf16, #tpu.memory_space<vmem>>, vector<1x32x8xbf16>
    %221 = vector.shape_cast %220 : vector<1x32x8xbf16> to vector<32x8xbf16>
    %cst_145 = arith.constant dense<0.000000e+00> : vector<16x8xf32>
    %222 = tpu.matmul %204, %221, %cst_145 {dimension_numbers = #tpu.dot_dimension_numbers<[1], [0], [0], [1], [0, 0, 1, 1], [], []>} : vector<16x32xbf16>, vector<32x8xbf16>, vector<16x8xf32> -> vector<16x8xf32>
    %c0_146 = arith.constant 0 : index
    %c0_147 = arith.constant 0 : index
    %c0_148 = arith.constant 0 : index
    %223 = vector.load %arg17[%c0_146, %c0_147, %c0_148] : memref<4x1x8xf32, #tpu.memory_space<vmem>>, vector<1x1x8xf32>
    %224 = vector.shape_cast %223 : vector<1x1x8xf32> to vector<1x8xf32>
    %225 = vector.broadcast %224 : vector<1x8xf32> to vector<16x8xf32>
    %226 = arith.addf %222, %225 : vector<16x8xf32>
    %227 = arith.truncf %212 : vector<16x8xf32> to vector<16x8xbf16>
    %228 = arith.truncf %219 : vector<16x8xf32> to vector<16x8xbf16>
    %cst_149 = arith.constant dense<0.000000e+00> : vector<16x16xf32>
    %229 = tpu.matmul %227, %228, %cst_149 {dimension_numbers = #tpu.dot_dimension_numbers<[1], [1], [0], [0], [0, 0, 1, 0], [], []>} : vector<16x8xbf16>, vector<16x8xbf16>, vector<16x16xf32> -> vector<16x16xf32>
    %230 = arith.addf %229, %1 : vector<16x16xf32>
    %cst_150 = arith.constant dense<0xFF800000> : vector<16xf32>
    %231 = vector.multi_reduction <maximumf>, %230, %cst_150 [1] : vector<16x16xf32> to vector<16xf32>
    %232 = vector.shape_cast %231 : vector<16xf32> to vector<16x1xf32>
    %233 = vector.broadcast %232 : vector<16x1xf32> to vector<16x16xf32>
    %234 = arith.subf %230, %233 : vector<16x16xf32>
    %235 = math.exp %234 : vector<16x16xf32>
    %cst_151 = arith.constant dense<0.000000e+00> : vector<16xf32>
    %236 = vector.multi_reduction <add>, %235, %cst_151 [1] : vector<16x16xf32> to vector<16xf32>
    %237 = vector.shape_cast %236 : vector<16xf32> to vector<16x1xf32>
    %238 = tpu.reciprocal %237 {approx = true} : vector<16x1xf32> -> vector<16x1xf32>
    %239 = vector.broadcast %238 : vector<16x1xf32> to vector<16x16xf32>
    %240 = arith.mulf %235, %239 : vector<16x16xf32>
    %241 = arith.truncf %240 : vector<16x16xf32> to vector<16x16xbf16>
    %242 = arith.truncf %226 : vector<16x8xf32> to vector<16x8xbf16>
    %cst_152 = arith.constant dense<0.000000e+00> : vector<16x8xf32>
    %243 = tpu.matmul %241, %242, %cst_152 {dimension_numbers = #tpu.dot_dimension_numbers<[1], [0], [0], [1], [0, 0, 1, 1], [], []>} : vector<16x16xbf16>, vector<16x8xbf16>, vector<16x8xf32> -> vector<16x8xf32>
    %244 = arith.truncf %243 : vector<16x8xf32> to vector<16x8xbf16>
    %c0_153 = arith.constant 0 : index
    %c0_154 = arith.constant 0 : index
    %c0_155 = arith.constant 0 : index
    %245 = vector.load %arg18[%c0_153, %c0_154, %c0_155] : memref<4x8x32xbf16, #tpu.memory_space<vmem>>, vector<1x8x32xbf16>
    %246 = vector.shape_cast %245 : vector<1x8x32xbf16> to vector<8x32xbf16>
    %cst_156 = arith.constant dense<0.000000e+00> : vector<16x32xf32>
    %247 = tpu.matmul %244, %246, %cst_156 {dimension_numbers = #tpu.dot_dimension_numbers<[1], [0], [0], [1], [0, 0, 1, 1], [], []>} : vector<16x8xbf16>, vector<8x32xbf16>, vector<16x32xf32> -> vector<16x32xf32>
    %248 = arith.addf %205, %247 : vector<16x32xf32>
    %c1_157 = arith.constant 1 : index
    %c0_158 = arith.constant 0 : index
    %c0_159 = arith.constant 0 : index
    %249 = vector.load %arg12[%c1_157, %c0_158, %c0_159] : memref<4x32x8xbf16, #tpu.memory_space<vmem>>, vector<1x32x8xbf16>
    %250 = vector.shape_cast %249 : vector<1x32x8xbf16> to vector<32x8xbf16>
    %cst_160 = arith.constant dense<0.000000e+00> : vector<16x8xf32>
    %251 = tpu.matmul %204, %250, %cst_160 {dimension_numbers = #tpu.dot_dimension_numbers<[1], [0], [0], [1], [0, 0, 1, 1], [], []>} : vector<16x32xbf16>, vector<32x8xbf16>, vector<16x8xf32> -> vector<16x8xf32>
    %c1_161 = arith.constant 1 : index
    %c0_162 = arith.constant 0 : index
    %c0_163 = arith.constant 0 : index
    %252 = vector.load %arg13[%c1_161, %c0_162, %c0_163] : memref<4x1x8xf32, #tpu.memory_space<vmem>>, vector<1x1x8xf32>
    %253 = vector.shape_cast %252 : vector<1x1x8xf32> to vector<1x8xf32>
    %254 = vector.broadcast %253 : vector<1x8xf32> to vector<16x8xf32>
    %255 = arith.addf %251, %254 : vector<16x8xf32>
    %c1_164 = arith.constant 1 : index
    %c0_165 = arith.constant 0 : index
    %c0_166 = arith.constant 0 : index
    %256 = vector.load %arg14[%c1_164, %c0_165, %c0_166] : memref<4x32x8xbf16, #tpu.memory_space<vmem>>, vector<1x32x8xbf16>
    %257 = vector.shape_cast %256 : vector<1x32x8xbf16> to vector<32x8xbf16>
    %cst_167 = arith.constant dense<0.000000e+00> : vector<16x8xf32>
    %258 = tpu.matmul %204, %257, %cst_167 {dimension_numbers = #tpu.dot_dimension_numbers<[1], [0], [0], [1], [0, 0, 1, 1], [], []>} : vector<16x32xbf16>, vector<32x8xbf16>, vector<16x8xf32> -> vector<16x8xf32>
    %c1_168 = arith.constant 1 : index
    %c0_169 = arith.constant 0 : index
    %c0_170 = arith.constant 0 : index
    %259 = vector.load %arg15[%c1_168, %c0_169, %c0_170] : memref<4x1x8xf32, #tpu.memory_space<vmem>>, vector<1x1x8xf32>
    %260 = vector.shape_cast %259 : vector<1x1x8xf32> to vector<1x8xf32>
    %261 = vector.broadcast %260 : vector<1x8xf32> to vector<16x8xf32>
    %262 = arith.addf %258, %261 : vector<16x8xf32>
    %c1_171 = arith.constant 1 : index
    %c0_172 = arith.constant 0 : index
    %c0_173 = arith.constant 0 : index
    %263 = vector.load %arg16[%c1_171, %c0_172, %c0_173] : memref<4x32x8xbf16, #tpu.memory_space<vmem>>, vector<1x32x8xbf16>
    %264 = vector.shape_cast %263 : vector<1x32x8xbf16> to vector<32x8xbf16>
    %cst_174 = arith.constant dense<0.000000e+00> : vector<16x8xf32>
    %265 = tpu.matmul %204, %264, %cst_174 {dimension_numbers = #tpu.dot_dimension_numbers<[1], [0], [0], [1], [0, 0, 1, 1], [], []>} : vector<16x32xbf16>, vector<32x8xbf16>, vector<16x8xf32> -> vector<16x8xf32>
    %c1_175 = arith.constant 1 : index
    %c0_176 = arith.constant 0 : index
    %c0_177 = arith.constant 0 : index
    %266 = vector.load %arg17[%c1_175, %c0_176, %c0_177] : memref<4x1x8xf32, #tpu.memory_space<vmem>>, vector<1x1x8xf32>
    %267 = vector.shape_cast %266 : vector<1x1x8xf32> to vector<1x8xf32>
    %268 = vector.broadcast %267 : vector<1x8xf32> to vector<16x8xf32>
    %269 = arith.addf %265, %268 : vector<16x8xf32>
    %270 = arith.truncf %255 : vector<16x8xf32> to vector<16x8xbf16>
    %271 = arith.truncf %262 : vector<16x8xf32> to vector<16x8xbf16>
    %cst_178 = arith.constant dense<0.000000e+00> : vector<16x16xf32>
    %272 = tpu.matmul %270, %271, %cst_178 {dimension_numbers = #tpu.dot_dimension_numbers<[1], [1], [0], [0], [0, 0, 1, 0], [], []>} : vector<16x8xbf16>, vector<16x8xbf16>, vector<16x16xf32> -> vector<16x16xf32>
    %273 = arith.addf %272, %1 : vector<16x16xf32>
    %cst_179 = arith.constant dense<0xFF800000> : vector<16xf32>
    %274 = vector.multi_reduction <maximumf>, %273, %cst_179 [1] : vector<16x16xf32> to vector<16xf32>
    %275 = vector.shape_cast %274 : vector<16xf32> to vector<16x1xf32>
    %276 = vector.broadcast %275 : vector<16x1xf32> to vector<16x16xf32>
    %277 = arith.subf %273, %276 : vector<16x16xf32>
    %278 = math.exp %277 : vector<16x16xf32>
    %cst_180 = arith.constant dense<0.000000e+00> : vector<16xf32>
    %279 = vector.multi_reduction <add>, %278, %cst_180 [1] : vector<16x16xf32> to vector<16xf32>
    %280 = vector.shape_cast %279 : vector<16xf32> to vector<16x1xf32>
    %281 = tpu.reciprocal %280 {approx = true} : vector<16x1xf32> -> vector<16x1xf32>
    %282 = vector.broadcast %281 : vector<16x1xf32> to vector<16x16xf32>
    %283 = arith.mulf %278, %282 : vector<16x16xf32>
    %284 = arith.truncf %283 : vector<16x16xf32> to vector<16x16xbf16>
    %285 = arith.truncf %269 : vector<16x8xf32> to vector<16x8xbf16>
    %cst_181 = arith.constant dense<0.000000e+00> : vector<16x8xf32>
    %286 = tpu.matmul %284, %285, %cst_181 {dimension_numbers = #tpu.dot_dimension_numbers<[1], [0], [0], [1], [0, 0, 1, 1], [], []>} : vector<16x16xbf16>, vector<16x8xbf16>, vector<16x8xf32> -> vector<16x8xf32>
    %287 = arith.truncf %286 : vector<16x8xf32> to vector<16x8xbf16>
    %c1_182 = arith.constant 1 : index
    %c0_183 = arith.constant 0 : index
    %c0_184 = arith.constant 0 : index
    %288 = vector.load %arg18[%c1_182, %c0_183, %c0_184] : memref<4x8x32xbf16, #tpu.memory_space<vmem>>, vector<1x8x32xbf16>
    %289 = vector.shape_cast %288 : vector<1x8x32xbf16> to vector<8x32xbf16>
    %cst_185 = arith.constant dense<0.000000e+00> : vector<16x32xf32>
    %290 = tpu.matmul %287, %289, %cst_185 {dimension_numbers = #tpu.dot_dimension_numbers<[1], [0], [0], [1], [0, 0, 1, 1], [], []>} : vector<16x8xbf16>, vector<8x32xbf16>, vector<16x32xf32> -> vector<16x32xf32>
    %291 = arith.addf %248, %290 : vector<16x32xf32>
    %c2_186 = arith.constant 2 : index
    %c0_187 = arith.constant 0 : index
    %c0_188 = arith.constant 0 : index
    %292 = vector.load %arg12[%c2_186, %c0_187, %c0_188] : memref<4x32x8xbf16, #tpu.memory_space<vmem>>, vector<1x32x8xbf16>
    %293 = vector.shape_cast %292 : vector<1x32x8xbf16> to vector<32x8xbf16>
    %cst_189 = arith.constant dense<0.000000e+00> : vector<16x8xf32>
    %294 = tpu.matmul %204, %293, %cst_189 {dimension_numbers = #tpu.dot_dimension_numbers<[1], [0], [0], [1], [0, 0, 1, 1], [], []>} : vector<16x32xbf16>, vector<32x8xbf16>, vector<16x8xf32> -> vector<16x8xf32>
    %c2_190 = arith.constant 2 : index
    %c0_191 = arith.constant 0 : index
    %c0_192 = arith.constant 0 : index
    %295 = vector.load %arg13[%c2_190, %c0_191, %c0_192] : memref<4x1x8xf32, #tpu.memory_space<vmem>>, vector<1x1x8xf32>
    %296 = vector.shape_cast %295 : vector<1x1x8xf32> to vector<1x8xf32>
    %297 = vector.broadcast %296 : vector<1x8xf32> to vector<16x8xf32>
    %298 = arith.addf %294, %297 : vector<16x8xf32>
    %c2_193 = arith.constant 2 : index
    %c0_194 = arith.constant 0 : index
    %c0_195 = arith.constant 0 : index
    %299 = vector.load %arg14[%c2_193, %c0_194, %c0_195] : memref<4x32x8xbf16, #tpu.memory_space<vmem>>, vector<1x32x8xbf16>
    %300 = vector.shape_cast %299 : vector<1x32x8xbf16> to vector<32x8xbf16>
    %cst_196 = arith.constant dense<0.000000e+00> : vector<16x8xf32>
    %301 = tpu.matmul %204, %300, %cst_196 {dimension_numbers = #tpu.dot_dimension_numbers<[1], [0], [0], [1], [0, 0, 1, 1], [], []>} : vector<16x32xbf16>, vector<32x8xbf16>, vector<16x8xf32> -> vector<16x8xf32>
    %c2_197 = arith.constant 2 : index
    %c0_198 = arith.constant 0 : index
    %c0_199 = arith.constant 0 : index
    %302 = vector.load %arg15[%c2_197, %c0_198, %c0_199] : memref<4x1x8xf32, #tpu.memory_space<vmem>>, vector<1x1x8xf32>
    %303 = vector.shape_cast %302 : vector<1x1x8xf32> to vector<1x8xf32>
    %304 = vector.broadcast %303 : vector<1x8xf32> to vector<16x8xf32>
    %305 = arith.addf %301, %304 : vector<16x8xf32>
    %c2_200 = arith.constant 2 : index
    %c0_201 = arith.constant 0 : index
    %c0_202 = arith.constant 0 : index
    %306 = vector.load %arg16[%c2_200, %c0_201, %c0_202] : memref<4x32x8xbf16, #tpu.memory_space<vmem>>, vector<1x32x8xbf16>
    %307 = vector.shape_cast %306 : vector<1x32x8xbf16> to vector<32x8xbf16>
    %cst_203 = arith.constant dense<0.000000e+00> : vector<16x8xf32>
    %308 = tpu.matmul %204, %307, %cst_203 {dimension_numbers = #tpu.dot_dimension_numbers<[1], [0], [0], [1], [0, 0, 1, 1], [], []>} : vector<16x32xbf16>, vector<32x8xbf16>, vector<16x8xf32> -> vector<16x8xf32>
    %c2_204 = arith.constant 2 : index
    %c0_205 = arith.constant 0 : index
    %c0_206 = arith.constant 0 : index
    %309 = vector.load %arg17[%c2_204, %c0_205, %c0_206] : memref<4x1x8xf32, #tpu.memory_space<vmem>>, vector<1x1x8xf32>
    %310 = vector.shape_cast %309 : vector<1x1x8xf32> to vector<1x8xf32>
    %311 = vector.broadcast %310 : vector<1x8xf32> to vector<16x8xf32>
    %312 = arith.addf %308, %311 : vector<16x8xf32>
    %313 = arith.truncf %298 : vector<16x8xf32> to vector<16x8xbf16>
    %314 = arith.truncf %305 : vector<16x8xf32> to vector<16x8xbf16>
    %cst_207 = arith.constant dense<0.000000e+00> : vector<16x16xf32>
    %315 = tpu.matmul %313, %314, %cst_207 {dimension_numbers = #tpu.dot_dimension_numbers<[1], [1], [0], [0], [0, 0, 1, 0], [], []>} : vector<16x8xbf16>, vector<16x8xbf16>, vector<16x16xf32> -> vector<16x16xf32>
    %316 = arith.addf %315, %1 : vector<16x16xf32>
    %cst_208 = arith.constant dense<0xFF800000> : vector<16xf32>
    %317 = vector.multi_reduction <maximumf>, %316, %cst_208 [1] : vector<16x16xf32> to vector<16xf32>
    %318 = vector.shape_cast %317 : vector<16xf32> to vector<16x1xf32>
    %319 = vector.broadcast %318 : vector<16x1xf32> to vector<16x16xf32>
    %320 = arith.subf %316, %319 : vector<16x16xf32>
    %321 = math.exp %320 : vector<16x16xf32>
    %cst_209 = arith.constant dense<0.000000e+00> : vector<16xf32>
    %322 = vector.multi_reduction <add>, %321, %cst_209 [1] : vector<16x16xf32> to vector<16xf32>
    %323 = vector.shape_cast %322 : vector<16xf32> to vector<16x1xf32>
    %324 = tpu.reciprocal %323 {approx = true} : vector<16x1xf32> -> vector<16x1xf32>
    %325 = vector.broadcast %324 : vector<16x1xf32> to vector<16x16xf32>
    %326 = arith.mulf %321, %325 : vector<16x16xf32>
    %327 = arith.truncf %326 : vector<16x16xf32> to vector<16x16xbf16>
    %328 = arith.truncf %312 : vector<16x8xf32> to vector<16x8xbf16>
    %cst_210 = arith.constant dense<0.000000e+00> : vector<16x8xf32>
    %329 = tpu.matmul %327, %328, %cst_210 {dimension_numbers = #tpu.dot_dimension_numbers<[1], [0], [0], [1], [0, 0, 1, 1], [], []>} : vector<16x16xbf16>, vector<16x8xbf16>, vector<16x8xf32> -> vector<16x8xf32>
    %330 = arith.truncf %329 : vector<16x8xf32> to vector<16x8xbf16>
    %c2_211 = arith.constant 2 : index
    %c0_212 = arith.constant 0 : index
    %c0_213 = arith.constant 0 : index
    %331 = vector.load %arg18[%c2_211, %c0_212, %c0_213] : memref<4x8x32xbf16, #tpu.memory_space<vmem>>, vector<1x8x32xbf16>
    %332 = vector.shape_cast %331 : vector<1x8x32xbf16> to vector<8x32xbf16>
    %cst_214 = arith.constant dense<0.000000e+00> : vector<16x32xf32>
    %333 = tpu.matmul %330, %332, %cst_214 {dimension_numbers = #tpu.dot_dimension_numbers<[1], [0], [0], [1], [0, 0, 1, 1], [], []>} : vector<16x8xbf16>, vector<8x32xbf16>, vector<16x32xf32> -> vector<16x32xf32>
    %334 = arith.addf %291, %333 : vector<16x32xf32>
    %c3_215 = arith.constant 3 : index
    %c0_216 = arith.constant 0 : index
    %c0_217 = arith.constant 0 : index
    %335 = vector.load %arg12[%c3_215, %c0_216, %c0_217] : memref<4x32x8xbf16, #tpu.memory_space<vmem>>, vector<1x32x8xbf16>
    %336 = vector.shape_cast %335 : vector<1x32x8xbf16> to vector<32x8xbf16>
    %cst_218 = arith.constant dense<0.000000e+00> : vector<16x8xf32>
    %337 = tpu.matmul %204, %336, %cst_218 {dimension_numbers = #tpu.dot_dimension_numbers<[1], [0], [0], [1], [0, 0, 1, 1], [], []>} : vector<16x32xbf16>, vector<32x8xbf16>, vector<16x8xf32> -> vector<16x8xf32>
    %c3_219 = arith.constant 3 : index
    %c0_220 = arith.constant 0 : index
    %c0_221 = arith.constant 0 : index
    %338 = vector.load %arg13[%c3_219, %c0_220, %c0_221] : memref<4x1x8xf32, #tpu.memory_space<vmem>>, vector<1x1x8xf32>
    %339 = vector.shape_cast %338 : vector<1x1x8xf32> to vector<1x8xf32>
    %340 = vector.broadcast %339 : vector<1x8xf32> to vector<16x8xf32>
    %341 = arith.addf %337, %340 : vector<16x8xf32>
    %c3_222 = arith.constant 3 : index
    %c0_223 = arith.constant 0 : index
    %c0_224 = arith.constant 0 : index
    %342 = vector.load %arg14[%c3_222, %c0_223, %c0_224] : memref<4x32x8xbf16, #tpu.memory_space<vmem>>, vector<1x32x8xbf16>
    %343 = vector.shape_cast %342 : vector<1x32x8xbf16> to vector<32x8xbf16>
    %cst_225 = arith.constant dense<0.000000e+00> : vector<16x8xf32>
    %344 = tpu.matmul %204, %343, %cst_225 {dimension_numbers = #tpu.dot_dimension_numbers<[1], [0], [0], [1], [0, 0, 1, 1], [], []>} : vector<16x32xbf16>, vector<32x8xbf16>, vector<16x8xf32> -> vector<16x8xf32>
    %c3_226 = arith.constant 3 : index
    %c0_227 = arith.constant 0 : index
    %c0_228 = arith.constant 0 : index
    %345 = vector.load %arg15[%c3_226, %c0_227, %c0_228] : memref<4x1x8xf32, #tpu.memory_space<vmem>>, vector<1x1x8xf32>
    %346 = vector.shape_cast %345 : vector<1x1x8xf32> to vector<1x8xf32>
    %347 = vector.broadcast %346 : vector<1x8xf32> to vector<16x8xf32>
    %348 = arith.addf %344, %347 : vector<16x8xf32>
    %c3_229 = arith.constant 3 : index
    %c0_230 = arith.constant 0 : index
    %c0_231 = arith.constant 0 : index
    %349 = vector.load %arg16[%c3_229, %c0_230, %c0_231] : memref<4x32x8xbf16, #tpu.memory_space<vmem>>, vector<1x32x8xbf16>
    %350 = vector.shape_cast %349 : vector<1x32x8xbf16> to vector<32x8xbf16>
    %cst_232 = arith.constant dense<0.000000e+00> : vector<16x8xf32>
    %351 = tpu.matmul %204, %350, %cst_232 {dimension_numbers = #tpu.dot_dimension_numbers<[1], [0], [0], [1], [0, 0, 1, 1], [], []>} : vector<16x32xbf16>, vector<32x8xbf16>, vector<16x8xf32> -> vector<16x8xf32>
    %c3_233 = arith.constant 3 : index
    %c0_234 = arith.constant 0 : index
    %c0_235 = arith.constant 0 : index
    %352 = vector.load %arg17[%c3_233, %c0_234, %c0_235] : memref<4x1x8xf32, #tpu.memory_space<vmem>>, vector<1x1x8xf32>
    %353 = vector.shape_cast %352 : vector<1x1x8xf32> to vector<1x8xf32>
    %354 = vector.broadcast %353 : vector<1x8xf32> to vector<16x8xf32>
    %355 = arith.addf %351, %354 : vector<16x8xf32>
    %356 = arith.truncf %341 : vector<16x8xf32> to vector<16x8xbf16>
    %357 = arith.truncf %348 : vector<16x8xf32> to vector<16x8xbf16>
    %cst_236 = arith.constant dense<0.000000e+00> : vector<16x16xf32>
    %358 = tpu.matmul %356, %357, %cst_236 {dimension_numbers = #tpu.dot_dimension_numbers<[1], [1], [0], [0], [0, 0, 1, 0], [], []>} : vector<16x8xbf16>, vector<16x8xbf16>, vector<16x16xf32> -> vector<16x16xf32>
    %359 = arith.addf %358, %1 : vector<16x16xf32>
    %cst_237 = arith.constant dense<0xFF800000> : vector<16xf32>
    %360 = vector.multi_reduction <maximumf>, %359, %cst_237 [1] : vector<16x16xf32> to vector<16xf32>
    %361 = vector.shape_cast %360 : vector<16xf32> to vector<16x1xf32>
    %362 = vector.broadcast %361 : vector<16x1xf32> to vector<16x16xf32>
    %363 = arith.subf %359, %362 : vector<16x16xf32>
    %364 = math.exp %363 : vector<16x16xf32>
    %cst_238 = arith.constant dense<0.000000e+00> : vector<16xf32>
    %365 = vector.multi_reduction <add>, %364, %cst_238 [1] : vector<16x16xf32> to vector<16xf32>
    %366 = vector.shape_cast %365 : vector<16xf32> to vector<16x1xf32>
    %367 = tpu.reciprocal %366 {approx = true} : vector<16x1xf32> -> vector<16x1xf32>
    %368 = vector.broadcast %367 : vector<16x1xf32> to vector<16x16xf32>
    %369 = arith.mulf %364, %368 : vector<16x16xf32>
    %370 = arith.truncf %369 : vector<16x16xf32> to vector<16x16xbf16>
    %371 = arith.truncf %355 : vector<16x8xf32> to vector<16x8xbf16>
    %cst_239 = arith.constant dense<0.000000e+00> : vector<16x8xf32>
    %372 = tpu.matmul %370, %371, %cst_239 {dimension_numbers = #tpu.dot_dimension_numbers<[1], [0], [0], [1], [0, 0, 1, 1], [], []>} : vector<16x16xbf16>, vector<16x8xbf16>, vector<16x8xf32> -> vector<16x8xf32>
    %373 = arith.truncf %372 : vector<16x8xf32> to vector<16x8xbf16>
    %c3_240 = arith.constant 3 : index
    %c0_241 = arith.constant 0 : index
    %c0_242 = arith.constant 0 : index
    %374 = vector.load %arg18[%c3_240, %c0_241, %c0_242] : memref<4x8x32xbf16, #tpu.memory_space<vmem>>, vector<1x8x32xbf16>
    %375 = vector.shape_cast %374 : vector<1x8x32xbf16> to vector<8x32xbf16>
    %cst_243 = arith.constant dense<0.000000e+00> : vector<16x32xf32>
    %376 = tpu.matmul %373, %375, %cst_243 {dimension_numbers = #tpu.dot_dimension_numbers<[1], [0], [0], [1], [0, 0, 1, 1], [], []>} : vector<16x8xbf16>, vector<8x32xbf16>, vector<16x32xf32> -> vector<16x32xf32>
    %377 = arith.addf %334, %376 : vector<16x32xf32>
    %c0_244 = arith.constant 0 : index
    %c0_245 = arith.constant 0 : index
    %378 = vector.load %arg19[%c0_244, %c0_245] : memref<1x32xf32, #tpu.memory_space<vmem>>, vector<1x32xf32>
    %379 = vector.broadcast %378 : vector<1x32xf32> to vector<16x32xf32>
    %380 = arith.addf %377, %379 : vector<16x32xf32>
    %381 = arith.addf %203, %380 : vector<16x32xf32>
    %cst_246 = arith.constant dense<0.000000e+00> : vector<16xf32>
    %382 = vector.multi_reduction <add>, %381, %cst_246 [1] : vector<16x32xf32> to vector<16xf32>
    %383 = vector.shape_cast %382 : vector<16xf32> to vector<16x1xf32>
    %cst_247 = arith.constant 3.200000e+01 : f32
    %384 = vector.broadcast %cst_247 : f32 to vector<16x1xf32>
    %385 = arith.divf %383, %384 : vector<16x1xf32>
    %386 = vector.broadcast %385 : vector<16x1xf32> to vector<16x32xf32>
    %387 = arith.subf %381, %386 : vector<16x32xf32>
    %388 = arith.mulf %387, %387 : vector<16x32xf32>
    %cst_248 = arith.constant dense<0.000000e+00> : vector<16xf32>
    %389 = vector.multi_reduction <add>, %388, %cst_248 [1] : vector<16x32xf32> to vector<16xf32>
    %390 = vector.shape_cast %389 : vector<16xf32> to vector<16x1xf32>
    %cst_249 = arith.constant 3.200000e+01 : f32
    %391 = vector.broadcast %cst_249 : f32 to vector<16x1xf32>
    %392 = arith.divf %390, %391 : vector<16x1xf32>
    %393 = vector.broadcast %385 : vector<16x1xf32> to vector<16x32xf32>
    %394 = arith.subf %381, %393 : vector<16x32xf32>
    %cst_250 = arith.constant 9.99999974E-6 : f32
    %395 = vector.broadcast %cst_250 : f32 to vector<16x1xf32>
    %396 = arith.addf %392, %395 : vector<16x1xf32>
    %397 = math.rsqrt %396 : vector<16x1xf32>
    %398 = vector.broadcast %397 : vector<16x1xf32> to vector<16x32xf32>
    %399 = arith.mulf %394, %398 : vector<16x32xf32>
    %c0_251 = arith.constant 0 : index
    %c0_252 = arith.constant 0 : index
    %400 = vector.load %arg20[%c0_251, %c0_252] : memref<1x32xf32, #tpu.memory_space<vmem>>, vector<1x32xf32>
    %401 = vector.broadcast %400 : vector<1x32xf32> to vector<16x32xf32>
    %402 = arith.mulf %399, %401 : vector<16x32xf32>
    %c0_253 = arith.constant 0 : index
    %c0_254 = arith.constant 0 : index
    %403 = vector.load %arg21[%c0_253, %c0_254] : memref<1x32xf32, #tpu.memory_space<vmem>>, vector<1x32xf32>
    %404 = vector.broadcast %403 : vector<1x32xf32> to vector<16x32xf32>
    %405 = arith.addf %402, %404 : vector<16x32xf32>
    %406 = arith.truncf %405 : vector<16x32xf32> to vector<16x32xbf16>
    %c0_255 = arith.constant 0 : index
    %c0_256 = arith.constant 0 : index
    %407 = vector.load %arg22[%c0_255, %c0_256] : memref<32x128xbf16, #tpu.memory_space<vmem>>, vector<32x128xbf16>
    %cst_257 = arith.constant dense<0.000000e+00> : vector<16x128xf32>
    %408 = tpu.matmul %406, %407, %cst_257 {dimension_numbers = #tpu.dot_dimension_numbers<[1], [0], [0], [1], [0, 0, 1, 1], [], []>} : vector<16x32xbf16>, vector<32x128xbf16>, vector<16x128xf32> -> vector<16x128xf32>
    %c0_258 = arith.constant 0 : index
    %c0_259 = arith.constant 0 : index
    %409 = vector.load %arg23[%c0_258, %c0_259] : memref<1x128xf32, #tpu.memory_space<vmem>>, vector<1x128xf32>
    %410 = vector.broadcast %409 : vector<1x128xf32> to vector<16x128xf32>
    %411 = arith.addf %408, %410 : vector<16x128xf32>
    %c0_260 = arith.constant 0 : index
    %c0_261 = arith.constant 0 : index
    %412 = vector.load %arg24[%c0_260, %c0_261] : memref<16x128xf32, #tpu.memory_space<vmem>>, vector<16x128xf32>
    tpu.vector_store %arg24[%c0_260, %c0_261], %411 {strides = array<i32>} : memref<16x128xf32, #tpu.memory_space<vmem>>, vector<16x128xf32>,
    return
  }
}

</mosaic_0001>

<llo_original>
// kernel: tpu_custom_call.1
$region0: #{tpu_custom_call.1}
  #allocation0 [shape = 'u32[]', space=smem, size = 0x4, offset = 0x4, fixed_abs, tag = 'smem constant byte address 0x4 - core index']
  #allocation1 [shape = 'u32[144,128]{1,0:T(1,128)}', space=vmem, size = 0x12000, scoped, tag = 'internal scratch']
  %s0 = inlined_call_operand.vmem [shape: f32[16,32], index: 0, kind: input, shape index: {}]
  %s1 = inlined_call_operand.vmem [shape: f32[16,16], index: 1, kind: input, shape index: {}]
  %s2 = inlined_call_operand.vmem [shape: bf16[4,32,8], index: 2, kind: input, shape index: {}]
  %s3 = inlined_call_operand.vmem [shape: f32[4,1,8], index: 3, kind: input, shape index: {}]
  %s4 = inlined_call_operand.vmem [shape: bf16[4,32,8], index: 4, kind: input, shape index: {}]
  %s5 = inlined_call_operand.vmem [shape: f32[4,1,8], index: 5, kind: input, shape index: {}]
  %s6 = inlined_call_operand.vmem [shape: bf16[4,32,8], index: 6, kind: input, shape index: {}]
  %s7 = inlined_call_operand.vmem [shape: f32[4,1,8], index: 7, kind: input, shape index: {}]
  %s8 = inlined_call_operand.vmem [shape: bf16[4,8,32], index: 8, kind: input, shape index: {}]
  %s9 = inlined_call_operand.vmem [shape: f32[1,32], index: 9, kind: input, shape index: {}]
  %s10 = inlined_call_operand.vmem [shape: f32[1,32], index: 10, kind: input, shape index: {}]
  %s11 = inlined_call_operand.vmem [shape: f32[1,32], index: 11, kind: input, shape index: {}]
  %s12 = inlined_call_operand.vmem [shape: bf16[4,32,8], index: 12, kind: input, shape index: {}]
  %s13 = inlined_call_operand.vmem [shape: f32[4,1,8], index: 13, kind: input, shape index: {}]
  %s14 = inlined_call_operand.vmem [shape: bf16[4,32,8], index: 14, kind: input, shape index: {}]
  %s15 = inlined_call_operand.vmem [shape: f32[4,1,8], index: 15, kind: input, shape index: {}]
  %s16 = inlined_call_operand.vmem [shape: bf16[4,32,8], index: 16, kind: input, shape index: {}]
  %s17 = inlined_call_operand.vmem [shape: f32[4,1,8], index: 17, kind: input, shape index: {}]
  %s18 = inlined_call_operand.vmem [shape: bf16[4,8,32], index: 18, kind: input, shape index: {}]
  %s19 = inlined_call_operand.vmem [shape: f32[1,32], index: 19, kind: input, shape index: {}]
  %s20 = inlined_call_operand.vmem [shape: f32[1,32], index: 20, kind: input, shape index: {}]
  %s21 = inlined_call_operand.vmem [shape: f32[1,32], index: 21, kind: input, shape index: {}]
  %s22 = inlined_call_operand.vmem [shape: bf16[32,128], index: 22, kind: input, shape index: {}]
  %s23 = inlined_call_operand.vmem [shape: f32[1,128], index: 23, kind: input, shape index: {}]
  %s24 = inlined_call_operand.hbm [shape: f32[16,128], index: 24, kind: output, shape index: {}]
  %s25 = sld [smem:[#allocation0]]
  $region106: #{tpu_custom_call.1} parent=0
    _
  %s27 = ssub.s32 1, %s25
  %s28 = scalar_select 0, %s27, %s25
  $region1: #{tpu_custom_call.1} parent=0
    #allocation2 [shape = 'u8[8192]{0}', space=vmem, size = 0x2000, scoped, tag = 'output window, operand 0, single buffered']
    #allocation3 [shape = 's32[1]{0}', space=sflag, size = 0x4, scoped, tag = 'scoped memory for tpu_custom_call.1']
    %29 = vsyncpa [#allocation3], 0
    // Predicated region
    $region2: #{tpu_custom_call.1} parent=1 // pred_check
      _
    $region3: #{tpu_custom_call.1} parent=1 // pred_check_branch
      %31 = sbr.rel (0) target = $region5
    $region4: #{tpu_custom_call.1} parent=1 // pred_region
      _
    $region5: #{tpu_custom_call.1} parent=1 // pred_fallthru
      _
    // Predicated region
    $region6: #{tpu_custom_call.1} parent=1 // pred_check
      _
    $region7: #{tpu_custom_call.1} parent=1 // pred_check_branch
      %33 = sbr.rel (0) target = $region9
    $region8: #{tpu_custom_call.1} parent=1 // pred_region
      _
    $region9: #{tpu_custom_call.1} parent=1 // pred_fallthru
      _
    // Predicated region
    $region10: #{tpu_custom_call.1} parent=1 // pred_check
      _
    $region11: #{tpu_custom_call.1} parent=1 // pred_check_branch
      %35 = sbr.rel (0) target = $region13
    $region12: #{tpu_custom_call.1} parent=1 // pred_region
      _
    $region13: #{tpu_custom_call.1} parent=1 // pred_fallthru
      _
    // Predicated region
    $region14: #{tpu_custom_call.1} parent=1 // pred_check
      _
    $region15: #{tpu_custom_call.1} parent=1 // pred_check_branch
      %37 = sbr.rel (0) target = $region17
    $region16: #{tpu_custom_call.1} parent=1 // pred_region
      _
    $region17: #{tpu_custom_call.1} parent=1 // pred_fallthru
      _
    // Predicated region
    $region18: #{tpu_custom_call.1} parent=1 // pred_check
      _
    $region19: #{tpu_custom_call.1} parent=1 // pred_check_branch
      %39 = sbr.rel (0) target = $region21
    $region20: #{tpu_custom_call.1} parent=1 // pred_region
      _
    $region21: #{tpu_custom_call.1} parent=1 // pred_fallthru
      _
    // Predicated region
    $region22: #{tpu_custom_call.1} parent=1 // pred_check
      _
    $region23: #{tpu_custom_call.1} parent=1 // pred_check_branch
      %41 = sbr.rel (0) target = $region25
    $region24: #{tpu_custom_call.1} parent=1 // pred_region
      _
    $region25: #{tpu_custom_call.1} parent=1 // pred_fallthru
      _
    // Predicated region
    $region26: #{tpu_custom_call.1} parent=1 // pred_check
      _
    $region27: #{tpu_custom_call.1} parent=1 // pred_check_branch
      %43 = sbr.rel (0) target = $region29
    $region28: #{tpu_custom_call.1} parent=1 // pred_region
      _
    $region29: #{tpu_custom_call.1} parent=1 // pred_fallthru
      _
    // Predicated region
    $region30: #{tpu_custom_call.1} parent=1 // pred_check
      _
    $region31: #{tpu_custom_call.1} parent=1 // pred_check_branch
      %45 = sbr.rel (0) target = $region33
    $region32: #{tpu_custom_call.1} parent=1 // pred_region
      _
    $region33: #{tpu_custom_call.1} parent=1 // pred_fallthru
      _
    // Predicated region
    $region34: #{tpu_custom_call.1} parent=1 // pred_check
      _
    $region35: #{tpu_custom_call.1} parent=1 // pred_check_branch
      %47 = sbr.rel (0) target = $region37
    $region36: #{tpu_custom_call.1} parent=1 // pred_region
      _
    $region37: #{tpu_custom_call.1} parent=1 // pred_fallthru
      _
    // Predicated region
    $region38: #{tpu_custom_call.1} parent=1 // pred_check
      _
    $region39: #{tpu_custom_call.1} parent=1 // pred_check_branch
      %49 = sbr.rel (0) target = $region41
    $region40: #{tpu_custom_call.1} parent=1 // pred_region
      _
    $region41: #{tpu_custom_call.1} parent=1 // pred_fallthru
      _
    // Predicated region
    $region42: #{tpu_custom_call.1} parent=1 // pred_check
      _
    $region43: #{tpu_custom_call.1} parent=1 // pred_check_branch
      %51 = sbr.rel (0) target = $region45
    $region44: #{tpu_custom_call.1} parent=1 // pred_region
      _
    $region45: #{tpu_custom_call.1} parent=1 // pred_fallthru
      _
    // Predicated region
    $region46: #{tpu_custom_call.1} parent=1 // pred_check
      _
    $region47: #{tpu_custom_call.1} parent=1 // pred_check_branch
      %53 = sbr.rel (0) target = $region49
    $region48: #{tpu_custom_call.1} parent=1 // pred_region
      _
    $region49: #{tpu_custom_call.1} parent=1 // pred_fallthru
      _
    // Predicated region
    $region50: #{tpu_custom_call.1} parent=1 // pred_check
      _
    $region51: #{tpu_custom_call.1} parent=1 // pred_check_branch
      %55 = sbr.rel (0) target = $region53
    $region52: #{tpu_custom_call.1} parent=1 // pred_region
      _
    $region53: #{tpu_custom_call.1} parent=1 // pred_fallthru
      _
    // Predicated region
    $region54: #{tpu_custom_call.1} parent=1 // pred_check
      _
    $region55: #{tpu_custom_call.1} parent=1 // pred_check_branch
      %57 = sbr.rel (0) target = $region57
    $region56: #{tpu_custom_call.1} parent=1 // pred_region
      _
    $region57: #{tpu_custom_call.1} parent=1 // pred_fallthru
      _
    // Predicated region
    $region58: #{tpu_custom_call.1} parent=1 // pred_check
      _
    $region59: #{tpu_custom_call.1} parent=1 // pred_check_branch
      %59 = sbr.rel (0) target = $region61
    $region60: #{tpu_custom_call.1} parent=1 // pred_region
      _
    $region61: #{tpu_custom_call.1} parent=1 // pred_fallthru
      _
    // Predicated region
    $region62: #{tpu_custom_call.1} parent=1 // pred_check
      _
    $region63: #{tpu_custom_call.1} parent=1 // pred_check_branch
      %61 = sbr.rel (0) target = $region65
    $region64: #{tpu_custom_call.1} parent=1 // pred_region
      _
    $region65: #{tpu_custom_call.1} parent=1 // pred_fallthru
      _
    // Predicated region
    $region66: #{tpu_custom_call.1} parent=1 // pred_check
      _
    $region67: #{tpu_custom_call.1} parent=1 // pred_check_branch
      %63 = sbr.rel (0) target = $region69
    $region68: #{tpu_custom_call.1} parent=1 // pred_region
      _
    $region69: #{tpu_custom_call.1} parent=1 // pred_fallthru
      _
    // Predicated region
    $region70: #{tpu_custom_call.1} parent=1 // pred_check
      _
    $region71: #{tpu_custom_call.1} parent=1 // pred_check_branch
      %65 = sbr.rel (0) target = $region73
    $region72: #{tpu_custom_call.1} parent=1 // pred_region
      _
    $region73: #{tpu_custom_call.1} parent=1 // pred_fallthru
      _
    // Predicated region
    $region74: #{tpu_custom_call.1} parent=1 // pred_check
      _
    $region75: #{tpu_custom_call.1} parent=1 // pred_check_branch
      %67 = sbr.rel (0) target = $region77
    $region76: #{tpu_custom_call.1} parent=1 // pred_region
      _
    $region77: #{tpu_custom_call.1} parent=1 // pred_fallthru
      _
    // Predicated region
    $region78: #{tpu_custom_call.1} parent=1 // pred_check
      _
    $region79: #{tpu_custom_call.1} parent=1 // pred_check_branch
      %69 = sbr.rel (0) target = $region81
    $region80: #{tpu_custom_call.1} parent=1 // pred_region
      _
    $region81: #{tpu_custom_call.1} parent=1 // pred_fallthru
      _
    // Predicated region
    $region82: #{tpu_custom_call.1} parent=1 // pred_check
      _
    $region83: #{tpu_custom_call.1} parent=1 // pred_check_branch
      %71 = sbr.rel (0) target = $region85
    $region84: #{tpu_custom_call.1} parent=1 // pred_region
      _
    $region85: #{tpu_custom_call.1} parent=1 // pred_fallthru
      _
    // Predicated region
    $region86: #{tpu_custom_call.1} parent=1 // pred_check
      _
    $region87: #{tpu_custom_call.1} parent=1 // pred_check_branch
      %73 = sbr.rel (0) target = $region89
    $region88: #{tpu_custom_call.1} parent=1 // pred_region
      _
    $region89: #{tpu_custom_call.1} parent=1 // pred_fallthru
      _
    // Predicated region
    $region90: #{tpu_custom_call.1} parent=1 // pred_check
      _
    $region91: #{tpu_custom_call.1} parent=1 // pred_check_branch
      %75 = sbr.rel (0) target = $region93
    $region92: #{tpu_custom_call.1} parent=1 // pred_region
      _
    $region93: #{tpu_custom_call.1} parent=1 // pred_fallthru
      _
    // Predicated region
    $region94: #{tpu_custom_call.1} parent=1 // pred_check
      _
    $region95: #{tpu_custom_call.1} parent=1 // pred_check_branch
      %77 = sbr.rel (0) target = $region97
    $region96: #{tpu_custom_call.1} parent=1 // pred_region
      _
    $region97: #{tpu_custom_call.1} parent=1 // pred_fallthru
      _
    %v79 = vld [vmem:[%s0] sm:$0xff]
    %v80 = vld [vmem:[%s0 + $0x8] sm:$0xff]
    %v81 = vld [vmem:[%s1] sm:$0xff]
    %v82 = vld [vmem:[%s1 + $0x8] sm:$0xff]
    %v83 = vpack.c.bf16 %v80, %v79
    %v84 = vld [vmem:[%s2] sm:$0xf]
    %v85 = vld [vmem:[%s2 + $0x4] sm:$0xf]
    %v86 = vld [vmem:[%s2 + $0x8] sm:$0xf]
    %v87 = vld [vmem:[%s2 + $0xc] sm:$0xf]
    %v88 = vld [vmem:[%s3] sm:$0x1]
    %v90 = vlaneseq
    %v91 = vshrl.u32 %v90, 7
    %v92 = vsub.s32 0, %v91
    %v93 = vrot.slane %v88, %v92
    %v99 = vunpack.c.l.b16 %v84
    %v100 = vunpack.c.l.b16 %v85
    %v101 = vunpack.c.l.b16 %v86
    %v102 = vunpack.c.l.b16 %v87
    %v103 = vpack.c.b16 %v100, %v99
    %v104 = vpack.c.b16 %v102, %v101
    %vm107 = vcmask 261120
    %v109 = vsel %vm107, %v83, 0
    %111 = vmatprep.subr.bf16.mxu0 0
    %112 = vmatpush1.bf16.msra.mxu0 0
    %113 = vmatprep.subr.bf16.mxu0 0
    %114 = vmatpush1.bf16.msra.mxu0 0
    %115 = vmatprep.subr.bf16.mxu0 0
    %116 = vmatpush1.bf16.msra.mxu0 0
    %117 = vmatprep.subr.bf16.mxu0 0
    %118 = vmatpush1.bf16.msra.mxu0 0
    %119 = vmatprep.subr.bf16.mxu0 0
    %120 = vmatpush1.bf16.msra.mxu0 0
    %121 = vmatprep.subr.bf16.mxu0 0
    %122 = vmatpush1.bf16.msra.mxu0 0
    %123 = vmatprep.subr.bf16.mxu0 0
    %124 = vmatpush1.bf16.msra.mxu0 %v104
    %125 = vmatprep.subr.bf16.mxu0 0
    %126 = vmatpush1.bf16.msra.mxu0 %v103
    %127 = vmatprep.subr.bf16.mxu0 0
    %128 = vmatpush2.bf16.msra.mxu0 0
    %129 = vmatprep.subr.bf16.mxu0 0
    %130 = vmatpush2.bf16.msra.mxu0 0
    %131 = vmatprep.subr.bf16.mxu0 0
    %132 = vmatpush2.bf16.msra.mxu0 0
    %133 = vmatprep.subr.bf16.mxu0 0
    %134 = vmatpush2.bf16.msra.mxu0 0
    %135 = vmatprep.subr.bf16.mxu0 0
    %136 = vmatpush2.bf16.msra.mxu0 0
    %137 = vmatprep.subr.bf16.mxu0 0
    %138 = vmatpush2.bf16.msra.mxu0 0
    %139 = vmatprep.subr.bf16.mxu0 0
    %140 = vmatpush2.bf16.msra.mxu0 0
    %141 = vmatprep.subr.bf16.mxu0 0
    %142 = vmatpush2.bf16.msra.mxu0 0
    %143 = vmatprep.mubr.bf16.mxu0 0
    %144 = vmatmul.mubr.bf16.gmra.mxu0 %v109
    %v145 = vpop.f32.mrf.mxu0
    %v146 = vadd.f32 %v93, %v145
    %v147 = vpop.f32.mrf.mxu0
    %v148 = vpop.f32.mrf.mxu0
    %v149 = vadd.f32 %v93, %v148
    %v150 = vpop.f32.mrf.mxu0
    %151 = vdwg.mxu0
    %v152 = vld [vmem:[%s4] sm:$0xf]
    %v153 = vld [vmem:[%s4 + $0x4] sm:$0xf]
    %v154 = vld [vmem:[%s4 + $0x8] sm:$0xf]
    %v155 = vld [vmem:[%s4 + $0xc] sm:$0xf]
    %v156 = vld [vmem:[%s5] sm:$0x1]
    %v158 = vlaneseq
    %v159 = vshrl.u32 %v158, 7
    %v160 = vsub.s32 0, %v159
    %v161 = vrot.slane %v156, %v160
    %v167 = vunpack.c.l.b16 %v152
    %v168 = vunpack.c.l.b16 %v153
    %v169 = vunpack.c.l.b16 %v154
    %v170 = vunpack.c.l.b16 %v155
    %v171 = vpack.c.b16 %v168, %v167
    %v172 = vpack.c.b16 %v170, %v169
    %175 = vmatprep.subr.bf16.mxu0 0
    %176 = vmatpush1.bf16.msra.mxu0 0
    %177 = vmatprep.subr.bf16.mxu0 0
    %178 = vmatpush1.bf16.msra.mxu0 0
    %179 = vmatprep.subr.bf16.mxu0 0
    %180 = vmatpush1.bf16.msra.mxu0 0
    %181 = vmatprep.subr.bf16.mxu0 0
    %182 = vmatpush1.bf16.msra.mxu0 0
    %183 = vmatprep.subr.bf16.mxu0 0
    %184 = vmatpush1.bf16.msra.mxu0 0
    %185 = vmatprep.subr.bf16.mxu0 0
    %186 = vmatpush1.bf16.msra.mxu0 0
    %187 = vmatprep.subr.bf16.mxu0 0
    %188 = vmatpush1.bf16.msra.mxu0 %v172
    %189 = vmatprep.subr.bf16.mxu0 0
    %190 = vmatpush1.bf16.msra.mxu0 %v171
    %191 = vmatprep.subr.bf16.mxu0 0
    %192 = vmatpush2.bf16.msra.mxu0 0
    %193 = vmatprep.subr.bf16.mxu0 0
    %194 = vmatpush2.bf16.msra.mxu0 0
    %195 = vmatprep.subr.bf16.mxu0 0
    %196 = vmatpush2.bf16.msra.mxu0 0
    %197 = vmatprep.subr.bf16.mxu0 0
    %198 = vmatpush2.bf16.msra.mxu0 0
    %199 = vmatprep.subr.bf16.mxu0 0
    %200 = vmatpush2.bf16.msra.mxu0 0
    %201 = vmatprep.subr.bf16.mxu0 0
    %202 = vmatpush2.bf16.msra.mxu0 0
    %203 = vmatprep.subr.bf16.mxu0 0
    %204 = vmatpush2.bf16.msra.mxu0 0
    %205 = vmatprep.subr.bf16.mxu0 0
    %206 = vmatpush2.bf16.msra.mxu0 0
    %207 = vmatprep.mubr.bf16.mxu0 0
    %208 = vmatmul.mubr.bf16.gmra.mxu0 %v109
    %v209 = vpop.f32.mrf.mxu0
    %v210 = vadd.f32 %v161, %v209
    %v211 = vpop.f32.mrf.mxu0
    %v212 = vpop.f32.mrf.mxu0
    %v213 = vadd.f32 %v161, %v212
    %v214 = vpop.f32.mrf.mxu0
    %215 = vdwg.mxu0
    %v216 = vld [vmem:[%s6] sm:$0xf]
    %v217 = vld [vmem:[%s6 + $0x4] sm:$0xf]
    %v218 = vld [vmem:[%s6 + $0x8] sm:$0xf]
    %v219 = vld [vmem:[%s6 + $0xc] sm:$0xf]
    %v220 = vld [vmem:[%s7] sm:$0x1]
    %v222 = vlaneseq
    %v223 = vshrl.u32 %v222, 7
    %v224 = vsub.s32 0, %v223
    %v225 = vrot.slane %v220, %v224
    %v231 = vunpack.c.l.b16 %v216
    %v232 = vunpack.c.l.b16 %v217
    %v233 = vunpack.c.l.b16 %v218
    %v234 = vunpack.c.l.b16 %v219
    %v235 = vpack.c.b16 %v232, %v231
    %v236 = vpack.c.b16 %v234, %v233
    %239 = vmatprep.subr.bf16.mxu0 0
    %240 = vmatpush1.bf16.msra.mxu0 0
    %241 = vmatprep.subr.bf16.mxu0 0
    %242 = vmatpush1.bf16.msra.mxu0 0
    %243 = vmatprep.subr.bf16.mxu0 0
    %244 = vmatpush1.bf16.msra.mxu0 0
    %245 = vmatprep.subr.bf16.mxu0 0
    %246 = vmatpush1.bf16.msra.mxu0 0
    %247 = vmatprep.subr.bf16.mxu0 0
    %248 = vmatpush1.bf16.msra.mxu0 0
    %249 = vmatprep.subr.bf16.mxu0 0
    %250 = vmatpush1.bf16.msra.mxu0 0
    %251 = vmatprep.subr.bf16.mxu0 0
    %252 = vmatpush1.bf16.msra.mxu0 %v236
    %253 = vmatprep.subr.bf16.mxu0 0
    %254 = vmatpush1.bf16.msra.mxu0 %v235
    %255 = vmatprep.subr.bf16.mxu0 0
    %256 = vmatpush2.bf16.msra.mxu0 0
    %257 = vmatprep.subr.bf16.mxu0 0
    %258 = vmatpush2.bf16.msra.mxu0 0
    %259 = vmatprep.subr.bf16.mxu0 0
    %260 = vmatpush2.bf16.msra.mxu0 0
    %261 = vmatprep.subr.bf16.mxu0 0
    %262 = vmatpush2.bf16.msra.mxu0 0
    %263 = vmatprep.subr.bf16.mxu0 0
    %264 = vmatpush2.bf16.msra.mxu0 0
    %265 = vmatprep.subr.bf16.mxu0 0
    %266 = vmatpush2.bf16.msra.mxu0 0
    %267 = vmatprep.subr.bf16.mxu0 0
    %268 = vmatpush2.bf16.msra.mxu0 0
    %269 = vmatprep.subr.bf16.mxu0 0
    %270 = vmatpush2.bf16.msra.mxu0 0
    %271 = vmatprep.mubr.bf16.mxu0 0
    %272 = vmatmul.mubr.bf16.gmra.mxu0 %v109
    %v273 = vpop.f32.mrf.mxu0
    %v274 = vadd.f32 %v225, %v273
    %v275 = vpop.f32.mrf.mxu0
    %v276 = vpop.f32.mrf.mxu0
    %v277 = vadd.f32 %v225, %v276
    %v278 = vpop.f32.mrf.mxu0
    %279 = vdwg.mxu0
    %v280 = vpack.c.bf16 %v149, %v146
    %v281 = vpack.c.bf16 %v213, %v210
    %vm282 = vcmask 64512
    %v284 = vsel %vm282, %v280, 0
    %v287 = vsel %vm282, %v281, 0
    %289 = vmatprep.subr.bf16.mxu0 0
    %290 = vmatpush1.bf16.xpose.msra.mxu0 0
    %291 = vmatprep.subr.bf16.mxu0 0
    %292 = vmatpush1.bf16.xpose.msra.mxu0 0
    %293 = vmatprep.subr.bf16.mxu0 0
    %294 = vmatpush1.bf16.xpose.msra.mxu0 0
    %295 = vmatprep.subr.bf16.mxu0 0
    %296 = vmatpush1.bf16.xpose.msra.mxu0 0
    %297 = vmatprep.subr.bf16.mxu0 0
    %298 = vmatpush1.bf16.xpose.msra.mxu0 0
    %299 = vmatprep.subr.bf16.mxu0 0
    %300 = vmatpush1.bf16.xpose.msra.mxu0 0
    %301 = vmatprep.subr.bf16.mxu0 0
    %302 = vmatpush1.bf16.xpose.msra.mxu0 0
    %303 = vmatprep.subr.bf16.mxu0 0
    %304 = vmatpush1.bf16.xpose.msra.mxu0 %v287
    %305 = vmatprep.subr.bf16.mxu0 0
    %306 = vmatpush2.bf16.xpose.msra.mxu0 0
    %307 = vmatprep.subr.bf16.mxu0 0
    %308 = vmatpush2.bf16.xpose.msra.mxu0 0
    %309 = vmatprep.subr.bf16.mxu0 0
    %310 = vmatpush2.bf16.xpose.msra.mxu0 0
    %311 = vmatprep.subr.bf16.mxu0 0
    %312 = vmatpush2.bf16.xpose.msra.mxu0 0
    %313 = vmatprep.subr.bf16.mxu0 0
    %314 = vmatpush2.bf16.xpose.msra.mxu0 0
    %315 = vmatprep.subr.bf16.mxu0 0
    %316 = vmatpush2.bf16.xpose.msra.mxu0 0
    %317 = vmatprep.subr.bf16.mxu0 0
    %318 = vmatpush2.bf16.xpose.msra.mxu0 0
    %319 = vmatprep.subr.bf16.mxu0 0
    %320 = vmatpush2.bf16.xpose.msra.mxu0 0
    %321 = vmatprep.mubr.bf16.mxu0 0
    %322 = vmatmul.mubr.bf16.gmra.mxu0 %v284
    %v323 = vpop.f32.mrf.mxu0
    %v324 = vadd.f32 %v81, %v323
    %v325 = vpop.f32.mrf.mxu0
    %v326 = vpop.f32.mrf.mxu0
    %v327 = vadd.f32 %v82, %v326
    %v328 = vpop.f32.mrf.mxu0
    %329 = vdwg.mxu0
    %vm330 = vcmask 130048
    %v331 = vsel %vm330, %v324, -inf
    %332 = vmax.xlane.f32.xlu0 %v331
    %v333 = vpop.xlane.xlu0 %332
    %v334 = vsel %vm330, %v327, -inf
    %335 = vmax.xlane.f32.xlu0 %v334
    %v336 = vpop.xlane.xlu0 %335
    %v337 = vsub.f32 %v324, %v333
    %v338 = vsub.f32 %v327, %v336
    %v339 = vmul.f32 %v337, 1.442695
    %v340 = vpow.pop %v339
    %v341 = vmul.f32 %v338, 1.442695
    %v342 = vpow.pop %v341
    %v343 = vsel %vm330, %v340, 0.0
    %344 = vadd.xlane.f32.xlu0 %v343
    %v345 = vpop.xlane.xlu0 %344
    %v346 = vsel %vm330, %v342, 0.0
    %347 = vadd.xlane.f32.xlu0 %v346
    %v348 = vpop.xlane.xlu0 %347
    %v349 = vrcp.pop %v345
    %v350 = vrcp.pop %v348
    %v351 = vmul.f32 %v340, %v349
    %v352 = vmul.f32 %v342, %v350
    %v353 = vpack.c.bf16 %v352, %v351
    %v354 = vpack.c.bf16 %v277, %v274
    %v356 = vsel %vm330, %v353, 0
    %358 = vmatprep.subr.bf16.mxu0 0
    %359 = vmatpush1.bf16.msra.mxu0 0
    %360 = vmatprep.subr.bf16.mxu0 0
    %361 = vmatpush1.bf16.msra.mxu0 0
    %362 = vmatprep.subr.bf16.mxu0 0
    %363 = vmatpush1.bf16.msra.mxu0 0
    %364 = vmatprep.subr.bf16.mxu0 0
    %365 = vmatpush1.bf16.msra.mxu0 0
    %366 = vmatprep.subr.bf16.mxu0 0
    %367 = vmatpush1.bf16.msra.mxu0 0
    %368 = vmatprep.subr.bf16.mxu0 0
    %369 = vmatpush1.bf16.msra.mxu0 0
    %370 = vmatprep.subr.bf16.mxu0 0
    %371 = vmatpush1.bf16.msra.mxu0 0
    %372 = vmatprep.subr.bf16.mxu0 0
    %373 = vmatpush1.bf16.msra.mxu0 %v354
    %374 = vmatprep.subr.bf16.mxu0 0
    %375 = vmatpush2.bf16.msra.mxu0 0
    %376 = vmatprep.subr.bf16.mxu0 0
    %377 = vmatpush2.bf16.msra.mxu0 0
    %378 = vmatprep.subr.bf16.mxu0 0
    %379 = vmatpush2.bf16.msra.mxu0 0
    %380 = vmatprep.subr.bf16.mxu0 0
    %381 = vmatpush2.bf16.msra.mxu0 0
    %382 = vmatprep.subr.bf16.mxu0 0
    %383 = vmatpush2.bf16.msra.mxu0 0
    %384 = vmatprep.subr.bf16.mxu0 0
    %385 = vmatpush2.bf16.msra.mxu0 0
    %386 = vmatprep.subr.bf16.mxu0 0
    %387 = vmatpush2.bf16.msra.mxu0 0
    %388 = vmatprep.subr.bf16.mxu0 0
    %389 = vmatpush2.bf16.msra.mxu0 0
    %390 = vmatprep.mubr.bf16.mxu0 0
    %391 = vmatmul.mubr.bf16.gmra.mxu0 %v356
    %v392 = vpop.f32.mrf.mxu0
    %v393 = vadd.f32 0.0, %v392
    %v394 = vpop.f32.mrf.mxu0
    %v395 = vpop.f32.mrf.mxu0
    %v396 = vadd.f32 0.0, %v395
    %v397 = vpop.f32.mrf.mxu0
    %398 = vdwg.mxu0
    %v399 = vpack.c.bf16 %v396, %v393
    %v400 = vld [vmem:[%s8] sm:$0xf]
    %s401 = scalar_lea.vmem %s2, 16
    %v402 = vld [vmem:[%s401] sm:$0xf]
    %v403 = vld [vmem:[%s401 + $0x4] sm:$0xf]
    %v404 = vld [vmem:[%s401 + $0x8] sm:$0xf]
    %v405 = vld [vmem:[%s401 + $0xc] sm:$0xf]
    %s406 = scalar_lea.vmem %s3, 1
    %v407 = vld [vmem:[%s406] sm:$0x1]
    %v409 = vlaneseq
    %v410 = vshrl.u32 %v409, 7
    %v411 = vsub.s32 0, %v410
    %v412 = vrot.slane %v407, %v411
    %v418 = vunpack.c.l.b16 %v402
    %v419 = vunpack.c.l.b16 %v403
    %v420 = vunpack.c.l.b16 %v404
    %v421 = vunpack.c.l.b16 %v405
    %v422 = vpack.c.b16 %v419, %v418
    %v423 = vpack.c.b16 %v421, %v420
    %426 = vmatprep.subr.bf16.mxu0 0
    %427 = vmatpush1.bf16.msra.mxu0 0
    %428 = vmatprep.subr.bf16.mxu0 0
    %429 = vmatpush1.bf16.msra.mxu0 0
    %430 = vmatprep.subr.bf16.mxu0 0
    %431 = vmatpush1.bf16.msra.mxu0 0
    %432 = vmatprep.subr.bf16.mxu0 0
    %433 = vmatpush1.bf16.msra.mxu0 0
    %434 = vmatprep.subr.bf16.mxu0 0
    %435 = vmatpush1.bf16.msra.mxu0 0
    %436 = vmatprep.subr.bf16.mxu0 0
    %437 = vmatpush1.bf16.msra.mxu0 0
    %438 = vmatprep.subr.bf16.mxu0 0
    %439 = vmatpush1.bf16.msra.mxu0 %v423
    %440 = vmatprep.subr.bf16.mxu0 0
    %441 = vmatpush1.bf16.msra.mxu0 %v422
    %442 = vmatprep.subr.bf16.mxu0 0
    %443 = vmatpush2.bf16.msra.mxu0 0
    %444 = vmatprep.subr.bf16.mxu0 0
    %445 = vmatpush2.bf16.msra.mxu0 0
    %446 = vmatprep.subr.bf16.mxu0 0
    %447 = vmatpush2.bf16.msra.mxu0 0
    %448 = vmatprep.subr.bf16.mxu0 0
    %449 = vmatpush2.bf16.msra.mxu0 0
    %450 = vmatprep.subr.bf16.mxu0 0
    %451 = vmatpush2.bf16.msra.mxu0 0
    %452 = vmatprep.subr.bf16.mxu0 0
    %453 = vmatpush2.bf16.msra.mxu0 0
    %454 = vmatprep.subr.bf16.mxu0 0
    %455 = vmatpush2.bf16.msra.mxu0 0
    %456 = vmatprep.subr.bf16.mxu0 0
    %457 = vmatpush2.bf16.msra.mxu0 0
    %458 = vmatprep.mubr.bf16.mxu0 0
    %459 = vmatmul.mubr.bf16.gmra.mxu0 %v109
    %v460 = vpop.f32.mrf.mxu0
    %v461 = vadd.f32 %v412, %v460
    %v462 = vpop.f32.mrf.mxu0
    %v463 = vpop.f32.mrf.mxu0
    %v464 = vadd.f32 %v412, %v463
    %v465 = vpop.f32.mrf.mxu0
    %466 = vdwg.mxu0
    %s467 = scalar_lea.vmem %s4, 16
    %v468 = vld [vmem:[%s467] sm:$0xf]
    %v469 = vld [vmem:[%s467 + $0x4] sm:$0xf]
    %v470 = vld [vmem:[%s467 + $0x8] sm:$0xf]
    %v471 = vld [vmem:[%s467 + $0xc] sm:$0xf]
    %s472 = scalar_lea.vmem %s5, 1
    %v473 = vld [vmem:[%s472] sm:$0x1]
    %v475 = vlaneseq
    %v476 = vshrl.u32 %v475, 7
    %v477 = vsub.s32 0, %v476
    %v478 = vrot.slane %v473, %v477
    %v484 = vunpack.c.l.b16 %v468
    %v485 = vunpack.c.l.b16 %v469
    %v486 = vunpack.c.l.b16 %v470
    %v487 = vunpack.c.l.b16 %v471
    %v488 = vpack.c.b16 %v485, %v484
    %v489 = vpack.c.b16 %v487, %v486
    %492 = vmatprep.subr.bf16.mxu0 0
    %493 = vmatpush1.bf16.msra.mxu0 0
    %494 = vmatprep.subr.bf16.mxu0 0
    %495 = vmatpush1.bf16.msra.mxu0 0
    %496 = vmatprep.subr.bf16.mxu0 0
    %497 = vmatpush1.bf16.msra.mxu0 0
    %498 = vmatprep.subr.bf16.mxu0 0
    %499 = vmatpush1.bf16.msra.mxu0 0
    %500 = vmatprep.subr.bf16.mxu0 0
    %501 = vmatpush1.bf16.msra.mxu0 0
    %502 = vmatprep.subr.bf16.mxu0 0
    %503 = vmatpush1.bf16.msra.mxu0 0
    %504 = vmatprep.subr.bf16.mxu0 0
    %505 = vmatpush1.bf16.msra.mxu0 %v489
    %506 = vmatprep.subr.bf16.mxu0 0
    %507 = vmatpush1.bf16.msra.mxu0 %v488
    %508 = vmatprep.subr.bf16.mxu0 0
    %509 = vmatpush2.bf16.msra.mxu0 0
    %510 = vmatprep.subr.bf16.mxu0 0
    %511 = vmatpush2.bf16.msra.mxu0 0
    %512 = vmatprep.subr.bf16.mxu0 0
    %513 = vmatpush2.bf16.msra.mxu0 0
    %514 = vmatprep.subr.bf16.mxu0 0
    %515 = vmatpush2.bf16.msra.mxu0 0
    %516 = vmatprep.subr.bf16.mxu0 0
    %517 = vmatpush2.bf16.msra.mxu0 0
    %518 = vmatprep.subr.bf16.mxu0 0
    %519 = vmatpush2.bf16.msra.mxu0 0
    %520 = vmatprep.subr.bf16.mxu0 0
    %521 = vmatpush2.bf16.msra.mxu0 0
    %522 = vmatprep.subr.bf16.mxu0 0
    %523 = vmatpush2.bf16.msra.mxu0 0
    %524 = vmatprep.mubr.bf16.mxu0 0
    %525 = vmatmul.mubr.bf16.gmra.mxu0 %v109
    %v526 = vpop.f32.mrf.mxu0
    %v527 = vadd.f32 %v478, %v526
    %v528 = vpop.f32.mrf.mxu0
    %v529 = vpop.f32.mrf.mxu0
    %v530 = vadd.f32 %v478, %v529
    %v531 = vpop.f32.mrf.mxu0
    %532 = vdwg.mxu0
    %s533 = scalar_lea.vmem %s6, 16
    %v534 = vld [vmem:[%s533] sm:$0xf]
    %v535 = vld [vmem:[%s533 + $0x4] sm:$0xf]
    %v536 = vld [vmem:[%s533 + $0x8] sm:$0xf]
    %v537 = vld [vmem:[%s533 + $0xc] sm:$0xf]
    %s538 = scalar_lea.vmem %s7, 1
    %v539 = vld [vmem:[%s538] sm:$0x1]
    %v541 = vlaneseq
    %v542 = vshrl.u32 %v541, 7
    %v543 = vsub.s32 0, %v542
    %v544 = vrot.slane %v539, %v543
    %v550 = vunpack.c.l.b16 %v534
    %v551 = vunpack.c.l.b16 %v535
    %v552 = vunpack.c.l.b16 %v536
    %v553 = vunpack.c.l.b16 %v537
    %v554 = vpack.c.b16 %v551, %v550
    %v555 = vpack.c.b16 %v553, %v552
    %558 = vmatprep.subr.bf16.mxu0 0
    %559 = vmatpush1.bf16.msra.mxu0 0
    %560 = vmatprep.subr.bf16.mxu0 0
    %561 = vmatpush1.bf16.msra.mxu0 0
    %562 = vmatprep.subr.bf16.mxu0 0
    %563 = vmatpush1.bf16.msra.mxu0 0
    %564 = vmatprep.subr.bf16.mxu0 0
    %565 = vmatpush1.bf16.msra.mxu0 0
    %566 = vmatprep.subr.bf16.mxu0 0
    %567 = vmatpush1.bf16.msra.mxu0 0
    %568 = vmatprep.subr.bf16.mxu0 0
    %569 = vmatpush1.bf16.msra.mxu0 0
    %570 = vmatprep.subr.bf16.mxu0 0
    %571 = vmatpush1.bf16.msra.mxu0 %v555
    %572 = vmatprep.subr.bf16.mxu0 0
    %573 = vmatpush1.bf16.msra.mxu0 %v554
    %574 = vmatprep.subr.bf16.mxu0 0
    %575 = vmatpush2.bf16.msra.mxu0 0
    %576 = vmatprep.subr.bf16.mxu0 0
    %577 = vmatpush2.bf16.msra.mxu0 0
    %578 = vmatprep.subr.bf16.mxu0 0
    %579 = vmatpush2.bf16.msra.mxu0 0
    %580 = vmatprep.subr.bf16.mxu0 0
    %581 = vmatpush2.bf16.msra.mxu0 0
    %582 = vmatprep.subr.bf16.mxu0 0
    %583 = vmatpush2.bf16.msra.mxu0 0
    %584 = vmatprep.subr.bf16.mxu0 0
    %585 = vmatpush2.bf16.msra.mxu0 0
    %586 = vmatprep.subr.bf16.mxu0 0
    %587 = vmatpush2.bf16.msra.mxu0 0
    %588 = vmatprep.subr.bf16.mxu0 0
    %589 = vmatpush2.bf16.msra.mxu0 0
    %590 = vmatprep.mubr.bf16.mxu0 0
    %591 = vmatmul.mubr.bf16.gmra.mxu0 %v109
    %v592 = vpop.f32.mrf.mxu0
    %v593 = vadd.f32 %v544, %v592
    %v594 = vpop.f32.mrf.mxu0
    %v595 = vpop.f32.mrf.mxu0
    %v596 = vadd.f32 %v544, %v595
    %v597 = vpop.f32.mrf.mxu0
    %598 = vdwg.mxu0
    %v599 = vpack.c.bf16 %v464, %v461
    %v600 = vpack.c.bf16 %v530, %v527
    %v602 = vsel %vm282, %v599, 0
    %v605 = vsel %vm282, %v600, 0
    %607 = vmatprep.subr.bf16.mxu0 0
    %608 = vmatpush1.bf16.xpose.msra.mxu0 0
    %609 = vmatprep.subr.bf16.mxu0 0
    %610 = vmatpush1.bf16.xpose.msra.mxu0 0
    %611 = vmatprep.subr.bf16.mxu0 0
    %612 = vmatpush1.bf16.xpose.msra.mxu0 0
    %613 = vmatprep.subr.bf16.mxu0 0
    %614 = vmatpush1.bf16.xpose.msra.mxu0 0
    %615 = vmatprep.subr.bf16.mxu0 0
    %616 = vmatpush1.bf16.xpose.msra.mxu0 0
    %617 = vmatprep.subr.bf16.mxu0 0
    %618 = vmatpush1.bf16.xpose.msra.mxu0 0
    %619 = vmatprep.subr.bf16.mxu0 0
    %620 = vmatpush1.bf16.xpose.msra.mxu0 0
    %621 = vmatprep.subr.bf16.mxu0 0
    %622 = vmatpush1.bf16.xpose.msra.mxu0 %v605
    %623 = vmatprep.subr.bf16.mxu0 0
    %624 = vmatpush2.bf16.xpose.msra.mxu0 0
    %625 = vmatprep.subr.bf16.mxu0 0
    %626 = vmatpush2.bf16.xpose.msra.mxu0 0
    %627 = vmatprep.subr.bf16.mxu0 0
    %628 = vmatpush2.bf16.xpose.msra.mxu0 0
    %629 = vmatprep.subr.bf16.mxu0 0
    %630 = vmatpush2.bf16.xpose.msra.mxu0 0
    %631 = vmatprep.subr.bf16.mxu0 0
    %632 = vmatpush2.bf16.xpose.msra.mxu0 0
    %633 = vmatprep.subr.bf16.mxu0 0
    %634 = vmatpush2.bf16.xpose.msra.mxu0 0
    %635 = vmatprep.subr.bf16.mxu0 0
    %636 = vmatpush2.bf16.xpose.msra.mxu0 0
    %637 = vmatprep.subr.bf16.mxu0 0
    %638 = vmatpush2.bf16.xpose.msra.mxu0 0
    %639 = vmatprep.mubr.bf16.mxu0 0
    %640 = vmatmul.mubr.bf16.gmra.mxu0 %v602
    %v641 = vpop.f32.mrf.mxu0
    %v642 = vadd.f32 %v81, %v641
    %v643 = vpop.f32.mrf.mxu0
    %v644 = vpop.f32.mrf.mxu0
    %v645 = vadd.f32 %v82, %v644
    %v646 = vpop.f32.mrf.mxu0
    %647 = vdwg.mxu0
    %v648 = vsel %vm330, %v642, -inf
    %649 = vmax.xlane.f32.xlu0 %v648
    %v650 = vpop.xlane.xlu0 %649
    %v651 = vsel %vm330, %v645, -inf
    %652 = vmax.xlane.f32.xlu0 %v651
    %v653 = vpop.xlane.xlu0 %652
    %v654 = vsub.f32 %v642, %v650
    %v655 = vsub.f32 %v645, %v653
    %v656 = vmul.f32 %v654, 1.442695
    %v657 = vpow.pop %v656
    %v658 = vmul.f32 %v655, 1.442695
    %v659 = vpow.pop %v658
    %v660 = vsel %vm330, %v657, 0.0
    %661 = vadd.xlane.f32.xlu0 %v660
    %v662 = vpop.xlane.xlu0 %661
    %v663 = vsel %vm330, %v659, 0.0
    %664 = vadd.xlane.f32.xlu0 %v663
    %v665 = vpop.xlane.xlu0 %664
    %v666 = vrcp.pop %v662
    %v667 = vrcp.pop %v665
    %v668 = vmul.f32 %v657, %v666
    %v669 = vmul.f32 %v659, %v667
    %v670 = vpack.c.bf16 %v669, %v668
    %v671 = vpack.c.bf16 %v596, %v593
    %v673 = vsel %vm330, %v670, 0
    %675 = vmatprep.subr.bf16.mxu0 0
    %676 = vmatpush1.bf16.msra.mxu0 0
    %677 = vmatprep.subr.bf16.mxu0 0
    %678 = vmatpush1.bf16.msra.mxu0 0
    %679 = vmatprep.subr.bf16.mxu0 0
    %680 = vmatpush1.bf16.msra.mxu0 0
    %681 = vmatprep.subr.bf16.mxu0 0
    %682 = vmatpush1.bf16.msra.mxu0 0
    %683 = vmatprep.subr.bf16.mxu0 0
    %684 = vmatpush1.bf16.msra.mxu0 0
    %685 = vmatprep.subr.bf16.mxu0 0
    %686 = vmatpush1.bf16.msra.mxu0 0
    %687 = vmatprep.subr.bf16.mxu0 0
    %688 = vmatpush1.bf16.msra.mxu0 0
    %689 = vmatprep.subr.bf16.mxu0 0
    %690 = vmatpush1.bf16.msra.mxu0 %v671
    %691 = vmatprep.subr.bf16.mxu0 0
    %692 = vmatpush2.bf16.msra.mxu0 0
    %693 = vmatprep.subr.bf16.mxu0 0
    %694 = vmatpush2.bf16.msra.mxu0 0
    %695 = vmatprep.subr.bf16.mxu0 0
    %696 = vmatpush2.bf16.msra.mxu0 0
    %697 = vmatprep.subr.bf16.mxu0 0
    %698 = vmatpush2.bf16.msra.mxu0 0
    %699 = vmatprep.subr.bf16.mxu0 0
    %700 = vmatpush2.bf16.msra.mxu0 0
    %701 = vmatprep.subr.bf16.mxu0 0
    %702 = vmatpush2.bf16.msra.mxu0 0
    %703 = vmatprep.subr.bf16.mxu0 0
    %704 = vmatpush2.bf16.msra.mxu0 0
    %705 = vmatprep.subr.bf16.mxu0 0
    %706 = vmatpush2.bf16.msra.mxu0 0
    %707 = vmatprep.mubr.bf16.mxu0 0
    %708 = vmatmul.mubr.bf16.gmra.mxu0 %v673
    %v709 = vpop.f32.mrf.mxu0
    %v710 = vadd.f32 0.0, %v709
    %v711 = vpop.f32.mrf.mxu0
    %v712 = vpop.f32.mrf.mxu0
    %v713 = vadd.f32 0.0, %v712
    %v714 = vpop.f32.mrf.mxu0
    %715 = vdwg.mxu0
    %v716 = vpack.c.bf16 %v713, %v710
    %s717 = scalar_lea.vmem %s8, 4
    %v718 = vld [vmem:[%s717] sm:$0xf]
    %v720 = vsel %vm282, %v716, 0
    %vm722 = vcmask 1043456
    %v724 = vsel %vm722, %v718, 0
    %726 = vmatprep.subr.bf16.mxu0 0
    %727 = vmatpush1.bf16.msra.mxu0 0
    %728 = vmatprep.subr.bf16.mxu0 0
    %729 = vmatpush1.bf16.msra.mxu0 0
    %730 = vmatprep.subr.bf16.mxu0 0
    %731 = vmatpush1.bf16.msra.mxu0 0
    %732 = vmatprep.subr.bf16.mxu0 0
    %733 = vmatpush1.bf16.msra.mxu0 0
    %734 = vmatprep.subr.bf16.mxu0 0
    %735 = vmatpush1.bf16.msra.mxu0 0
    %736 = vmatprep.subr.bf16.mxu0 0
    %737 = vmatpush1.bf16.msra.mxu0 0
    %738 = vmatprep.subr.bf16.mxu0 0
    %739 = vmatpush1.bf16.msra.mxu0 0
    %740 = vmatprep.subr.bf16.mxu0 0
    %741 = vmatpush1.bf16.msra.mxu0 %v724
    %742 = vmatprep.subr.bf16.mxu0 0
    %743 = vmatpush2.bf16.msra.mxu0 0
    %744 = vmatprep.subr.bf16.mxu0 0
    %745 = vmatpush2.bf16.msra.mxu0 0
    %746 = vmatprep.subr.bf16.mxu0 0
    %747 = vmatpush2.bf16.msra.mxu0 0
    %748 = vmatprep.subr.bf16.mxu0 0
    %749 = vmatpush2.bf16.msra.mxu0 0
    %750 = vmatprep.subr.bf16.mxu0 0
    %751 = vmatpush2.bf16.msra.mxu0 0
    %752 = vmatprep.subr.bf16.mxu0 0
    %753 = vmatpush2.bf16.msra.mxu0 0
    %754 = vmatprep.subr.bf16.mxu0 0
    %755 = vmatpush2.bf16.msra.mxu0 0
    %756 = vmatprep.subr.bf16.mxu0 0
    %757 = vmatpush2.bf16.msra.mxu0 0
    %758 = vmatprep.mubr.bf16.mxu0 0
    %759 = vmatmul.mubr.bf16.gmra.mxu0 %v720
    %v760 = vpop.f32.mrf.mxu0
    %v761 = vadd.f32 0.0, %v760
    %v762 = vpop.f32.mrf.mxu0
    %v763 = vpop.f32.mrf.mxu0
    %v764 = vadd.f32 0.0, %v763
    %v765 = vpop.f32.mrf.mxu0
    %766 = vdwg.mxu0
    %v768 = vsel %vm282, %v399, 0
    %v771 = vsel %vm722, %v400, 0
    %773 = vmatprep.subr.bf16.mxu0 0
    %774 = vmatpush1.bf16.msra.mxu0 0
    %775 = vmatprep.subr.bf16.mxu0 0
    %776 = vmatpush1.bf16.msra.mxu0 0
    %777 = vmatprep.subr.bf16.mxu0 0
    %778 = vmatpush1.bf16.msra.mxu0 0
    %779 = vmatprep.subr.bf16.mxu0 0
    %780 = vmatpush1.bf16.msra.mxu0 0
    %781 = vmatprep.subr.bf16.mxu0 0
    %782 = vmatpush1.bf16.msra.mxu0 0
    %783 = vmatprep.subr.bf16.mxu0 0
    %784 = vmatpush1.bf16.msra.mxu0 0
    %785 = vmatprep.subr.bf16.mxu0 0
    %786 = vmatpush1.bf16.msra.mxu0 0
    %787 = vmatprep.subr.bf16.mxu0 0
    %788 = vmatpush1.bf16.msra.mxu0 %v771
    %789 = vmatprep.subr.bf16.mxu0 0
    %790 = vmatpush2.bf16.msra.mxu0 0
    %791 = vmatprep.subr.bf16.mxu0 0
    %792 = vmatpush2.bf16.msra.mxu0 0
    %793 = vmatprep.subr.bf16.mxu0 0
    %794 = vmatpush2.bf16.msra.mxu0 0
    %795 = vmatprep.subr.bf16.mxu0 0
    %796 = vmatpush2.bf16.msra.mxu0 0
    %797 = vmatprep.subr.bf16.mxu0 0
    %798 = vmatpush2.bf16.msra.mxu0 0
    %799 = vmatprep.subr.bf16.mxu0 0
    %800 = vmatpush2.bf16.msra.mxu0 0
    %801 = vmatprep.subr.bf16.mxu0 0
    %802 = vmatpush2.bf16.msra.mxu0 0
    %803 = vmatprep.subr.bf16.mxu0 0
    %804 = vmatpush2.bf16.msra.mxu0 0
    %805 = vmatprep.mubr.bf16.mxu0 0
    %806 = vmatmul.mubr.bf16.gmra.mxu0 %v768
    %v807 = vpop.f32.mrf.mxu0
    %v808 = vadd.f32 %v761, %v807
    %v809 = vpop.f32.mrf.mxu0
    %v810 = vpop.f32.mrf.mxu0
    %v811 = vadd.f32 %v764, %v810
    %v812 = vpop.f32.mrf.mxu0
    %813 = vdwg.mxu0
    %s814 = scalar_lea.vmem %s2, 32
    %v815 = vld [vmem:[%s814] sm:$0xf]
    %v816 = vld [vmem:[%s814 + $0x4] sm:$0xf]
    %v817 = vld [vmem:[%s814 + $0x8] sm:$0xf]
    %v818 = vld [vmem:[%s814 + $0xc] sm:$0xf]
    %s819 = scalar_lea.vmem %s3, 2
    %v820 = vld [vmem:[%s819] sm:$0x1]
    %v822 = vlaneseq
    %v823 = vshrl.u32 %v822, 7
    %v824 = vsub.s32 0, %v823
    %v825 = vrot.slane %v820, %v824
    %v831 = vunpack.c.l.b16 %v815
    %v832 = vunpack.c.l.b16 %v816
    %v833 = vunpack.c.l.b16 %v817
    %v834 = vunpack.c.l.b16 %v818
    %v835 = vpack.c.b16 %v832, %v831
    %v836 = vpack.c.b16 %v834, %v833
    %839 = vmatprep.subr.bf16.mxu0 0
    %840 = vmatpush1.bf16.msra.mxu0 0
    %841 = vmatprep.subr.bf16.mxu0 0
    %842 = vmatpush1.bf16.msra.mxu0 0
    %843 = vmatprep.subr.bf16.mxu0 0
    %844 = vmatpush1.bf16.msra.mxu0 0
    %845 = vmatprep.subr.bf16.mxu0 0
    %846 = vmatpush1.bf16.msra.mxu0 0
    %847 = vmatprep.subr.bf16.mxu0 0
    %848 = vmatpush1.bf16.msra.mxu0 0
    %849 = vmatprep.subr.bf16.mxu0 0
    %850 = vmatpush1.bf16.msra.mxu0 0
    %851 = vmatprep.subr.bf16.mxu0 0
    %852 = vmatpush1.bf16.msra.mxu0 %v836
    %853 = vmatprep.subr.bf16.mxu0 0
    %854 = vmatpush1.bf16.msra.mxu0 %v835
    %855 = vmatprep.subr.bf16.mxu0 0
    %856 = vmatpush2.bf16.msra.mxu0 0
    %857 = vmatprep.subr.bf16.mxu0 0
    %858 = vmatpush2.bf16.msra.mxu0 0
    %859 = vmatprep.subr.bf16.mxu0 0
    %860 = vmatpush2.bf16.msra.mxu0 0
    %861 = vmatprep.subr.bf16.mxu0 0
    %862 = vmatpush2.bf16.msra.mxu0 0
    %863 = vmatprep.subr.bf16.mxu0 0
    %864 = vmatpush2.bf16.msra.mxu0 0
    %865 = vmatprep.subr.bf16.mxu0 0
    %866 = vmatpush2.bf16.msra.mxu0 0
    %867 = vmatprep.subr.bf16.mxu0 0
    %868 = vmatpush2.bf16.msra.mxu0 0
    %869 = vmatprep.subr.bf16.mxu0 0
    %870 = vmatpush2.bf16.msra.mxu0 0
    %871 = vmatprep.mubr.bf16.mxu0 0
    %872 = vmatmul.mubr.bf16.gmra.mxu0 %v109
    %v873 = vpop.f32.mrf.mxu0
    %v874 = vadd.f32 %v825, %v873
    %v875 = vpop.f32.mrf.mxu0
    %v876 = vpop.f32.mrf.mxu0
    %v877 = vadd.f32 %v825, %v876
    %v878 = vpop.f32.mrf.mxu0
    %879 = vdwg.mxu0
    %s880 = scalar_lea.vmem %s4, 32
    %v881 = vld [vmem:[%s880] sm:$0xf]
    %v882 = vld [vmem:[%s880 + $0x4] sm:$0xf]
    %v883 = vld [vmem:[%s880 + $0x8] sm:$0xf]
    %v884 = vld [vmem:[%s880 + $0xc] sm:$0xf]
    %s885 = scalar_lea.vmem %s5, 2
    %v886 = vld [vmem:[%s885] sm:$0x1]
    %v888 = vlaneseq
    %v889 = vshrl.u32 %v888, 7
    %v890 = vsub.s32 0, %v889
    %v891 = vrot.slane %v886, %v890
    %v897 = vunpack.c.l.b16 %v881
    %v898 = vunpack.c.l.b16 %v882
    %v899 = vunpack.c.l.b16 %v883
    %v900 = vunpack.c.l.b16 %v884
    %v901 = vpack.c.b16 %v898, %v897
    %v902 = vpack.c.b16 %v900, %v899
    %905 = vmatprep.subr.bf16.mxu0 0
    %906 = vmatpush1.bf16.msra.mxu0 0
    %907 = vmatprep.subr.bf16.mxu0 0
    %908 = vmatpush1.bf16.msra.mxu0 0
    %909 = vmatprep.subr.bf16.mxu0 0
    %910 = vmatpush1.bf16.msra.mxu0 0
    %911 = vmatprep.subr.bf16.mxu0 0
    %912 = vmatpush1.bf16.msra.mxu0 0
    %913 = vmatprep.subr.bf16.mxu0 0
    %914 = vmatpush1.bf16.msra.mxu0 0
    %915 = vmatprep.subr.bf16.mxu0 0
    %916 = vmatpush1.bf16.msra.mxu0 0
    %917 = vmatprep.subr.bf16.mxu0 0
    %918 = vmatpush1.bf16.msra.mxu0 %v902
    %919 = vmatprep.subr.bf16.mxu0 0
    %920 = vmatpush1.bf16.msra.mxu0 %v901
    %921 = vmatprep.subr.bf16.mxu0 0
    %922 = vmatpush2.bf16.msra.mxu0 0
    %923 = vmatprep.subr.bf16.mxu0 0
    %924 = vmatpush2.bf16.msra.mxu0 0
    %925 = vmatprep.subr.bf16.mxu0 0
    %926 = vmatpush2.bf16.msra.mxu0 0
    %927 = vmatprep.subr.bf16.mxu0 0
    %928 = vmatpush2.bf16.msra.mxu0 0
    %929 = vmatprep.subr.bf16.mxu0 0
    %930 = vmatpush2.bf16.msra.mxu0 0
    %931 = vmatprep.subr.bf16.mxu0 0
    %932 = vmatpush2.bf16.msra.mxu0 0
    %933 = vmatprep.subr.bf16.mxu0 0
    %934 = vmatpush2.bf16.msra.mxu0 0
    %935 = vmatprep.subr.bf16.mxu0 0
    %936 = vmatpush2.bf16.msra.mxu0 0
    %937 = vmatprep.mubr.bf16.mxu0 0
    %938 = vmatmul.mubr.bf16.gmra.mxu0 %v109
    %v939 = vpop.f32.mrf.mxu0
    %v940 = vadd.f32 %v891, %v939
    %v941 = vpop.f32.mrf.mxu0
    %v942 = vpop.f32.mrf.mxu0
    %v943 = vadd.f32 %v891, %v942
    %v944 = vpop.f32.mrf.mxu0
    %945 = vdwg.mxu0
    %s946 = scalar_lea.vmem %s6, 32
    %v947 = vld [vmem:[%s946] sm:$0xf]
    %v948 = vld [vmem:[%s946 + $0x4] sm:$0xf]
    %v949 = vld [vmem:[%s946 + $0x8] sm:$0xf]
    %v950 = vld [vmem:[%s946 + $0xc] sm:$0xf]
    %s951 = scalar_lea.vmem %s7, 2
    %v952 = vld [vmem:[%s951] sm:$0x1]
    %v954 = vlaneseq
    %v955 = vshrl.u32 %v954, 7
    %v956 = vsub.s32 0, %v955
    %v957 = vrot.slane %v952, %v956
    %v963 = vunpack.c.l.b16 %v947
    %v964 = vunpack.c.l.b16 %v948
    %v965 = vunpack.c.l.b16 %v949
    %v966 = vunpack.c.l.b16 %v950
    %v967 = vpack.c.b16 %v964, %v963
    %v968 = vpack.c.b16 %v966, %v965
    %971 = vmatprep.subr.bf16.mxu0 0
    %972 = vmatpush1.bf16.msra.mxu0 0
    %973 = vmatprep.subr.bf16.mxu0 0
    %974 = vmatpush1.bf16.msra.mxu0 0
    %975 = vmatprep.subr.bf16.mxu0 0
    %976 = vmatpush1.bf16.msra.mxu0 0
    %977 = vmatprep.subr.bf16.mxu0 0
    %978 = vmatpush1.bf16.msra.mxu0 0
    %979 = vmatprep.subr.bf16.mxu0 0
    %980 = vmatpush1.bf16.msra.mxu0 0
    %981 = vmatprep.subr.bf16.mxu0 0
    %982 = vmatpush1.bf16.msra.mxu0 0
    %983 = vmatprep.subr.bf16.mxu0 0
    %984 = vmatpush1.bf16.msra.mxu0 %v968
    %985 = vmatprep.subr.bf16.mxu0 0
    %986 = vmatpush1.bf16.msra.mxu0 %v967
    %987 = vmatprep.subr.bf16.mxu0 0
    %988 = vmatpush2.bf16.msra.mxu0 0
    %989 = vmatprep.subr.bf16.mxu0 0
    %990 = vmatpush2.bf16.msra.mxu0 0
    %991 = vmatprep.subr.bf16.mxu0 0
    %992 = vmatpush2.bf16.msra.mxu0 0
    %993 = vmatprep.subr.bf16.mxu0 0
    %994 = vmatpush2.bf16.msra.mxu0 0
    %995 = vmatprep.subr.bf16.mxu0 0
    %996 = vmatpush2.bf16.msra.mxu0 0
    %997 = vmatprep.subr.bf16.mxu0 0
    %998 = vmatpush2.bf16.msra.mxu0 0
    %999 = vmatprep.subr.bf16.mxu0 0
    %1000 = vmatpush2.bf16.msra.mxu0 0
    %1001 = vmatprep.subr.bf16.mxu0 0
    %1002 = vmatpush2.bf16.msra.mxu0 0
    %1003 = vmatprep.mubr.bf16.mxu0 0
    %1004 = vmatmul.mubr.bf16.gmra.mxu0 %v109
    %v1005 = vpop.f32.mrf.mxu0
    %v1006 = vadd.f32 %v957, %v1005
    %v1007 = vpop.f32.mrf.mxu0
    %v1008 = vpop.f32.mrf.mxu0
    %v1009 = vadd.f32 %v957, %v1008
    %v1010 = vpop.f32.mrf.mxu0
    %1011 = vdwg.mxu0
    %v1012 = vpack.c.bf16 %v877, %v874
    %v1013 = vpack.c.bf16 %v943, %v940
    %v1015 = vsel %vm282, %v1012, 0
    %v1018 = vsel %vm282, %v1013, 0
    %1020 = vmatprep.subr.bf16.mxu0 0
    %1021 = vmatpush1.bf16.xpose.msra.mxu0 0
    %1022 = vmatprep.subr.bf16.mxu0 0
    %1023 = vmatpush1.bf16.xpose.msra.mxu0 0
    %1024 = vmatprep.subr.bf16.mxu0 0
    %1025 = vmatpush1.bf16.xpose.msra.mxu0 0
    %1026 = vmatprep.subr.bf16.mxu0 0
    %1027 = vmatpush1.bf16.xpose.msra.mxu0 0
    %1028 = vmatprep.subr.bf16.mxu0 0
    %1029 = vmatpush1.bf16.xpose.msra.mxu0 0
    %1030 = vmatprep.subr.bf16.mxu0 0
    %1031 = vmatpush1.bf16.xpose.msra.mxu0 0
    %1032 = vmatprep.subr.bf16.mxu0 0
    %1033 = vmatpush1.bf16.xpose.msra.mxu0 0
    %1034 = vmatprep.subr.bf16.mxu0 0
    %1035 = vmatpush1.bf16.xpose.msra.mxu0 %v1018
    %1036 = vmatprep.subr.bf16.mxu0 0
    %1037 = vmatpush2.bf16.xpose.msra.mxu0 0
    %1038 = vmatprep.subr.bf16.mxu0 0
    %1039 = vmatpush2.bf16.xpose.msra.mxu0 0
    %1040 = vmatprep.subr.bf16.mxu0 0
    %1041 = vmatpush2.bf16.xpose.msra.mxu0 0
    %1042 = vmatprep.subr.bf16.mxu0 0
    %1043 = vmatpush2.bf16.xpose.msra.mxu0 0
    %1044 = vmatprep.subr.bf16.mxu0 0
    %1045 = vmatpush2.bf16.xpose.msra.mxu0 0
    %1046 = vmatprep.subr.bf16.mxu0 0
    %1047 = vmatpush2.bf16.xpose.msra.mxu0 0
    %1048 = vmatprep.subr.bf16.mxu0 0
    %1049 = vmatpush2.bf16.xpose.msra.mxu0 0
    %1050 = vmatprep.subr.bf16.mxu0 0
    %1051 = vmatpush2.bf16.xpose.msra.mxu0 0
    %1052 = vmatprep.mubr.bf16.mxu0 0
    %1053 = vmatmul.mubr.bf16.gmra.mxu0 %v1015
    %v1054 = vpop.f32.mrf.mxu0
    %v1055 = vadd.f32 %v81, %v1054
    %v1056 = vpop.f32.mrf.mxu0
    %v1057 = vpop.f32.mrf.mxu0
    %v1058 = vadd.f32 %v82, %v1057
    %v1059 = vpop.f32.mrf.mxu0
    %1060 = vdwg.mxu0
    %v1061 = vsel %vm330, %v1055, -inf
    %1062 = vmax.xlane.f32.xlu0 %v1061
    %v1063 = vpop.xlane.xlu0 %1062
    %v1064 = vsel %vm330, %v1058, -inf
    %1065 = vmax.xlane.f32.xlu0 %v1064
    %v1066 = vpop.xlane.xlu0 %1065
    %v1067 = vsub.f32 %v1055, %v1063
    %v1068 = vsub.f32 %v1058, %v1066
    %v1069 = vmul.f32 %v1067, 1.442695
    %v1070 = vpow.pop %v1069
    %v1071 = vmul.f32 %v1068, 1.442695
    %v1072 = vpow.pop %v1071
    %v1073 = vsel %vm330, %v1070, 0.0
    %1074 = vadd.xlane.f32.xlu0 %v1073
    %v1075 = vpop.xlane.xlu0 %1074
    %v1076 = vsel %vm330, %v1072, 0.0
    %1077 = vadd.xlane.f32.xlu0 %v1076
    %v1078 = vpop.xlane.xlu0 %1077
    %v1079 = vrcp.pop %v1075
    %v1080 = vrcp.pop %v1078
    %v1081 = vmul.f32 %v1070, %v1079
    %v1082 = vmul.f32 %v1072, %v1080
    %v1083 = vpack.c.bf16 %v1082, %v1081
    %v1084 = vpack.c.bf16 %v1009, %v1006
    %v1086 = vsel %vm330, %v1083, 0
    %1088 = vmatprep.subr.bf16.mxu0 0
    %1089 = vmatpush1.bf16.msra.mxu0 0
    %1090 = vmatprep.subr.bf16.mxu0 0
    %1091 = vmatpush1.bf16.msra.mxu0 0
    %1092 = vmatprep.subr.bf16.mxu0 0
    %1093 = vmatpush1.bf16.msra.mxu0 0
    %1094 = vmatprep.subr.bf16.mxu0 0
    %1095 = vmatpush1.bf16.msra.mxu0 0
    %1096 = vmatprep.subr.bf16.mxu0 0
    %1097 = vmatpush1.bf16.msra.mxu0 0
    %1098 = vmatprep.subr.bf16.mxu0 0
    %1099 = vmatpush1.bf16.msra.mxu0 0
    %1100 = vmatprep.subr.bf16.mxu0 0
    %1101 = vmatpush1.bf16.msra.mxu0 0
    %1102 = vmatprep.subr.bf16.mxu0 0
    %1103 = vmatpush1.bf16.msra.mxu0 %v1084
    %1104 = vmatprep.subr.bf16.mxu0 0
    %1105 = vmatpush2.bf16.msra.mxu0 0
    %1106 = vmatprep.subr.bf16.mxu0 0
    %1107 = vmatpush2.bf16.msra.mxu0 0
    %1108 = vmatprep.subr.bf16.mxu0 0
    %1109 = vmatpush2.bf16.msra.mxu0 0
    %1110 = vmatprep.subr.bf16.mxu0 0
    %1111 = vmatpush2.bf16.msra.mxu0 0
    %1112 = vmatprep.subr.bf16.mxu0 0
    %1113 = vmatpush2.bf16.msra.mxu0 0
    %1114 = vmatprep.subr.bf16.mxu0 0
    %1115 = vmatpush2.bf16.msra.mxu0 0
    %1116 = vmatprep.subr.bf16.mxu0 0
    %1117 = vmatpush2.bf16.msra.mxu0 0
    %1118 = vmatprep.subr.bf16.mxu0 0
    %1119 = vmatpush2.bf16.msra.mxu0 0
    %1120 = vmatprep.mubr.bf16.mxu0 0
    %1121 = vmatmul.mubr.bf16.gmra.mxu0 %v1086
    %v1122 = vpop.f32.mrf.mxu0
    %v1123 = vadd.f32 0.0, %v1122
    %v1124 = vpop.f32.mrf.mxu0
    %v1125 = vpop.f32.mrf.mxu0
    %v1126 = vadd.f32 0.0, %v1125
    %v1127 = vpop.f32.mrf.mxu0
    %1128 = vdwg.mxu0
    %v1129 = vpack.c.bf16 %v1126, %v1123
    %s1130 = scalar_lea.vmem %s8, 8
    %v1131 = vld [vmem:[%s1130] sm:$0xf]
    %v1133 = vsel %vm282, %v1129, 0
    %v1136 = vsel %vm722, %v1131, 0
    %1138 = vmatprep.subr.bf16.mxu0 0
    %1139 = vmatpush1.bf16.msra.mxu0 0
    %1140 = vmatprep.subr.bf16.mxu0 0
    %1141 = vmatpush1.bf16.msra.mxu0 0
    %1142 = vmatprep.subr.bf16.mxu0 0
    %1143 = vmatpush1.bf16.msra.mxu0 0
    %1144 = vmatprep.subr.bf16.mxu0 0
    %1145 = vmatpush1.bf16.msra.mxu0 0
    %1146 = vmatprep.subr.bf16.mxu0 0
    %1147 = vmatpush1.bf16.msra.mxu0 0
    %1148 = vmatprep.subr.bf16.mxu0 0
    %1149 = vmatpush1.bf16.msra.mxu0 0
    %1150 = vmatprep.subr.bf16.mxu0 0
    %1151 = vmatpush1.bf16.msra.mxu0 0
    %1152 = vmatprep.subr.bf16.mxu0 0
    %1153 = vmatpush1.bf16.msra.mxu0 %v1136
    %1154 = vmatprep.subr.bf16.mxu0 0
    %1155 = vmatpush2.bf16.msra.mxu0 0
    %1156 = vmatprep.subr.bf16.mxu0 0
    %1157 = vmatpush2.bf16.msra.mxu0 0
    %1158 = vmatprep.subr.bf16.mxu0 0
    %1159 = vmatpush2.bf16.msra.mxu0 0
    %1160 = vmatprep.subr.bf16.mxu0 0
    %1161 = vmatpush2.bf16.msra.mxu0 0
    %1162 = vmatprep.subr.bf16.mxu0 0
    %1163 = vmatpush2.bf16.msra.mxu0 0
    %1164 = vmatprep.subr.bf16.mxu0 0
    %1165 = vmatpush2.bf16.msra.mxu0 0
    %1166 = vmatprep.subr.bf16.mxu0 0
    %1167 = vmatpush2.bf16.msra.mxu0 0
    %1168 = vmatprep.subr.bf16.mxu0 0
    %1169 = vmatpush2.bf16.msra.mxu0 0
    %1170 = vmatprep.mubr.bf16.mxu0 0
    %1171 = vmatmul.mubr.bf16.gmra.mxu0 %v1133
    %v1172 = vpop.f32.mrf.mxu0
    %v1173 = vadd.f32 0.0, %v1172
    %v1174 = vpop.f32.mrf.mxu0
    %v1175 = vpop.f32.mrf.mxu0
    %v1176 = vadd.f32 0.0, %v1175
    %v1177 = vpop.f32.mrf.mxu0
    %1178 = vdwg.mxu0
    %v1179 = vadd.f32 %v808, %v1173
    %v1180 = vadd.f32 %v811, %v1176
    %s1181 = scalar_lea.vmem %s2, 48
    %v1182 = vld [vmem:[%s1181] sm:$0xf]
    %v1183 = vld [vmem:[%s1181 + $0x4] sm:$0xf]
    %v1184 = vld [vmem:[%s1181 + $0x8] sm:$0xf]
    %v1185 = vld [vmem:[%s1181 + $0xc] sm:$0xf]
    %s1186 = scalar_lea.vmem %s3, 3
    %v1187 = vld [vmem:[%s1186] sm:$0x1]
    %v1189 = vlaneseq
    %v1190 = vshrl.u32 %v1189, 7
    %v1191 = vsub.s32 0, %v1190
    %v1192 = vrot.slane %v1187, %v1191
    %v1198 = vunpack.c.l.b16 %v1182
    %v1199 = vunpack.c.l.b16 %v1183
    %v1200 = vunpack.c.l.b16 %v1184
    %v1201 = vunpack.c.l.b16 %v1185
    %v1202 = vpack.c.b16 %v1199, %v1198
    %v1203 = vpack.c.b16 %v1201, %v1200
    %1206 = vmatprep.subr.bf16.mxu0 0
    %1207 = vmatpush1.bf16.msra.mxu0 0
    %1208 = vmatprep.subr.bf16.mxu0 0
    %1209 = vmatpush1.bf16.msra.mxu0 0
    %1210 = vmatprep.subr.bf16.mxu0 0
    %1211 = vmatpush1.bf16.msra.mxu0 0
    %1212 = vmatprep.subr.bf16.mxu0 0
    %1213 = vmatpush1.bf16.msra.mxu0 0
    %1214 = vmatprep.subr.bf16.mxu0 0
    %1215 = vmatpush1.bf16.msra.mxu0 0
    %1216 = vmatprep.subr.bf16.mxu0 0
    %1217 = vmatpush1.bf16.msra.mxu0 0
    %1218 = vmatprep.subr.bf16.mxu0 0
    %1219 = vmatpush1.bf16.msra.mxu0 %v1203
    %1220 = vmatprep.subr.bf16.mxu0 0
    %1221 = vmatpush1.bf16.msra.mxu0 %v1202
    %1222 = vmatprep.subr.bf16.mxu0 0
    %1223 = vmatpush2.bf16.msra.mxu0 0
    %1224 = vmatprep.subr.bf16.mxu0 0
    %1225 = vmatpush2.bf16.msra.mxu0 0
    %1226 = vmatprep.subr.bf16.mxu0 0
    %1227 = vmatpush2.bf16.msra.mxu0 0
    %1228 = vmatprep.subr.bf16.mxu0 0
    %1229 = vmatpush2.bf16.msra.mxu0 0
    %1230 = vmatprep.subr.bf16.mxu0 0
    %1231 = vmatpush2.bf16.msra.mxu0 0
    %1232 = vmatprep.subr.bf16.mxu0 0
    %1233 = vmatpush2.bf16.msra.mxu0 0
    %1234 = vmatprep.subr.bf16.mxu0 0
    %1235 = vmatpush2.bf16.msra.mxu0 0
    %1236 = vmatprep.subr.bf16.mxu0 0
    %1237 = vmatpush2.bf16.msra.mxu0 0
    %1238 = vmatprep.mubr.bf16.mxu0 0
    %1239 = vmatmul.mubr.bf16.gmra.mxu0 %v109
    %v1240 = vpop.f32.mrf.mxu0
    %v1241 = vadd.f32 %v1192, %v1240
    %v1242 = vpop.f32.mrf.mxu0
    %v1243 = vpop.f32.mrf.mxu0
    %v1244 = vadd.f32 %v1192, %v1243
    %v1245 = vpop.f32.mrf.mxu0
    %1246 = vdwg.mxu0
    %s1247 = scalar_lea.vmem %s4, 48
    %v1248 = vld [vmem:[%s1247] sm:$0xf]
    %v1249 = vld [vmem:[%s1247 + $0x4] sm:$0xf]
    %v1250 = vld [vmem:[%s1247 + $0x8] sm:$0xf]
    %v1251 = vld [vmem:[%s1247 + $0xc] sm:$0xf]
    %s1252 = scalar_lea.vmem %s5, 3
    %v1253 = vld [vmem:[%s1252] sm:$0x1]
    %v1255 = vlaneseq
    %v1256 = vshrl.u32 %v1255, 7
    %v1257 = vsub.s32 0, %v1256
    %v1258 = vrot.slane %v1253, %v1257
    %v1264 = vunpack.c.l.b16 %v1248
    %v1265 = vunpack.c.l.b16 %v1249
    %v1266 = vunpack.c.l.b16 %v1250
    %v1267 = vunpack.c.l.b16 %v1251
    %v1268 = vpack.c.b16 %v1265, %v1264
    %v1269 = vpack.c.b16 %v1267, %v1266
    %1272 = vmatprep.subr.bf16.mxu0 0
    %1273 = vmatpush1.bf16.msra.mxu0 0
    %1274 = vmatprep.subr.bf16.mxu0 0
    %1275 = vmatpush1.bf16.msra.mxu0 0
    %1276 = vmatprep.subr.bf16.mxu0 0
    %1277 = vmatpush1.bf16.msra.mxu0 0
    %1278 = vmatprep.subr.bf16.mxu0 0
    %1279 = vmatpush1.bf16.msra.mxu0 0
    %1280 = vmatprep.subr.bf16.mxu0 0
    %1281 = vmatpush1.bf16.msra.mxu0 0
    %1282 = vmatprep.subr.bf16.mxu0 0
    %1283 = vmatpush1.bf16.msra.mxu0 0
    %1284 = vmatprep.subr.bf16.mxu0 0
    %1285 = vmatpush1.bf16.msra.mxu0 %v1269
    %1286 = vmatprep.subr.bf16.mxu0 0
    %1287 = vmatpush1.bf16.msra.mxu0 %v1268
    %1288 = vmatprep.subr.bf16.mxu0 0
    %1289 = vmatpush2.bf16.msra.mxu0 0
    %1290 = vmatprep.subr.bf16.mxu0 0
    %1291 = vmatpush2.bf16.msra.mxu0 0
    %1292 = vmatprep.subr.bf16.mxu0 0
    %1293 = vmatpush2.bf16.msra.mxu0 0
    %1294 = vmatprep.subr.bf16.mxu0 0
    %1295 = vmatpush2.bf16.msra.mxu0 0
    %1296 = vmatprep.subr.bf16.mxu0 0
    %1297 = vmatpush2.bf16.msra.mxu0 0
    %1298 = vmatprep.subr.bf16.mxu0 0
    %1299 = vmatpush2.bf16.msra.mxu0 0
    %1300 = vmatprep.subr.bf16.mxu0 0
    %1301 = vmatpush2.bf16.msra.mxu0 0
    %1302 = vmatprep.subr.bf16.mxu0 0
    %1303 = vmatpush2.bf16.msra.mxu0 0
    %1304 = vmatprep.mubr.bf16.mxu0 0
    %1305 = vmatmul.mubr.bf16.gmra.mxu0 %v109
    %v1306 = vpop.f32.mrf.mxu0
    %v1307 = vadd.f32 %v1258, %v1306
    %v1308 = vpop.f32.mrf.mxu0
    %v1309 = vpop.f32.mrf.mxu0
    %v1310 = vadd.f32 %v1258, %v1309
    %v1311 = vpop.f32.mrf.mxu0
    %1312 = vdwg.mxu0
    %s1313 = scalar_lea.vmem %s6, 48
    %v1314 = vld [vmem:[%s1313] sm:$0xf]
    %v1315 = vld [vmem:[%s1313 + $0x4] sm:$0xf]
    %v1316 = vld [vmem:[%s1313 + $0x8] sm:$0xf]
    %v1317 = vld [vmem:[%s1313 + $0xc] sm:$0xf]
    %s1318 = scalar_lea.vmem %s7, 3
    %v1319 = vld [vmem:[%s1318] sm:$0x1]
    %v1321 = vlaneseq
    %v1322 = vshrl.u32 %v1321, 7
    %v1323 = vsub.s32 0, %v1322
    %v1324 = vrot.slane %v1319, %v1323
    %v1330 = vunpack.c.l.b16 %v1314
    %v1331 = vunpack.c.l.b16 %v1315
    %v1332 = vunpack.c.l.b16 %v1316
    %v1333 = vunpack.c.l.b16 %v1317
    %v1334 = vpack.c.b16 %v1331, %v1330
    %v1335 = vpack.c.b16 %v1333, %v1332
    %1338 = vmatprep.subr.bf16.mxu0 0
    %1339 = vmatpush1.bf16.msra.mxu0 0
    %1340 = vmatprep.subr.bf16.mxu0 0
    %1341 = vmatpush1.bf16.msra.mxu0 0
    %1342 = vmatprep.subr.bf16.mxu0 0
    %1343 = vmatpush1.bf16.msra.mxu0 0
    %1344 = vmatprep.subr.bf16.mxu0 0
    %1345 = vmatpush1.bf16.msra.mxu0 0
    %1346 = vmatprep.subr.bf16.mxu0 0
    %1347 = vmatpush1.bf16.msra.mxu0 0
    %1348 = vmatprep.subr.bf16.mxu0 0
    %1349 = vmatpush1.bf16.msra.mxu0 0
    %1350 = vmatprep.subr.bf16.mxu0 0
    %1351 = vmatpush1.bf16.msra.mxu0 %v1335
    %1352 = vmatprep.subr.bf16.mxu0 0
    %1353 = vmatpush1.bf16.msra.mxu0 %v1334
    %1354 = vmatprep.subr.bf16.mxu0 0
    %1355 = vmatpush2.bf16.msra.mxu0 0
    %1356 = vmatprep.subr.bf16.mxu0 0
    %1357 = vmatpush2.bf16.msra.mxu0 0
    %1358 = vmatprep.subr.bf16.mxu0 0
    %1359 = vmatpush2.bf16.msra.mxu0 0
    %1360 = vmatprep.subr.bf16.mxu0 0
    %1361 = vmatpush2.bf16.msra.mxu0 0
    %1362 = vmatprep.subr.bf16.mxu0 0
    %1363 = vmatpush2.bf16.msra.mxu0 0
    %1364 = vmatprep.subr.bf16.mxu0 0
    %1365 = vmatpush2.bf16.msra.mxu0 0
    %1366 = vmatprep.subr.bf16.mxu0 0
    %1367 = vmatpush2.bf16.msra.mxu0 0
    %1368 = vmatprep.subr.bf16.mxu0 0
    %1369 = vmatpush2.bf16.msra.mxu0 0
    %1370 = vmatprep.mubr.bf16.mxu0 0
    %1371 = vmatmul.mubr.bf16.gmra.mxu0 %v109
    %v1372 = vpop.f32.mrf.mxu0
    %v1373 = vadd.f32 %v1324, %v1372
    %v1374 = vpop.f32.mrf.mxu0
    %v1375 = vpop.f32.mrf.mxu0
    %v1376 = vadd.f32 %v1324, %v1375
    %v1377 = vpop.f32.mrf.mxu0
    %1378 = vdwg.mxu0
    %v1379 = vpack.c.bf16 %v1244, %v1241
    %v1380 = vpack.c.bf16 %v1310, %v1307
    %v1382 = vsel %vm282, %v1379, 0
    %v1385 = vsel %vm282, %v1380, 0
    %1387 = vmatprep.subr.bf16.mxu0 0
    %1388 = vmatpush1.bf16.xpose.msra.mxu0 0
    %1389 = vmatprep.subr.bf16.mxu0 0
    %1390 = vmatpush1.bf16.xpose.msra.mxu0 0
    %1391 = vmatprep.subr.bf16.mxu0 0
    %1392 = vmatpush1.bf16.xpose.msra.mxu0 0
    %1393 = vmatprep.subr.bf16.mxu0 0
    %1394 = vmatpush1.bf16.xpose.msra.mxu0 0
    %1395 = vmatprep.subr.bf16.mxu0 0
    %1396 = vmatpush1.bf16.xpose.msra.mxu0 0
    %1397 = vmatprep.subr.bf16.mxu0 0
    %1398 = vmatpush1.bf16.xpose.msra.mxu0 0
    %1399 = vmatprep.subr.bf16.mxu0 0
    %1400 = vmatpush1.bf16.xpose.msra.mxu0 0
    %1401 = vmatprep.subr.bf16.mxu0 0
    %1402 = vmatpush1.bf16.xpose.msra.mxu0 %v1385
    %1403 = vmatprep.subr.bf16.mxu0 0
    %1404 = vmatpush2.bf16.xpose.msra.mxu0 0
    %1405 = vmatprep.subr.bf16.mxu0 0
    %1406 = vmatpush2.bf16.xpose.msra.mxu0 0
    %1407 = vmatprep.subr.bf16.mxu0 0
    %1408 = vmatpush2.bf16.xpose.msra.mxu0 0
    %1409 = vmatprep.subr.bf16.mxu0 0
    %1410 = vmatpush2.bf16.xpose.msra.mxu0 0
    %1411 = vmatprep.subr.bf16.mxu0 0
    %1412 = vmatpush2.bf16.xpose.msra.mxu0 0
    %1413 = vmatprep.subr.bf16.mxu0 0
    %1414 = vmatpush2.bf16.xpose.msra.mxu0 0
    %1415 = vmatprep.subr.bf16.mxu0 0
    %1416 = vmatpush2.bf16.xpose.msra.mxu0 0
    %1417 = vmatprep.subr.bf16.mxu0 0
    %1418 = vmatpush2.bf16.xpose.msra.mxu0 0
    %1419 = vmatprep.mubr.bf16.mxu0 0
    %1420 = vmatmul.mubr.bf16.gmra.mxu0 %v1382
    %v1421 = vpop.f32.mrf.mxu0
    %v1422 = vadd.f32 %v81, %v1421
    %v1423 = vpop.f32.mrf.mxu0
    %v1424 = vpop.f32.mrf.mxu0
    %v1425 = vadd.f32 %v82, %v1424
    %v1426 = vpop.f32.mrf.mxu0
    %1427 = vdwg.mxu0
    %v1428 = vsel %vm330, %v1422, -inf
    %1429 = vmax.xlane.f32.xlu0 %v1428
    %v1430 = vpop.xlane.xlu0 %1429
    %v1431 = vsel %vm330, %v1425, -inf
    %1432 = vmax.xlane.f32.xlu0 %v1431
    %v1433 = vpop.xlane.xlu0 %1432
    %v1434 = vsub.f32 %v1422, %v1430
    %v1435 = vsub.f32 %v1425, %v1433
    %v1436 = vmul.f32 %v1434, 1.442695
    %v1437 = vpow.pop %v1436
    %v1438 = vmul.f32 %v1435, 1.442695
    %v1439 = vpow.pop %v1438
    %v1440 = vsel %vm330, %v1437, 0.0
    %1441 = vadd.xlane.f32.xlu0 %v1440
    %v1442 = vpop.xlane.xlu0 %1441
    %v1443 = vsel %vm330, %v1439, 0.0
    %1444 = vadd.xlane.f32.xlu0 %v1443
    %v1445 = vpop.xlane.xlu0 %1444
    %v1446 = vrcp.pop %v1442
    %v1447 = vrcp.pop %v1445
    %v1448 = vmul.f32 %v1437, %v1446
    %v1449 = vmul.f32 %v1439, %v1447
    %v1450 = vpack.c.bf16 %v1449, %v1448
    %v1451 = vpack.c.bf16 %v1376, %v1373
    %v1453 = vsel %vm330, %v1450, 0
    %1455 = vmatprep.subr.bf16.mxu0 0
    %1456 = vmatpush1.bf16.msra.mxu0 0
    %1457 = vmatprep.subr.bf16.mxu0 0
    %1458 = vmatpush1.bf16.msra.mxu0 0
    %1459 = vmatprep.subr.bf16.mxu0 0
    %1460 = vmatpush1.bf16.msra.mxu0 0
    %1461 = vmatprep.subr.bf16.mxu0 0
    %1462 = vmatpush1.bf16.msra.mxu0 0
    %1463 = vmatprep.subr.bf16.mxu0 0
    %1464 = vmatpush1.bf16.msra.mxu0 0
    %1465 = vmatprep.subr.bf16.mxu0 0
    %1466 = vmatpush1.bf16.msra.mxu0 0
    %1467 = vmatprep.subr.bf16.mxu0 0
    %1468 = vmatpush1.bf16.msra.mxu0 0
    %1469 = vmatprep.subr.bf16.mxu0 0
    %1470 = vmatpush1.bf16.msra.mxu0 %v1451
    %1471 = vmatprep.subr.bf16.mxu0 0
    %1472 = vmatpush2.bf16.msra.mxu0 0
    %1473 = vmatprep.subr.bf16.mxu0 0
    %1474 = vmatpush2.bf16.msra.mxu0 0
    %1475 = vmatprep.subr.bf16.mxu0 0
    %1476 = vmatpush2.bf16.msra.mxu0 0
    %1477 = vmatprep.subr.bf16.mxu0 0
    %1478 = vmatpush2.bf16.msra.mxu0 0
    %1479 = vmatprep.subr.bf16.mxu0 0
    %1480 = vmatpush2.bf16.msra.mxu0 0
    %1481 = vmatprep.subr.bf16.mxu0 0
    %1482 = vmatpush2.bf16.msra.mxu0 0
    %1483 = vmatprep.subr.bf16.mxu0 0
    %1484 = vmatpush2.bf16.msra.mxu0 0
    %1485 = vmatprep.subr.bf16.mxu0 0
    %1486 = vmatpush2.bf16.msra.mxu0 0
    %1487 = vmatprep.mubr.bf16.mxu0 0
    %1488 = vmatmul.mubr.bf16.gmra.mxu0 %v1453
    %v1489 = vpop.f32.mrf.mxu0
    %v1490 = vadd.f32 0.0, %v1489
    %v1491 = vpop.f32.mrf.mxu0
    %v1492 = vpop.f32.mrf.mxu0
    %v1493 = vadd.f32 0.0, %v1492
    %v1494 = vpop.f32.mrf.mxu0
    %1495 = vdwg.mxu0
    %v1496 = vpack.c.bf16 %v1493, %v1490
    %s1497 = scalar_lea.vmem %s8, 12
    %v1498 = vld [vmem:[%s1497] sm:$0xf]
    %v1500 = vsel %vm282, %v1496, 0
    %v1503 = vsel %vm722, %v1498, 0
    %1505 = vmatprep.subr.bf16.mxu0 0
    %1506 = vmatpush1.bf16.msra.mxu0 0
    %1507 = vmatprep.subr.bf16.mxu0 0
    %1508 = vmatpush1.bf16.msra.mxu0 0
    %1509 = vmatprep.subr.bf16.mxu0 0
    %1510 = vmatpush1.bf16.msra.mxu0 0
    %1511 = vmatprep.subr.bf16.mxu0 0
    %1512 = vmatpush1.bf16.msra.mxu0 0
    %1513 = vmatprep.subr.bf16.mxu0 0
    %1514 = vmatpush1.bf16.msra.mxu0 0
    %1515 = vmatprep.subr.bf16.mxu0 0
    %1516 = vmatpush1.bf16.msra.mxu0 0
    %1517 = vmatprep.subr.bf16.mxu0 0
    %1518 = vmatpush1.bf16.msra.mxu0 0
    %1519 = vmatprep.subr.bf16.mxu0 0
    %1520 = vmatpush1.bf16.msra.mxu0 %v1503
    %1521 = vmatprep.subr.bf16.mxu0 0
    %1522 = vmatpush2.bf16.msra.mxu0 0
    %1523 = vmatprep.subr.bf16.mxu0 0
    %1524 = vmatpush2.bf16.msra.mxu0 0
    %1525 = vmatprep.subr.bf16.mxu0 0
    %1526 = vmatpush2.bf16.msra.mxu0 0
    %1527 = vmatprep.subr.bf16.mxu0 0
    %1528 = vmatpush2.bf16.msra.mxu0 0
    %1529 = vmatprep.subr.bf16.mxu0 0
    %1530 = vmatpush2.bf16.msra.mxu0 0
    %1531 = vmatprep.subr.bf16.mxu0 0
    %1532 = vmatpush2.bf16.msra.mxu0 0
    %1533 = vmatprep.subr.bf16.mxu0 0
    %1534 = vmatpush2.bf16.msra.mxu0 0
    %1535 = vmatprep.subr.bf16.mxu0 0
    %1536 = vmatpush2.bf16.msra.mxu0 0
    %1537 = vmatprep.mubr.bf16.mxu0 0
    %1538 = vmatmul.mubr.bf16.gmra.mxu0 %v1500
    %v1539 = vpop.f32.mrf.mxu0
    %v1540 = vadd.f32 0.0, %v1539
    %v1541 = vpop.f32.mrf.mxu0
    %v1542 = vpop.f32.mrf.mxu0
    %v1543 = vadd.f32 0.0, %v1542
    %v1544 = vpop.f32.mrf.mxu0
    %1545 = vdwg.mxu0
    %v1546 = vadd.f32 %v1179, %v1540
    %v1547 = vadd.f32 %v1180, %v1543
    %v1548 = vld [vmem:[%s9] sm:$0x1]
    %v1550 = vlaneseq
    %v1551 = vshrl.u32 %v1550, 7
    %v1552 = vsub.s32 0, %v1551
    %v1553 = vrot.slane %v1548, %v1552
    %v1555 = vadd.f32 %v1546, %v1553
    %v1556 = vadd.f32 %v1547, %v1553
    %v1557 = vadd.f32 %v79, %v1555
    %v1558 = vadd.f32 %v80, %v1556
    %v1559 = vsel %vm107, %v1557, 0.0
    %1560 = vadd.xlane.f32.xlu0 %v1559
    %v1561 = vpop.xlane.xlu0 %1560
    %v1562 = vsel %vm107, %v1558, 0.0
    %1563 = vadd.xlane.f32.xlu0 %v1562
    %v1564 = vpop.xlane.xlu0 %1563
    %v1565 = vrcp.pop 32.0
    %v1566 = vmul.f32 %v1561, %v1565
    %v1567 = vmul.f32 %v1564, %v1565
    %v1568 = vsub.f32 %v1557, %v1566
    %v1569 = vsub.f32 %v1558, %v1567
    %v1570 = vmul.f32 %v1568, %v1568
    %v1571 = vmul.f32 %v1569, %v1569
    %v1572 = vsel %vm107, %v1570, 0.0
    %1573 = vadd.xlane.f32.xlu0 %v1572
    %v1574 = vpop.xlane.xlu0 %1573
    %v1575 = vsel %vm107, %v1571, 0.0
    %1576 = vadd.xlane.f32.xlu0 %v1575
    %v1577 = vpop.xlane.xlu0 %1576
    %v1578 = vmul.f32 %v1574, %v1565
    %v1579 = vmul.f32 %v1577, %v1565
    %v1580 = vadd.f32 %v1578, 1e-05
    %v1581 = vadd.f32 %v1579, 1e-05
    %v1582 = vrsqrt.pop %v1580
    %v1583 = vrsqrt.pop %v1581
    %v1584 = vmul.f32 %v1568, %v1582
    %v1585 = vmul.f32 %v1569, %v1583
    %v1586 = vld [vmem:[%s10] sm:$0x1]
    %v1588 = vlaneseq
    %v1589 = vshrl.u32 %v1588, 7
    %v1590 = vsub.s32 0, %v1589
    %v1591 = vrot.slane %v1586, %v1590
    %v1593 = vmul.f32 %v1584, %v1591
    %v1594 = vmul.f32 %v1585, %v1591
    %v1595 = vld [vmem:[%s11] sm:$0x1]
    %v1597 = vlaneseq
    %v1598 = vshrl.u32 %v1597, 7
    %v1599 = vsub.s32 0, %v1598
    %v1600 = vrot.slane %v1595, %v1599
    %v1602 = vadd.f32 %v1593, %v1600
    %v1603 = vadd.f32 %v1594, %v1600
    %v1604 = vpack.c.bf16 %v1603, %v1602
    %v1605 = vld [vmem:[%s12] sm:$0xf]
    %v1606 = vld [vmem:[%s12 + $0x4] sm:$0xf]
    %v1607 = vld [vmem:[%s12 + $0x8] sm:$0xf]
    %v1608 = vld [vmem:[%s12 + $0xc] sm:$0xf]
    %v1609 = vld [vmem:[%s13] sm:$0x1]
    %v1611 = vlaneseq
    %v1612 = vshrl.u32 %v1611, 7
    %v1613 = vsub.s32 0, %v1612
    %v1614 = vrot.slane %v1609, %v1613
    %v1620 = vunpack.c.l.b16 %v1605
    %v1621 = vunpack.c.l.b16 %v1606
    %v1622 = vunpack.c.l.b16 %v1607
    %v1623 = vunpack.c.l.b16 %v1608
    %v1624 = vpack.c.b16 %v1621, %v1620
    %v1625 = vpack.c.b16 %v1623, %v1622
    %v1629 = vsel %vm107, %v1604, 0
    %1631 = vmatprep.subr.bf16.mxu0 0
    %1632 = vmatpush1.bf16.msra.mxu0 0
    %1633 = vmatprep.subr.bf16.mxu0 0
    %1634 = vmatpush1.bf16.msra.mxu0 0
    %1635 = vmatprep.subr.bf16.mxu0 0
    %1636 = vmatpush1.bf16.msra.mxu0 0
    %1637 = vmatprep.subr.bf16.mxu0 0
    %1638 = vmatpush1.bf16.msra.mxu0 0
    %1639 = vmatprep.subr.bf16.mxu0 0
    %1640 = vmatpush1.bf16.msra.mxu0 0
    %1641 = vmatprep.subr.bf16.mxu0 0
    %1642 = vmatpush1.bf16.msra.mxu0 0
    %1643 = vmatprep.subr.bf16.mxu0 0
    %1644 = vmatpush1.bf16.msra.mxu0 %v1625
    %1645 = vmatprep.subr.bf16.mxu0 0
    %1646 = vmatpush1.bf16.msra.mxu0 %v1624
    %1647 = vmatprep.subr.bf16.mxu0 0
    %1648 = vmatpush2.bf16.msra.mxu0 0
    %1649 = vmatprep.subr.bf16.mxu0 0
    %1650 = vmatpush2.bf16.msra.mxu0 0
    %1651 = vmatprep.subr.bf16.mxu0 0
    %1652 = vmatpush2.bf16.msra.mxu0 0
    %1653 = vmatprep.subr.bf16.mxu0 0
    %1654 = vmatpush2.bf16.msra.mxu0 0
    %1655 = vmatprep.subr.bf16.mxu0 0
    %1656 = vmatpush2.bf16.msra.mxu0 0
    %1657 = vmatprep.subr.bf16.mxu0 0
    %1658 = vmatpush2.bf16.msra.mxu0 0
    %1659 = vmatprep.subr.bf16.mxu0 0
    %1660 = vmatpush2.bf16.msra.mxu0 0
    %1661 = vmatprep.subr.bf16.mxu0 0
    %1662 = vmatpush2.bf16.msra.mxu0 0
    %1663 = vmatprep.mubr.bf16.mxu0 0
    %1664 = vmatmul.mubr.bf16.gmra.mxu0 %v1629
    %v1665 = vpop.f32.mrf.mxu0
    %v1666 = vadd.f32 %v1614, %v1665
    %v1667 = vpop.f32.mrf.mxu0
    %v1668 = vpop.f32.mrf.mxu0
    %v1669 = vadd.f32 %v1614, %v1668
    %v1670 = vpop.f32.mrf.mxu0
    %1671 = vdwg.mxu0
    %v1672 = vld [vmem:[%s14] sm:$0xf]
    %v1673 = vld [vmem:[%s14 + $0x4] sm:$0xf]
    %v1674 = vld [vmem:[%s14 + $0x8] sm:$0xf]
    %v1675 = vld [vmem:[%s14 + $0xc] sm:$0xf]
    %v1676 = vld [vmem:[%s15] sm:$0x1]
    %v1678 = vlaneseq
    %v1679 = vshrl.u32 %v1678, 7
    %v1680 = vsub.s32 0, %v1679
    %v1681 = vrot.slane %v1676, %v1680
    %v1687 = vunpack.c.l.b16 %v1672
    %v1688 = vunpack.c.l.b16 %v1673
    %v1689 = vunpack.c.l.b16 %v1674
    %v1690 = vunpack.c.l.b16 %v1675
    %v1691 = vpack.c.b16 %v1688, %v1687
    %v1692 = vpack.c.b16 %v1690, %v1689
    %1695 = vmatprep.subr.bf16.mxu0 0
    %1696 = vmatpush1.bf16.msra.mxu0 0
    %1697 = vmatprep.subr.bf16.mxu0 0
    %1698 = vmatpush1.bf16.msra.mxu0 0
    %1699 = vmatprep.subr.bf16.mxu0 0
    %1700 = vmatpush1.bf16.msra.mxu0 0
    %1701 = vmatprep.subr.bf16.mxu0 0
    %1702 = vmatpush1.bf16.msra.mxu0 0
    %1703 = vmatprep.subr.bf16.mxu0 0
    %1704 = vmatpush1.bf16.msra.mxu0 0
    %1705 = vmatprep.subr.bf16.mxu0 0
    %1706 = vmatpush1.bf16.msra.mxu0 0
    %1707 = vmatprep.subr.bf16.mxu0 0
    %1708 = vmatpush1.bf16.msra.mxu0 %v1692
    %1709 = vmatprep.subr.bf16.mxu0 0
    %1710 = vmatpush1.bf16.msra.mxu0 %v1691
    %1711 = vmatprep.subr.bf16.mxu0 0
    %1712 = vmatpush2.bf16.msra.mxu0 0
    %1713 = vmatprep.subr.bf16.mxu0 0
    %1714 = vmatpush2.bf16.msra.mxu0 0
    %1715 = vmatprep.subr.bf16.mxu0 0
    %1716 = vmatpush2.bf16.msra.mxu0 0
    %1717 = vmatprep.subr.bf16.mxu0 0
    %1718 = vmatpush2.bf16.msra.mxu0 0
    %1719 = vmatprep.subr.bf16.mxu0 0
    %1720 = vmatpush2.bf16.msra.mxu0 0
    %1721 = vmatprep.subr.bf16.mxu0 0
    %1722 = vmatpush2.bf16.msra.mxu0 0
    %1723 = vmatprep.subr.bf16.mxu0 0
    %1724 = vmatpush2.bf16.msra.mxu0 0
    %1725 = vmatprep.subr.bf16.mxu0 0
    %1726 = vmatpush2.bf16.msra.mxu0 0
    %1727 = vmatprep.mubr.bf16.mxu0 0
    %1728 = vmatmul.mubr.bf16.gmra.mxu0 %v1629
    %v1729 = vpop.f32.mrf.mxu0
    %v1730 = vadd.f32 %v1681, %v1729
    %v1731 = vpop.f32.mrf.mxu0
    %v1732 = vpop.f32.mrf.mxu0
    %v1733 = vadd.f32 %v1681, %v1732
    %v1734 = vpop.f32.mrf.mxu0
    %1735 = vdwg.mxu0
    %v1736 = vld [vmem:[%s16] sm:$0xf]
    %v1737 = vld [vmem:[%s16 + $0x4] sm:$0xf]
    %v1738 = vld [vmem:[%s16 + $0x8] sm:$0xf]
    %v1739 = vld [vmem:[%s16 + $0xc] sm:$0xf]
    %v1740 = vld [vmem:[%s17] sm:$0x1]
    %v1742 = vlaneseq
    %v1743 = vshrl.u32 %v1742, 7
    %v1744 = vsub.s32 0, %v1743
    %v1745 = vrot.slane %v1740, %v1744
    %v1751 = vunpack.c.l.b16 %v1736
    %v1752 = vunpack.c.l.b16 %v1737
    %v1753 = vunpack.c.l.b16 %v1738
    %v1754 = vunpack.c.l.b16 %v1739
    %v1755 = vpack.c.b16 %v1752, %v1751
    %v1756 = vpack.c.b16 %v1754, %v1753
    %1759 = vmatprep.subr.bf16.mxu0 0
    %1760 = vmatpush1.bf16.msra.mxu0 0
    %1761 = vmatprep.subr.bf16.mxu0 0
    %1762 = vmatpush1.bf16.msra.mxu0 0
    %1763 = vmatprep.subr.bf16.mxu0 0
    %1764 = vmatpush1.bf16.msra.mxu0 0
    %1765 = vmatprep.subr.bf16.mxu0 0
    %1766 = vmatpush1.bf16.msra.mxu0 0
    %1767 = vmatprep.subr.bf16.mxu0 0
    %1768 = vmatpush1.bf16.msra.mxu0 0
    %1769 = vmatprep.subr.bf16.mxu0 0
    %1770 = vmatpush1.bf16.msra.mxu0 0
    %1771 = vmatprep.subr.bf16.mxu0 0
    %1772 = vmatpush1.bf16.msra.mxu0 %v1756
    %1773 = vmatprep.subr.bf16.mxu0 0
    %1774 = vmatpush1.bf16.msra.mxu0 %v1755
    %1775 = vmatprep.subr.bf16.mxu0 0
    %1776 = vmatpush2.bf16.msra.mxu0 0
    %1777 = vmatprep.subr.bf16.mxu0 0
    %1778 = vmatpush2.bf16.msra.mxu0 0
    %1779 = vmatprep.subr.bf16.mxu0 0
    %1780 = vmatpush2.bf16.msra.mxu0 0
    %1781 = vmatprep.subr.bf16.mxu0 0
    %1782 = vmatpush2.bf16.msra.mxu0 0
    %1783 = vmatprep.subr.bf16.mxu0 0
    %1784 = vmatpush2.bf16.msra.mxu0 0
    %1785 = vmatprep.subr.bf16.mxu0 0
    %1786 = vmatpush2.bf16.msra.mxu0 0
    %1787 = vmatprep.subr.bf16.mxu0 0
    %1788 = vmatpush2.bf16.msra.mxu0 0
    %1789 = vmatprep.subr.bf16.mxu0 0
    %1790 = vmatpush2.bf16.msra.mxu0 0
    %1791 = vmatprep.mubr.bf16.mxu0 0
    %1792 = vmatmul.mubr.bf16.gmra.mxu0 %v1629
    %v1793 = vpop.f32.mrf.mxu0
    %v1794 = vadd.f32 %v1745, %v1793
    %v1795 = vpop.f32.mrf.mxu0
    %v1796 = vpop.f32.mrf.mxu0
    %v1797 = vadd.f32 %v1745, %v1796
    %v1798 = vpop.f32.mrf.mxu0
    %1799 = vdwg.mxu0
    %v1800 = vpack.c.bf16 %v1669, %v1666
    %v1801 = vpack.c.bf16 %v1733, %v1730
    %v1803 = vsel %vm282, %v1800, 0
    %v1806 = vsel %vm282, %v1801, 0
    %1808 = vmatprep.subr.bf16.mxu0 0
    %1809 = vmatpush1.bf16.xpose.msra.mxu0 0
    %1810 = vmatprep.subr.bf16.mxu0 0
    %1811 = vmatpush1.bf16.xpose.msra.mxu0 0
    %1812 = vmatprep.subr.bf16.mxu0 0
    %1813 = vmatpush1.bf16.xpose.msra.mxu0 0
    %1814 = vmatprep.subr.bf16.mxu0 0
    %1815 = vmatpush1.bf16.xpose.msra.mxu0 0
    %1816 = vmatprep.subr.bf16.mxu0 0
    %1817 = vmatpush1.bf16.xpose.msra.mxu0 0
    %1818 = vmatprep.subr.bf16.mxu0 0
    %1819 = vmatpush1.bf16.xpose.msra.mxu0 0
    %1820 = vmatprep.subr.bf16.mxu0 0
    %1821 = vmatpush1.bf16.xpose.msra.mxu0 0
    %1822 = vmatprep.subr.bf16.mxu0 0
    %1823 = vmatpush1.bf16.xpose.msra.mxu0 %v1806
    %1824 = vmatprep.subr.bf16.mxu0 0
    %1825 = vmatpush2.bf16.xpose.msra.mxu0 0
    %1826 = vmatprep.subr.bf16.mxu0 0
    %1827 = vmatpush2.bf16.xpose.msra.mxu0 0
    %1828 = vmatprep.subr.bf16.mxu0 0
    %1829 = vmatpush2.bf16.xpose.msra.mxu0 0
    %1830 = vmatprep.subr.bf16.mxu0 0
    %1831 = vmatpush2.bf16.xpose.msra.mxu0 0
    %1832 = vmatprep.subr.bf16.mxu0 0
    %1833 = vmatpush2.bf16.xpose.msra.mxu0 0
    %1834 = vmatprep.subr.bf16.mxu0 0
    %1835 = vmatpush2.bf16.xpose.msra.mxu0 0
    %1836 = vmatprep.subr.bf16.mxu0 0
    %1837 = vmatpush2.bf16.xpose.msra.mxu0 0
    %1838 = vmatprep.subr.bf16.mxu0 0
    %1839 = vmatpush2.bf16.xpose.msra.mxu0 0
    %1840 = vmatprep.mubr.bf16.mxu0 0
    %1841 = vmatmul.mubr.bf16.gmra.mxu0 %v1803
    %v1842 = vpop.f32.mrf.mxu0
    %v1843 = vadd.f32 %v81, %v1842
    %v1844 = vpop.f32.mrf.mxu0
    %v1845 = vpop.f32.mrf.mxu0
    %v1846 = vadd.f32 %v82, %v1845
    %v1847 = vpop.f32.mrf.mxu0
    %1848 = vdwg.mxu0
    %v1849 = vsel %vm330, %v1843, -inf
    %1850 = vmax.xlane.f32.xlu0 %v1849
    %v1851 = vpop.xlane.xlu0 %1850
    %v1852 = vsel %vm330, %v1846, -inf
    %1853 = vmax.xlane.f32.xlu0 %v1852
    %v1854 = vpop.xlane.xlu0 %1853
    %v1855 = vsub.f32 %v1843, %v1851
    %v1856 = vsub.f32 %v1846, %v1854
    %v1857 = vmul.f32 %v1855, 1.442695
    %v1858 = vpow.pop %v1857
    %v1859 = vmul.f32 %v1856, 1.442695
    %v1860 = vpow.pop %v1859
    %v1861 = vsel %vm330, %v1858, 0.0
    %1862 = vadd.xlane.f32.xlu0 %v1861
    %v1863 = vpop.xlane.xlu0 %1862
    %v1864 = vsel %vm330, %v1860, 0.0
    %1865 = vadd.xlane.f32.xlu0 %v1864
    %v1866 = vpop.xlane.xlu0 %1865
    %v1867 = vrcp.pop %v1863
    %v1868 = vrcp.pop %v1866
    %v1869 = vmul.f32 %v1858, %v1867
    %v1870 = vmul.f32 %v1860, %v1868
    %v1871 = vpack.c.bf16 %v1870, %v1869
    %v1872 = vpack.c.bf16 %v1797, %v1794
    %v1874 = vsel %vm330, %v1871, 0
    %1876 = vmatprep.subr.bf16.mxu0 0
    %1877 = vmatpush1.bf16.msra.mxu0 0
    %1878 = vmatprep.subr.bf16.mxu0 0
    %1879 = vmatpush1.bf16.msra.mxu0 0
    %1880 = vmatprep.subr.bf16.mxu0 0
    %1881 = vmatpush1.bf16.msra.mxu0 0
    %1882 = vmatprep.subr.bf16.mxu0 0
    %1883 = vmatpush1.bf16.msra.mxu0 0
    %1884 = vmatprep.subr.bf16.mxu0 0
    %1885 = vmatpush1.bf16.msra.mxu0 0
    %1886 = vmatprep.subr.bf16.mxu0 0
    %1887 = vmatpush1.bf16.msra.mxu0 0
    %1888 = vmatprep.subr.bf16.mxu0 0
    %1889 = vmatpush1.bf16.msra.mxu0 0
    %1890 = vmatprep.subr.bf16.mxu0 0
    %1891 = vmatpush1.bf16.msra.mxu0 %v1872
    %1892 = vmatprep.subr.bf16.mxu0 0
    %1893 = vmatpush2.bf16.msra.mxu0 0
    %1894 = vmatprep.subr.bf16.mxu0 0
    %1895 = vmatpush2.bf16.msra.mxu0 0
    %1896 = vmatprep.subr.bf16.mxu0 0
    %1897 = vmatpush2.bf16.msra.mxu0 0
    %1898 = vmatprep.subr.bf16.mxu0 0
    %1899 = vmatpush2.bf16.msra.mxu0 0
    %1900 = vmatprep.subr.bf16.mxu0 0
    %1901 = vmatpush2.bf16.msra.mxu0 0
    %1902 = vmatprep.subr.bf16.mxu0 0
    %1903 = vmatpush2.bf16.msra.mxu0 0
    %1904 = vmatprep.subr.bf16.mxu0 0
    %1905 = vmatpush2.bf16.msra.mxu0 0
    %1906 = vmatprep.subr.bf16.mxu0 0
    %1907 = vmatpush2.bf16.msra.mxu0 0
    %1908 = vmatprep.mubr.bf16.mxu0 0
    %1909 = vmatmul.mubr.bf16.gmra.mxu0 %v1874
    %v1910 = vpop.f32.mrf.mxu0
    %v1911 = vadd.f32 0.0, %v1910
    %v1912 = vpop.f32.mrf.mxu0
    %v1913 = vpop.f32.mrf.mxu0
    %v1914 = vadd.f32 0.0, %v1913
    %v1915 = vpop.f32.mrf.mxu0
    %1916 = vdwg.mxu0
    %v1917 = vpack.c.bf16 %v1914, %v1911
    %v1918 = vld [vmem:[%s18] sm:$0xf]
    %s1919 = scalar_lea.vmem %s12, 16
    %v1920 = vld [vmem:[%s1919] sm:$0xf]
    %v1921 = vld [vmem:[%s1919 + $0x4] sm:$0xf]
    %v1922 = vld [vmem:[%s1919 + $0x8] sm:$0xf]
    %v1923 = vld [vmem:[%s1919 + $0xc] sm:$0xf]
    %s1924 = scalar_lea.vmem %s13, 1
    %v1925 = vld [vmem:[%s1924] sm:$0x1]
    %v1927 = vlaneseq
    %v1928 = vshrl.u32 %v1927, 7
    %v1929 = vsub.s32 0, %v1928
    %v1930 = vrot.slane %v1925, %v1929
    %v1936 = vunpack.c.l.b16 %v1920
    %v1937 = vunpack.c.l.b16 %v1921
    %v1938 = vunpack.c.l.b16 %v1922
    %v1939 = vunpack.c.l.b16 %v1923
    %v1940 = vpack.c.b16 %v1937, %v1936
    %v1941 = vpack.c.b16 %v1939, %v1938
    %1944 = vmatprep.subr.bf16.mxu0 0
    %1945 = vmatpush1.bf16.msra.mxu0 0
    %1946 = vmatprep.subr.bf16.mxu0 0
    %1947 = vmatpush1.bf16.msra.mxu0 0
    %1948 = vmatprep.subr.bf16.mxu0 0
    %1949 = vmatpush1.bf16.msra.mxu0 0
    %1950 = vmatprep.subr.bf16.mxu0 0
    %1951 = vmatpush1.bf16.msra.mxu0 0
    %1952 = vmatprep.subr.bf16.mxu0 0
    %1953 = vmatpush1.bf16.msra.mxu0 0
    %1954 = vmatprep.subr.bf16.mxu0 0
    %1955 = vmatpush1.bf16.msra.mxu0 0
    %1956 = vmatprep.subr.bf16.mxu0 0
    %1957 = vmatpush1.bf16.msra.mxu0 %v1941
    %1958 = vmatprep.subr.bf16.mxu0 0
    %1959 = vmatpush1.bf16.msra.mxu0 %v1940
    %1960 = vmatprep.subr.bf16.mxu0 0
    %1961 = vmatpush2.bf16.msra.mxu0 0
    %1962 = vmatprep.subr.bf16.mxu0 0
    %1963 = vmatpush2.bf16.msra.mxu0 0
    %1964 = vmatprep.subr.bf16.mxu0 0
    %1965 = vmatpush2.bf16.msra.mxu0 0
    %1966 = vmatprep.subr.bf16.mxu0 0
    %1967 = vmatpush2.bf16.msra.mxu0 0
    %1968 = vmatprep.subr.bf16.mxu0 0
    %1969 = vmatpush2.bf16.msra.mxu0 0
    %1970 = vmatprep.subr.bf16.mxu0 0
    %1971 = vmatpush2.bf16.msra.mxu0 0
    %1972 = vmatprep.subr.bf16.mxu0 0
    %1973 = vmatpush2.bf16.msra.mxu0 0
    %1974 = vmatprep.subr.bf16.mxu0 0
    %1975 = vmatpush2.bf16.msra.mxu0 0
    %1976 = vmatprep.mubr.bf16.mxu0 0
    %1977 = vmatmul.mubr.bf16.gmra.mxu0 %v1629
    %v1978 = vpop.f32.mrf.mxu0
    %v1979 = vadd.f32 %v1930, %v1978
    %v1980 = vpop.f32.mrf.mxu0
    %v1981 = vpop.f32.mrf.mxu0
    %v1982 = vadd.f32 %v1930, %v1981
    %v1983 = vpop.f32.mrf.mxu0
    %1984 = vdwg.mxu0
    %s1985 = scalar_lea.vmem %s14, 16
    %v1986 = vld [vmem:[%s1985] sm:$0xf]
    %v1987 = vld [vmem:[%s1985 + $0x4] sm:$0xf]
    %v1988 = vld [vmem:[%s1985 + $0x8] sm:$0xf]
    %v1989 = vld [vmem:[%s1985 + $0xc] sm:$0xf]
    %s1990 = scalar_lea.vmem %s15, 1
    %v1991 = vld [vmem:[%s1990] sm:$0x1]
    %v1993 = vlaneseq
    %v1994 = vshrl.u32 %v1993, 7
    %v1995 = vsub.s32 0, %v1994
    %v1996 = vrot.slane %v1991, %v1995
    %v2002 = vunpack.c.l.b16 %v1986
    %v2003 = vunpack.c.l.b16 %v1987
    %v2004 = vunpack.c.l.b16 %v1988
    %v2005 = vunpack.c.l.b16 %v1989
    %v2006 = vpack.c.b16 %v2003, %v2002
    %v2007 = vpack.c.b16 %v2005, %v2004
    %2010 = vmatprep.subr.bf16.mxu0 0
    %2011 = vmatpush1.bf16.msra.mxu0 0
    %2012 = vmatprep.subr.bf16.mxu0 0
    %2013 = vmatpush1.bf16.msra.mxu0 0
    %2014 = vmatprep.subr.bf16.mxu0 0
    %2015 = vmatpush1.bf16.msra.mxu0 0
    %2016 = vmatprep.subr.bf16.mxu0 0
    %2017 = vmatpush1.bf16.msra.mxu0 0
    %2018 = vmatprep.subr.bf16.mxu0 0
    %2019 = vmatpush1.bf16.msra.mxu0 0
    %2020 = vmatprep.subr.bf16.mxu0 0
    %2021 = vmatpush1.bf16.msra.mxu0 0
    %2022 = vmatprep.subr.bf16.mxu0 0
    %2023 = vmatpush1.bf16.msra.mxu0 %v2007
    %2024 = vmatprep.subr.bf16.mxu0 0
    %2025 = vmatpush1.bf16.msra.mxu0 %v2006
    %2026 = vmatprep.subr.bf16.mxu0 0
    %2027 = vmatpush2.bf16.msra.mxu0 0
    %2028 = vmatprep.subr.bf16.mxu0 0
    %2029 = vmatpush2.bf16.msra.mxu0 0
    %2030 = vmatprep.subr.bf16.mxu0 0
    %2031 = vmatpush2.bf16.msra.mxu0 0
    %2032 = vmatprep.subr.bf16.mxu0 0
    %2033 = vmatpush2.bf16.msra.mxu0 0
    %2034 = vmatprep.subr.bf16.mxu0 0
    %2035 = vmatpush2.bf16.msra.mxu0 0
    %2036 = vmatprep.subr.bf16.mxu0 0
    %2037 = vmatpush2.bf16.msra.mxu0 0
    %2038 = vmatprep.subr.bf16.mxu0 0
    %2039 = vmatpush2.bf16.msra.mxu0 0
    %2040 = vmatprep.subr.bf16.mxu0 0
    %2041 = vmatpush2.bf16.msra.mxu0 0
    %2042 = vmatprep.mubr.bf16.mxu0 0
    %2043 = vmatmul.mubr.bf16.gmra.mxu0 %v1629
    %v2044 = vpop.f32.mrf.mxu0
    %v2045 = vadd.f32 %v1996, %v2044
    %v2046 = vpop.f32.mrf.mxu0
    %v2047 = vpop.f32.mrf.mxu0
    %v2048 = vadd.f32 %v1996, %v2047
    %v2049 = vpop.f32.mrf.mxu0
    %2050 = vdwg.mxu0
    %s2051 = scalar_lea.vmem %s16, 16
    %v2052 = vld [vmem:[%s2051] sm:$0xf]
    %v2053 = vld [vmem:[%s2051 + $0x4] sm:$0xf]
    %v2054 = vld [vmem:[%s2051 + $0x8] sm:$0xf]
    %v2055 = vld [vmem:[%s2051 + $0xc] sm:$0xf]
    %s2056 = scalar_lea.vmem %s17, 1
    %v2057 = vld [vmem:[%s2056] sm:$0x1]
    %v2059 = vlaneseq
    %v2060 = vshrl.u32 %v2059, 7
    %v2061 = vsub.s32 0, %v2060
    %v2062 = vrot.slane %v2057, %v2061
    %v2068 = vunpack.c.l.b16 %v2052
    %v2069 = vunpack.c.l.b16 %v2053
    %v2070 = vunpack.c.l.b16 %v2054
    %v2071 = vunpack.c.l.b16 %v2055
    %v2072 = vpack.c.b16 %v2069, %v2068
    %v2073 = vpack.c.b16 %v2071, %v2070
    %2076 = vmatprep.subr.bf16.mxu0 0
    %2077 = vmatpush1.bf16.msra.mxu0 0
    %2078 = vmatprep.subr.bf16.mxu0 0
    %2079 = vmatpush1.bf16.msra.mxu0 0
    %2080 = vmatprep.subr.bf16.mxu0 0
    %2081 = vmatpush1.bf16.msra.mxu0 0
    %2082 = vmatprep.subr.bf16.mxu0 0
    %2083 = vmatpush1.bf16.msra.mxu0 0
    %2084 = vmatprep.subr.bf16.mxu0 0
    %2085 = vmatpush1.bf16.msra.mxu0 0
    %2086 = vmatprep.subr.bf16.mxu0 0
    %2087 = vmatpush1.bf16.msra.mxu0 0
    %2088 = vmatprep.subr.bf16.mxu0 0
    %2089 = vmatpush1.bf16.msra.mxu0 %v2073
    %2090 = vmatprep.subr.bf16.mxu0 0
    %2091 = vmatpush1.bf16.msra.mxu0 %v2072
    %2092 = vmatprep.subr.bf16.mxu0 0
    %2093 = vmatpush2.bf16.msra.mxu0 0
    %2094 = vmatprep.subr.bf16.mxu0 0
    %2095 = vmatpush2.bf16.msra.mxu0 0
    %2096 = vmatprep.subr.bf16.mxu0 0
    %2097 = vmatpush2.bf16.msra.mxu0 0
    %2098 = vmatprep.subr.bf16.mxu0 0
    %2099 = vmatpush2.bf16.msra.mxu0 0
    %2100 = vmatprep.subr.bf16.mxu0 0
    %2101 = vmatpush2.bf16.msra.mxu0 0
    %2102 = vmatprep.subr.bf16.mxu0 0
    %2103 = vmatpush2.bf16.msra.mxu0 0
    %2104 = vmatprep.subr.bf16.mxu0 0
    %2105 = vmatpush2.bf16.msra.mxu0 0
    %2106 = vmatprep.subr.bf16.mxu0 0
    %2107 = vmatpush2.bf16.msra.mxu0 0
    %2108 = vmatprep.mubr.bf16.mxu0 0
    %2109 = vmatmul.mubr.bf16.gmra.mxu0 %v1629
    %v2110 = vpop.f32.mrf.mxu0
    %v2111 = vadd.f32 %v2062, %v2110
    %v2112 = vpop.f32.mrf.mxu0
    %v2113 = vpop.f32.mrf.mxu0
    %v2114 = vadd.f32 %v2062, %v2113
    %v2115 = vpop.f32.mrf.mxu0
    %2116 = vdwg.mxu0
    %v2117 = vpack.c.bf16 %v1982, %v1979
    %v2118 = vpack.c.bf16 %v2048, %v2045
    %v2120 = vsel %vm282, %v2117, 0
    %v2123 = vsel %vm282, %v2118, 0
    %2125 = vmatprep.subr.bf16.mxu0 0
    %2126 = vmatpush1.bf16.xpose.msra.mxu0 0
    %2127 = vmatprep.subr.bf16.mxu0 0
    %2128 = vmatpush1.bf16.xpose.msra.mxu0 0
    %2129 = vmatprep.subr.bf16.mxu0 0
    %2130 = vmatpush1.bf16.xpose.msra.mxu0 0
    %2131 = vmatprep.subr.bf16.mxu0 0
    %2132 = vmatpush1.bf16.xpose.msra.mxu0 0
    %2133 = vmatprep.subr.bf16.mxu0 0
    %2134 = vmatpush1.bf16.xpose.msra.mxu0 0
    %2135 = vmatprep.subr.bf16.mxu0 0
    %2136 = vmatpush1.bf16.xpose.msra.mxu0 0
    %2137 = vmatprep.subr.bf16.mxu0 0
    %2138 = vmatpush1.bf16.xpose.msra.mxu0 0
    %2139 = vmatprep.subr.bf16.mxu0 0
    %2140 = vmatpush1.bf16.xpose.msra.mxu0 %v2123
    %2141 = vmatprep.subr.bf16.mxu0 0
    %2142 = vmatpush2.bf16.xpose.msra.mxu0 0
    %2143 = vmatprep.subr.bf16.mxu0 0
    %2144 = vmatpush2.bf16.xpose.msra.mxu0 0
    %2145 = vmatprep.subr.bf16.mxu0 0
    %2146 = vmatpush2.bf16.xpose.msra.mxu0 0
    %2147 = vmatprep.subr.bf16.mxu0 0
    %2148 = vmatpush2.bf16.xpose.msra.mxu0 0
    %2149 = vmatprep.subr.bf16.mxu0 0
    %2150 = vmatpush2.bf16.xpose.msra.mxu0 0
    %2151 = vmatprep.subr.bf16.mxu0 0
    %2152 = vmatpush2.bf16.xpose.msra.mxu0 0
    %2153 = vmatprep.subr.bf16.mxu0 0
    %2154 = vmatpush2.bf16.xpose.msra.mxu0 0
    %2155 = vmatprep.subr.bf16.mxu0 0
    %2156 = vmatpush2.bf16.xpose.msra.mxu0 0
    %2157 = vmatprep.mubr.bf16.mxu0 0
    %2158 = vmatmul.mubr.bf16.gmra.mxu0 %v2120
    %v2159 = vpop.f32.mrf.mxu0
    %v2160 = vadd.f32 %v81, %v2159
    %v2161 = vpop.f32.mrf.mxu0
    %v2162 = vpop.f32.mrf.mxu0
    %v2163 = vadd.f32 %v82, %v2162
    %v2164 = vpop.f32.mrf.mxu0
    %2165 = vdwg.mxu0
    %v2166 = vsel %vm330, %v2160, -inf
    %2167 = vmax.xlane.f32.xlu0 %v2166
    %v2168 = vpop.xlane.xlu0 %2167
    %v2169 = vsel %vm330, %v2163, -inf
    %2170 = vmax.xlane.f32.xlu0 %v2169
    %v2171 = vpop.xlane.xlu0 %2170
    %v2172 = vsub.f32 %v2160, %v2168
    %v2173 = vsub.f32 %v2163, %v2171
    %v2174 = vmul.f32 %v2172, 1.442695
    %v2175 = vpow.pop %v2174
    %v2176 = vmul.f32 %v2173, 1.442695
    %v2177 = vpow.pop %v2176
    %v2178 = vsel %vm330, %v2175, 0.0
    %2179 = vadd.xlane.f32.xlu0 %v2178
    %v2180 = vpop.xlane.xlu0 %2179
    %v2181 = vsel %vm330, %v2177, 0.0
    %2182 = vadd.xlane.f32.xlu0 %v2181
    %v2183 = vpop.xlane.xlu0 %2182
    %v2184 = vrcp.pop %v2180
    %v2185 = vrcp.pop %v2183
    %v2186 = vmul.f32 %v2175, %v2184
    %v2187 = vmul.f32 %v2177, %v2185
    %v2188 = vpack.c.bf16 %v2187, %v2186
    %v2189 = vpack.c.bf16 %v2114, %v2111
    %v2191 = vsel %vm330, %v2188, 0
    %2193 = vmatprep.subr.bf16.mxu0 0
    %2194 = vmatpush1.bf16.msra.mxu0 0
    %2195 = vmatprep.subr.bf16.mxu0 0
    %2196 = vmatpush1.bf16.msra.mxu0 0
    %2197 = vmatprep.subr.bf16.mxu0 0
    %2198 = vmatpush1.bf16.msra.mxu0 0
    %2199 = vmatprep.subr.bf16.mxu0 0
    %2200 = vmatpush1.bf16.msra.mxu0 0
    %2201 = vmatprep.subr.bf16.mxu0 0
    %2202 = vmatpush1.bf16.msra.mxu0 0
    %2203 = vmatprep.subr.bf16.mxu0 0
    %2204 = vmatpush1.bf16.msra.mxu0 0
    %2205 = vmatprep.subr.bf16.mxu0 0
    %2206 = vmatpush1.bf16.msra.mxu0 0
    %2207 = vmatprep.subr.bf16.mxu0 0
    %2208 = vmatpush1.bf16.msra.mxu0 %v2189
    %2209 = vmatprep.subr.bf16.mxu0 0
    %2210 = vmatpush2.bf16.msra.mxu0 0
    %2211 = vmatprep.subr.bf16.mxu0 0
    %2212 = vmatpush2.bf16.msra.mxu0 0
    %2213 = vmatprep.subr.bf16.mxu0 0
    %2214 = vmatpush2.bf16.msra.mxu0 0
    %2215 = vmatprep.subr.bf16.mxu0 0
    %2216 = vmatpush2.bf16.msra.mxu0 0
    %2217 = vmatprep.subr.bf16.mxu0 0
    %2218 = vmatpush2.bf16.msra.mxu0 0
    %2219 = vmatprep.subr.bf16.mxu0 0
    %2220 = vmatpush2.bf16.msra.mxu0 0
    %2221 = vmatprep.subr.bf16.mxu0 0
    %2222 = vmatpush2.bf16.msra.mxu0 0
    %2223 = vmatprep.subr.bf16.mxu0 0
    %2224 = vmatpush2.bf16.msra.mxu0 0
    %2225 = vmatprep.mubr.bf16.mxu0 0
    %2226 = vmatmul.mubr.bf16.gmra.mxu0 %v2191
    %v2227 = vpop.f32.mrf.mxu0
    %v2228 = vadd.f32 0.0, %v2227
    %v2229 = vpop.f32.mrf.mxu0
    %v2230 = vpop.f32.mrf.mxu0
    %v2231 = vadd.f32 0.0, %v2230
    %v2232 = vpop.f32.mrf.mxu0
    %2233 = vdwg.mxu0
    %v2234 = vpack.c.bf16 %v2231, %v2228
    %s2235 = scalar_lea.vmem %s18, 4
    %v2236 = vld [vmem:[%s2235] sm:$0xf]
    %v2238 = vsel %vm282, %v2234, 0
    %v2241 = vsel %vm722, %v2236, 0
    %2243 = vmatprep.subr.bf16.mxu0 0
    %2244 = vmatpush1.bf16.msra.mxu0 0
    %2245 = vmatprep.subr.bf16.mxu0 0
    %2246 = vmatpush1.bf16.msra.mxu0 0
    %2247 = vmatprep.subr.bf16.mxu0 0
    %2248 = vmatpush1.bf16.msra.mxu0 0
    %2249 = vmatprep.subr.bf16.mxu0 0
    %2250 = vmatpush1.bf16.msra.mxu0 0
    %2251 = vmatprep.subr.bf16.mxu0 0
    %2252 = vmatpush1.bf16.msra.mxu0 0
    %2253 = vmatprep.subr.bf16.mxu0 0
    %2254 = vmatpush1.bf16.msra.mxu0 0
    %2255 = vmatprep.subr.bf16.mxu0 0
    %2256 = vmatpush1.bf16.msra.mxu0 0
    %2257 = vmatprep.subr.bf16.mxu0 0
    %2258 = vmatpush1.bf16.msra.mxu0 %v2241
    %2259 = vmatprep.subr.bf16.mxu0 0
    %2260 = vmatpush2.bf16.msra.mxu0 0
    %2261 = vmatprep.subr.bf16.mxu0 0
    %2262 = vmatpush2.bf16.msra.mxu0 0
    %2263 = vmatprep.subr.bf16.mxu0 0
    %2264 = vmatpush2.bf16.msra.mxu0 0
    %2265 = vmatprep.subr.bf16.mxu0 0
    %2266 = vmatpush2.bf16.msra.mxu0 0
    %2267 = vmatprep.subr.bf16.mxu0 0
    %2268 = vmatpush2.bf16.msra.mxu0 0
    %2269 = vmatprep.subr.bf16.mxu0 0
    %2270 = vmatpush2.bf16.msra.mxu0 0
    %2271 = vmatprep.subr.bf16.mxu0 0
    %2272 = vmatpush2.bf16.msra.mxu0 0
    %2273 = vmatprep.subr.bf16.mxu0 0
    %2274 = vmatpush2.bf16.msra.mxu0 0
    %2275 = vmatprep.mubr.bf16.mxu0 0
    %2276 = vmatmul.mubr.bf16.gmra.mxu0 %v2238
    %v2277 = vpop.f32.mrf.mxu0
    %v2278 = vadd.f32 0.0, %v2277
    %v2279 = vpop.f32.mrf.mxu0
    %v2280 = vpop.f32.mrf.mxu0
    %v2281 = vadd.f32 0.0, %v2280
    %v2282 = vpop.f32.mrf.mxu0
    %2283 = vdwg.mxu0
    %v2285 = vsel %vm282, %v1917, 0
    %v2288 = vsel %vm722, %v1918, 0
    %2290 = vmatprep.subr.bf16.mxu0 0
    %2291 = vmatpush1.bf16.msra.mxu0 0
    %2292 = vmatprep.subr.bf16.mxu0 0
    %2293 = vmatpush1.bf16.msra.mxu0 0
    %2294 = vmatprep.subr.bf16.mxu0 0
    %2295 = vmatpush1.bf16.msra.mxu0 0
    %2296 = vmatprep.subr.bf16.mxu0 0
    %2297 = vmatpush1.bf16.msra.mxu0 0
    %2298 = vmatprep.subr.bf16.mxu0 0
    %2299 = vmatpush1.bf16.msra.mxu0 0
    %2300 = vmatprep.subr.bf16.mxu0 0
    %2301 = vmatpush1.bf16.msra.mxu0 0
    %2302 = vmatprep.subr.bf16.mxu0 0
    %2303 = vmatpush1.bf16.msra.mxu0 0
    %2304 = vmatprep.subr.bf16.mxu0 0
    %2305 = vmatpush1.bf16.msra.mxu0 %v2288
    %2306 = vmatprep.subr.bf16.mxu0 0
    %2307 = vmatpush2.bf16.msra.mxu0 0
    %2308 = vmatprep.subr.bf16.mxu0 0
    %2309 = vmatpush2.bf16.msra.mxu0 0
    %2310 = vmatprep.subr.bf16.mxu0 0
    %2311 = vmatpush2.bf16.msra.mxu0 0
    %2312 = vmatprep.subr.bf16.mxu0 0
    %2313 = vmatpush2.bf16.msra.mxu0 0
    %2314 = vmatprep.subr.bf16.mxu0 0
    %2315 = vmatpush2.bf16.msra.mxu0 0
    %2316 = vmatprep.subr.bf16.mxu0 0
    %2317 = vmatpush2.bf16.msra.mxu0 0
    %2318 = vmatprep.subr.bf16.mxu0 0
    %2319 = vmatpush2.bf16.msra.mxu0 0
    %2320 = vmatprep.subr.bf16.mxu0 0
    %2321 = vmatpush2.bf16.msra.mxu0 0
    %2322 = vmatprep.mubr.bf16.mxu0 0
    %2323 = vmatmul.mubr.bf16.gmra.mxu0 %v2285
    %v2324 = vpop.f32.mrf.mxu0
    %v2325 = vadd.f32 %v2278, %v2324
    %v2326 = vpop.f32.mrf.mxu0
    %v2327 = vpop.f32.mrf.mxu0
    %v2328 = vadd.f32 %v2281, %v2327
    %v2329 = vpop.f32.mrf.mxu0
    %2330 = vdwg.mxu0
    %s2331 = scalar_lea.vmem %s12, 32
    %v2332 = vld [vmem:[%s2331] sm:$0xf]
    %v2333 = vld [vmem:[%s2331 + $0x4] sm:$0xf]
    %v2334 = vld [vmem:[%s2331 + $0x8] sm:$0xf]
    %v2335 = vld [vmem:[%s2331 + $0xc] sm:$0xf]
    %s2336 = scalar_lea.vmem %s13, 2
    %v2337 = vld [vmem:[%s2336] sm:$0x1]
    %v2339 = vlaneseq
    %v2340 = vshrl.u32 %v2339, 7
    %v2341 = vsub.s32 0, %v2340
    %v2342 = vrot.slane %v2337, %v2341
    %v2348 = vunpack.c.l.b16 %v2332
    %v2349 = vunpack.c.l.b16 %v2333
    %v2350 = vunpack.c.l.b16 %v2334
    %v2351 = vunpack.c.l.b16 %v2335
    %v2352 = vpack.c.b16 %v2349, %v2348
    %v2353 = vpack.c.b16 %v2351, %v2350
    %2356 = vmatprep.subr.bf16.mxu0 0
    %2357 = vmatpush1.bf16.msra.mxu0 0
    %2358 = vmatprep.subr.bf16.mxu0 0
    %2359 = vmatpush1.bf16.msra.mxu0 0
    %2360 = vmatprep.subr.bf16.mxu0 0
    %2361 = vmatpush1.bf16.msra.mxu0 0
    %2362 = vmatprep.subr.bf16.mxu0 0
    %2363 = vmatpush1.bf16.msra.mxu0 0
    %2364 = vmatprep.subr.bf16.mxu0 0
    %2365 = vmatpush1.bf16.msra.mxu0 0
    %2366 = vmatprep.subr.bf16.mxu0 0
    %2367 = vmatpush1.bf16.msra.mxu0 0
    %2368 = vmatprep.subr.bf16.mxu0 0
    %2369 = vmatpush1.bf16.msra.mxu0 %v2353
    %2370 = vmatprep.subr.bf16.mxu0 0
    %2371 = vmatpush1.bf16.msra.mxu0 %v2352
    %2372 = vmatprep.subr.bf16.mxu0 0
    %2373 = vmatpush2.bf16.msra.mxu0 0
    %2374 = vmatprep.subr.bf16.mxu0 0
    %2375 = vmatpush2.bf16.msra.mxu0 0
    %2376 = vmatprep.subr.bf16.mxu0 0
    %2377 = vmatpush2.bf16.msra.mxu0 0
    %2378 = vmatprep.subr.bf16.mxu0 0
    %2379 = vmatpush2.bf16.msra.mxu0 0
    %2380 = vmatprep.subr.bf16.mxu0 0
    %2381 = vmatpush2.bf16.msra.mxu0 0
    %2382 = vmatprep.subr.bf16.mxu0 0
    %2383 = vmatpush2.bf16.msra.mxu0 0
    %2384 = vmatprep.subr.bf16.mxu0 0
    %2385 = vmatpush2.bf16.msra.mxu0 0
    %2386 = vmatprep.subr.bf16.mxu0 0
    %2387 = vmatpush2.bf16.msra.mxu0 0
    %2388 = vmatprep.mubr.bf16.mxu0 0
    %2389 = vmatmul.mubr.bf16.gmra.mxu0 %v1629
    %v2390 = vpop.f32.mrf.mxu0
    %v2391 = vadd.f32 %v2342, %v2390
    %v2392 = vpop.f32.mrf.mxu0
    %v2393 = vpop.f32.mrf.mxu0
    %v2394 = vadd.f32 %v2342, %v2393
    %v2395 = vpop.f32.mrf.mxu0
    %2396 = vdwg.mxu0
    %s2397 = scalar_lea.vmem %s14, 32
    %v2398 = vld [vmem:[%s2397] sm:$0xf]
    %v2399 = vld [vmem:[%s2397 + $0x4] sm:$0xf]
    %v2400 = vld [vmem:[%s2397 + $0x8] sm:$0xf]
    %v2401 = vld [vmem:[%s2397 + $0xc] sm:$0xf]
    %s2402 = scalar_lea.vmem %s15, 2
    %v2403 = vld [vmem:[%s2402] sm:$0x1]
    %v2405 = vlaneseq
    %v2406 = vshrl.u32 %v2405, 7
    %v2407 = vsub.s32 0, %v2406
    %v2408 = vrot.slane %v2403, %v2407
    %v2414 = vunpack.c.l.b16 %v2398
    %v2415 = vunpack.c.l.b16 %v2399
    %v2416 = vunpack.c.l.b16 %v2400
    %v2417 = vunpack.c.l.b16 %v2401
    %v2418 = vpack.c.b16 %v2415, %v2414
    %v2419 = vpack.c.b16 %v2417, %v2416
    %2422 = vmatprep.subr.bf16.mxu0 0
    %2423 = vmatpush1.bf16.msra.mxu0 0
    %2424 = vmatprep.subr.bf16.mxu0 0
    %2425 = vmatpush1.bf16.msra.mxu0 0
    %2426 = vmatprep.subr.bf16.mxu0 0
    %2427 = vmatpush1.bf16.msra.mxu0 0
    %2428 = vmatprep.subr.bf16.mxu0 0
    %2429 = vmatpush1.bf16.msra.mxu0 0
    %2430 = vmatprep.subr.bf16.mxu0 0
    %2431 = vmatpush1.bf16.msra.mxu0 0
    %2432 = vmatprep.subr.bf16.mxu0 0
    %2433 = vmatpush1.bf16.msra.mxu0 0
    %2434 = vmatprep.subr.bf16.mxu0 0
    %2435 = vmatpush1.bf16.msra.mxu0 %v2419
    %2436 = vmatprep.subr.bf16.mxu0 0
    %2437 = vmatpush1.bf16.msra.mxu0 %v2418
    %2438 = vmatprep.subr.bf16.mxu0 0
    %2439 = vmatpush2.bf16.msra.mxu0 0
    %2440 = vmatprep.subr.bf16.mxu0 0
    %2441 = vmatpush2.bf16.msra.mxu0 0
    %2442 = vmatprep.subr.bf16.mxu0 0
    %2443 = vmatpush2.bf16.msra.mxu0 0
    %2444 = vmatprep.subr.bf16.mxu0 0
    %2445 = vmatpush2.bf16.msra.mxu0 0
    %2446 = vmatprep.subr.bf16.mxu0 0
    %2447 = vmatpush2.bf16.msra.mxu0 0
    %2448 = vmatprep.subr.bf16.mxu0 0
    %2449 = vmatpush2.bf16.msra.mxu0 0
    %2450 = vmatprep.subr.bf16.mxu0 0
    %2451 = vmatpush2.bf16.msra.mxu0 0
    %2452 = vmatprep.subr.bf16.mxu0 0
    %2453 = vmatpush2.bf16.msra.mxu0 0
    %2454 = vmatprep.mubr.bf16.mxu0 0
    %2455 = vmatmul.mubr.bf16.gmra.mxu0 %v1629
    %v2456 = vpop.f32.mrf.mxu0
    %v2457 = vadd.f32 %v2408, %v2456
    %v2458 = vpop.f32.mrf.mxu0
    %v2459 = vpop.f32.mrf.mxu0
    %v2460 = vadd.f32 %v2408, %v2459
    %v2461 = vpop.f32.mrf.mxu0
    %2462 = vdwg.mxu0
    %s2463 = scalar_lea.vmem %s16, 32
    %v2464 = vld [vmem:[%s2463] sm:$0xf]
    %v2465 = vld [vmem:[%s2463 + $0x4] sm:$0xf]
    %v2466 = vld [vmem:[%s2463 + $0x8] sm:$0xf]
    %v2467 = vld [vmem:[%s2463 + $0xc] sm:$0xf]
    %s2468 = scalar_lea.vmem %s17, 2
    %v2469 = vld [vmem:[%s2468] sm:$0x1]
    %v2471 = vlaneseq
    %v2472 = vshrl.u32 %v2471, 7
    %v2473 = vsub.s32 0, %v2472
    %v2474 = vrot.slane %v2469, %v2473
    %v2480 = vunpack.c.l.b16 %v2464
    %v2481 = vunpack.c.l.b16 %v2465
    %v2482 = vunpack.c.l.b16 %v2466
    %v2483 = vunpack.c.l.b16 %v2467
    %v2484 = vpack.c.b16 %v2481, %v2480
    %v2485 = vpack.c.b16 %v2483, %v2482
    %2488 = vmatprep.subr.bf16.mxu0 0
    %2489 = vmatpush1.bf16.msra.mxu0 0
    %2490 = vmatprep.subr.bf16.mxu0 0
    %2491 = vmatpush1.bf16.msra.mxu0 0
    %2492 = vmatprep.subr.bf16.mxu0 0
    %2493 = vmatpush1.bf16.msra.mxu0 0
    %2494 = vmatprep.subr.bf16.mxu0 0
    %2495 = vmatpush1.bf16.msra.mxu0 0
    %2496 = vmatprep.subr.bf16.mxu0 0
    %2497 = vmatpush1.bf16.msra.mxu0 0
    %2498 = vmatprep.subr.bf16.mxu0 0
    %2499 = vmatpush1.bf16.msra.mxu0 0
    %2500 = vmatprep.subr.bf16.mxu0 0
    %2501 = vmatpush1.bf16.msra.mxu0 %v2485
    %2502 = vmatprep.subr.bf16.mxu0 0
    %2503 = vmatpush1.bf16.msra.mxu0 %v2484
    %2504 = vmatprep.subr.bf16.mxu0 0
    %2505 = vmatpush2.bf16.msra.mxu0 0
    %2506 = vmatprep.subr.bf16.mxu0 0
    %2507 = vmatpush2.bf16.msra.mxu0 0
    %2508 = vmatprep.subr.bf16.mxu0 0
    %2509 = vmatpush2.bf16.msra.mxu0 0
    %2510 = vmatprep.subr.bf16.mxu0 0
    %2511 = vmatpush2.bf16.msra.mxu0 0
    %2512 = vmatprep.subr.bf16.mxu0 0
    %2513 = vmatpush2.bf16.msra.mxu0 0
    %2514 = vmatprep.subr.bf16.mxu0 0
    %2515 = vmatpush2.bf16.msra.mxu0 0
    %2516 = vmatprep.subr.bf16.mxu0 0
    %2517 = vmatpush2.bf16.msra.mxu0 0
    %2518 = vmatprep.subr.bf16.mxu0 0
    %2519 = vmatpush2.bf16.msra.mxu0 0
    %2520 = vmatprep.mubr.bf16.mxu0 0
    %2521 = vmatmul.mubr.bf16.gmra.mxu0 %v1629
    %v2522 = vpop.f32.mrf.mxu0
    %v2523 = vadd.f32 %v2474, %v2522
    %v2524 = vpop.f32.mrf.mxu0
    %v2525 = vpop.f32.mrf.mxu0
    %v2526 = vadd.f32 %v2474, %v2525
    %v2527 = vpop.f32.mrf.mxu0
    %2528 = vdwg.mxu0
    %v2529 = vpack.c.bf16 %v2394, %v2391
    %v2530 = vpack.c.bf16 %v2460, %v2457
    %v2532 = vsel %vm282, %v2529, 0
    %v2535 = vsel %vm282, %v2530, 0
    %2537 = vmatprep.subr.bf16.mxu0 0
    %2538 = vmatpush1.bf16.xpose.msra.mxu0 0
    %2539 = vmatprep.subr.bf16.mxu0 0
    %2540 = vmatpush1.bf16.xpose.msra.mxu0 0
    %2541 = vmatprep.subr.bf16.mxu0 0
    %2542 = vmatpush1.bf16.xpose.msra.mxu0 0
    %2543 = vmatprep.subr.bf16.mxu0 0
    %2544 = vmatpush1.bf16.xpose.msra.mxu0 0
    %2545 = vmatprep.subr.bf16.mxu0 0
    %2546 = vmatpush1.bf16.xpose.msra.mxu0 0
    %2547 = vmatprep.subr.bf16.mxu0 0
    %2548 = vmatpush1.bf16.xpose.msra.mxu0 0
    %2549 = vmatprep.subr.bf16.mxu0 0
    %2550 = vmatpush1.bf16.xpose.msra.mxu0 0
    %2551 = vmatprep.subr.bf16.mxu0 0
    %2552 = vmatpush1.bf16.xpose.msra.mxu0 %v2535
    %2553 = vmatprep.subr.bf16.mxu0 0
    %2554 = vmatpush2.bf16.xpose.msra.mxu0 0
    %2555 = vmatprep.subr.bf16.mxu0 0
    %2556 = vmatpush2.bf16.xpose.msra.mxu0 0
    %2557 = vmatprep.subr.bf16.mxu0 0
    %2558 = vmatpush2.bf16.xpose.msra.mxu0 0
    %2559 = vmatprep.subr.bf16.mxu0 0
    %2560 = vmatpush2.bf16.xpose.msra.mxu0 0
    %2561 = vmatprep.subr.bf16.mxu0 0
    %2562 = vmatpush2.bf16.xpose.msra.mxu0 0
    %2563 = vmatprep.subr.bf16.mxu0 0
    %2564 = vmatpush2.bf16.xpose.msra.mxu0 0
    %2565 = vmatprep.subr.bf16.mxu0 0
    %2566 = vmatpush2.bf16.xpose.msra.mxu0 0
    %2567 = vmatprep.subr.bf16.mxu0 0
    %2568 = vmatpush2.bf16.xpose.msra.mxu0 0
    %2569 = vmatprep.mubr.bf16.mxu0 0
    %2570 = vmatmul.mubr.bf16.gmra.mxu0 %v2532
    %v2571 = vpop.f32.mrf.mxu0
    %v2572 = vadd.f32 %v81, %v2571
    %v2573 = vpop.f32.mrf.mxu0
    %v2574 = vpop.f32.mrf.mxu0
    %v2575 = vadd.f32 %v82, %v2574
    %v2576 = vpop.f32.mrf.mxu0
    %2577 = vdwg.mxu0
    %v2578 = vsel %vm330, %v2572, -inf
    %2579 = vmax.xlane.f32.xlu0 %v2578
    %v2580 = vpop.xlane.xlu0 %2579
    %v2581 = vsel %vm330, %v2575, -inf
    %2582 = vmax.xlane.f32.xlu0 %v2581
    %v2583 = vpop.xlane.xlu0 %2582
    %v2584 = vsub.f32 %v2572, %v2580
    %v2585 = vsub.f32 %v2575, %v2583
    %v2586 = vmul.f32 %v2584, 1.442695
    %v2587 = vpow.pop %v2586
    %v2588 = vmul.f32 %v2585, 1.442695
    %v2589 = vpow.pop %v2588
    %v2590 = vsel %vm330, %v2587, 0.0
    %2591 = vadd.xlane.f32.xlu0 %v2590
    %v2592 = vpop.xlane.xlu0 %2591
    %v2593 = vsel %vm330, %v2589, 0.0
    %2594 = vadd.xlane.f32.xlu0 %v2593
    %v2595 = vpop.xlane.xlu0 %2594
    %v2596 = vrcp.pop %v2592
    %v2597 = vrcp.pop %v2595
    %v2598 = vmul.f32 %v2587, %v2596
    %v2599 = vmul.f32 %v2589, %v2597
    %v2600 = vpack.c.bf16 %v2599, %v2598
    %v2601 = vpack.c.bf16 %v2526, %v2523
    %v2603 = vsel %vm330, %v2600, 0
    %2605 = vmatprep.subr.bf16.mxu0 0
    %2606 = vmatpush1.bf16.msra.mxu0 0
    %2607 = vmatprep.subr.bf16.mxu0 0
    %2608 = vmatpush1.bf16.msra.mxu0 0
    %2609 = vmatprep.subr.bf16.mxu0 0
    %2610 = vmatpush1.bf16.msra.mxu0 0
    %2611 = vmatprep.subr.bf16.mxu0 0
    %2612 = vmatpush1.bf16.msra.mxu0 0
    %2613 = vmatprep.subr.bf16.mxu0 0
    %2614 = vmatpush1.bf16.msra.mxu0 0
    %2615 = vmatprep.subr.bf16.mxu0 0
    %2616 = vmatpush1.bf16.msra.mxu0 0
    %2617 = vmatprep.subr.bf16.mxu0 0
    %2618 = vmatpush1.bf16.msra.mxu0 0
    %2619 = vmatprep.subr.bf16.mxu0 0
    %2620 = vmatpush1.bf16.msra.mxu0 %v2601
    %2621 = vmatprep.subr.bf16.mxu0 0
    %2622 = vmatpush2.bf16.msra.mxu0 0
    %2623 = vmatprep.subr.bf16.mxu0 0
    %2624 = vmatpush2.bf16.msra.mxu0 0
    %2625 = vmatprep.subr.bf16.mxu0 0
    %2626 = vmatpush2.bf16.msra.mxu0 0
    %2627 = vmatprep.subr.bf16.mxu0 0
    %2628 = vmatpush2.bf16.msra.mxu0 0
    %2629 = vmatprep.subr.bf16.mxu0 0
    %2630 = vmatpush2.bf16.msra.mxu0 0
    %2631 = vmatprep.subr.bf16.mxu0 0
    %2632 = vmatpush2.bf16.msra.mxu0 0
    %2633 = vmatprep.subr.bf16.mxu0 0
    %2634 = vmatpush2.bf16.msra.mxu0 0
    %2635 = vmatprep.subr.bf16.mxu0 0
    %2636 = vmatpush2.bf16.msra.mxu0 0
    %2637 = vmatprep.mubr.bf16.mxu0 0
    %2638 = vmatmul.mubr.bf16.gmra.mxu0 %v2603
    %v2639 = vpop.f32.mrf.mxu0
    %v2640 = vadd.f32 0.0, %v2639
    %v2641 = vpop.f32.mrf.mxu0
    %v2642 = vpop.f32.mrf.mxu0
    %v2643 = vadd.f32 0.0, %v2642
    %v2644 = vpop.f32.mrf.mxu0
    %2645 = vdwg.mxu0
    %v2646 = vpack.c.bf16 %v2643, %v2640
    %s2647 = scalar_lea.vmem %s18, 8
    %v2648 = vld [vmem:[%s2647] sm:$0xf]
    %v2650 = vsel %vm282, %v2646, 0
    %v2653 = vsel %vm722, %v2648, 0
    %2655 = vmatprep.subr.bf16.mxu0 0
    %2656 = vmatpush1.bf16.msra.mxu0 0
    %2657 = vmatprep.subr.bf16.mxu0 0
    %2658 = vmatpush1.bf16.msra.mxu0 0
    %2659 = vmatprep.subr.bf16.mxu0 0
    %2660 = vmatpush1.bf16.msra.mxu0 0
    %2661 = vmatprep.subr.bf16.mxu0 0
    %2662 = vmatpush1.bf16.msra.mxu0 0
    %2663 = vmatprep.subr.bf16.mxu0 0
    %2664 = vmatpush1.bf16.msra.mxu0 0
    %2665 = vmatprep.subr.bf16.mxu0 0
    %2666 = vmatpush1.bf16.msra.mxu0 0
    %2667 = vmatprep.subr.bf16.mxu0 0
    %2668 = vmatpush1.bf16.msra.mxu0 0
    %2669 = vmatprep.subr.bf16.mxu0 0
    %2670 = vmatpush1.bf16.msra.mxu0 %v2653
    %2671 = vmatprep.subr.bf16.mxu0 0
    %2672 = vmatpush2.bf16.msra.mxu0 0
    %2673 = vmatprep.subr.bf16.mxu0 0
    %2674 = vmatpush2.bf16.msra.mxu0 0
    %2675 = vmatprep.subr.bf16.mxu0 0
    %2676 = vmatpush2.bf16.msra.mxu0 0
    %2677 = vmatprep.subr.bf16.mxu0 0
    %2678 = vmatpush2.bf16.msra.mxu0 0
    %2679 = vmatprep.subr.bf16.mxu0 0
    %2680 = vmatpush2.bf16.msra.mxu0 0
    %2681 = vmatprep.subr.bf16.mxu0 0
    %2682 = vmatpush2.bf16.msra.mxu0 0
    %2683 = vmatprep.subr.bf16.mxu0 0
    %2684 = vmatpush2.bf16.msra.mxu0 0
    %2685 = vmatprep.subr.bf16.mxu0 0
    %2686 = vmatpush2.bf16.msra.mxu0 0
    %2687 = vmatprep.mubr.bf16.mxu0 0
    %2688 = vmatmul.mubr.bf16.gmra.mxu0 %v2650
    %v2689 = vpop.f32.mrf.mxu0
    %v2690 = vadd.f32 0.0, %v2689
    %v2691 = vpop.f32.mrf.mxu0
    %v2692 = vpop.f32.mrf.mxu0
    %v2693 = vadd.f32 0.0, %v2692
    %v2694 = vpop.f32.mrf.mxu0
    %2695 = vdwg.mxu0
    %v2696 = vadd.f32 %v2325, %v2690
    %v2697 = vadd.f32 %v2328, %v2693
    %s2698 = scalar_lea.vmem %s12, 48
    %v2699 = vld [vmem:[%s2698] sm:$0xf]
    %v2700 = vld [vmem:[%s2698 + $0x4] sm:$0xf]
    %v2701 = vld [vmem:[%s2698 + $0x8] sm:$0xf]
    %v2702 = vld [vmem:[%s2698 + $0xc] sm:$0xf]
    %s2703 = scalar_lea.vmem %s13, 3
    %v2704 = vld [vmem:[%s2703] sm:$0x1]
    %v2706 = vlaneseq
    %v2707 = vshrl.u32 %v2706, 7
    %v2708 = vsub.s32 0, %v2707
    %v2709 = vrot.slane %v2704, %v2708
    %v2715 = vunpack.c.l.b16 %v2699
    %v2716 = vunpack.c.l.b16 %v2700
    %v2717 = vunpack.c.l.b16 %v2701
    %v2718 = vunpack.c.l.b16 %v2702
    %v2719 = vpack.c.b16 %v2716, %v2715
    %v2720 = vpack.c.b16 %v2718, %v2717
    %2723 = vmatprep.subr.bf16.mxu0 0
    %2724 = vmatpush1.bf16.msra.mxu0 0
    %2725 = vmatprep.subr.bf16.mxu0 0
    %2726 = vmatpush1.bf16.msra.mxu0 0
    %2727 = vmatprep.subr.bf16.mxu0 0
    %2728 = vmatpush1.bf16.msra.mxu0 0
    %2729 = vmatprep.subr.bf16.mxu0 0
    %2730 = vmatpush1.bf16.msra.mxu0 0
    %2731 = vmatprep.subr.bf16.mxu0 0
    %2732 = vmatpush1.bf16.msra.mxu0 0
    %2733 = vmatprep.subr.bf16.mxu0 0
    %2734 = vmatpush1.bf16.msra.mxu0 0
    %2735 = vmatprep.subr.bf16.mxu0 0
    %2736 = vmatpush1.bf16.msra.mxu0 %v2720
    %2737 = vmatprep.subr.bf16.mxu0 0
    %2738 = vmatpush1.bf16.msra.mxu0 %v2719
    %2739 = vmatprep.subr.bf16.mxu0 0
    %2740 = vmatpush2.bf16.msra.mxu0 0
    %2741 = vmatprep.subr.bf16.mxu0 0
    %2742 = vmatpush2.bf16.msra.mxu0 0
    %2743 = vmatprep.subr.bf16.mxu0 0
    %2744 = vmatpush2.bf16.msra.mxu0 0
    %2745 = vmatprep.subr.bf16.mxu0 0
    %2746 = vmatpush2.bf16.msra.mxu0 0
    %2747 = vmatprep.subr.bf16.mxu0 0
    %2748 = vmatpush2.bf16.msra.mxu0 0
    %2749 = vmatprep.subr.bf16.mxu0 0
    %2750 = vmatpush2.bf16.msra.mxu0 0
    %2751 = vmatprep.subr.bf16.mxu0 0
    %2752 = vmatpush2.bf16.msra.mxu0 0
    %2753 = vmatprep.subr.bf16.mxu0 0
    %2754 = vmatpush2.bf16.msra.mxu0 0
    %2755 = vmatprep.mubr.bf16.mxu0 0
    %2756 = vmatmul.mubr.bf16.gmra.mxu0 %v1629
    %v2757 = vpop.f32.mrf.mxu0
    %v2758 = vadd.f32 %v2709, %v2757
    %v2759 = vpop.f32.mrf.mxu0
    %v2760 = vpop.f32.mrf.mxu0
    %v2761 = vadd.f32 %v2709, %v2760
    %v2762 = vpop.f32.mrf.mxu0
    %2763 = vdwg.mxu0
    %s2764 = scalar_lea.vmem %s14, 48
    %v2765 = vld [vmem:[%s2764] sm:$0xf]
    %v2766 = vld [vmem:[%s2764 + $0x4] sm:$0xf]
    %v2767 = vld [vmem:[%s2764 + $0x8] sm:$0xf]
    %v2768 = vld [vmem:[%s2764 + $0xc] sm:$0xf]
    %s2769 = scalar_lea.vmem %s15, 3
    %v2770 = vld [vmem:[%s2769] sm:$0x1]
    %v2772 = vlaneseq
    %v2773 = vshrl.u32 %v2772, 7
    %v2774 = vsub.s32 0, %v2773
    %v2775 = vrot.slane %v2770, %v2774
    %v2781 = vunpack.c.l.b16 %v2765
    %v2782 = vunpack.c.l.b16 %v2766
    %v2783 = vunpack.c.l.b16 %v2767
    %v2784 = vunpack.c.l.b16 %v2768
    %v2785 = vpack.c.b16 %v2782, %v2781
    %v2786 = vpack.c.b16 %v2784, %v2783
    %2789 = vmatprep.subr.bf16.mxu0 0
    %2790 = vmatpush1.bf16.msra.mxu0 0
    %2791 = vmatprep.subr.bf16.mxu0 0
    %2792 = vmatpush1.bf16.msra.mxu0 0
    %2793 = vmatprep.subr.bf16.mxu0 0
    %2794 = vmatpush1.bf16.msra.mxu0 0
    %2795 = vmatprep.subr.bf16.mxu0 0
    %2796 = vmatpush1.bf16.msra.mxu0 0
    %2797 = vmatprep.subr.bf16.mxu0 0
    %2798 = vmatpush1.bf16.msra.mxu0 0
    %2799 = vmatprep.subr.bf16.mxu0 0
    %2800 = vmatpush1.bf16.msra.mxu0 0
    %2801 = vmatprep.subr.bf16.mxu0 0
    %2802 = vmatpush1.bf16.msra.mxu0 %v2786
    %2803 = vmatprep.subr.bf16.mxu0 0
    %2804 = vmatpush1.bf16.msra.mxu0 %v2785
    %2805 = vmatprep.subr.bf16.mxu0 0
    %2806 = vmatpush2.bf16.msra.mxu0 0
    %2807 = vmatprep.subr.bf16.mxu0 0
    %2808 = vmatpush2.bf16.msra.mxu0 0
    %2809 = vmatprep.subr.bf16.mxu0 0
    %2810 = vmatpush2.bf16.msra.mxu0 0
    %2811 = vmatprep.subr.bf16.mxu0 0
    %2812 = vmatpush2.bf16.msra.mxu0 0
    %2813 = vmatprep.subr.bf16.mxu0 0
    %2814 = vmatpush2.bf16.msra.mxu0 0
    %2815 = vmatprep.subr.bf16.mxu0 0
    %2816 = vmatpush2.bf16.msra.mxu0 0
    %2817 = vmatprep.subr.bf16.mxu0 0
    %2818 = vmatpush2.bf16.msra.mxu0 0
    %2819 = vmatprep.subr.bf16.mxu0 0
    %2820 = vmatpush2.bf16.msra.mxu0 0
    %2821 = vmatprep.mubr.bf16.mxu0 0
    %2822 = vmatmul.mubr.bf16.gmra.mxu0 %v1629
    %v2823 = vpop.f32.mrf.mxu0
    %v2824 = vadd.f32 %v2775, %v2823
    %v2825 = vpop.f32.mrf.mxu0
    %v2826 = vpop.f32.mrf.mxu0
    %v2827 = vadd.f32 %v2775, %v2826
    %v2828 = vpop.f32.mrf.mxu0
    %2829 = vdwg.mxu0
    %s2830 = scalar_lea.vmem %s16, 48
    %v2831 = vld [vmem:[%s2830] sm:$0xf]
    %v2832 = vld [vmem:[%s2830 + $0x4] sm:$0xf]
    %v2833 = vld [vmem:[%s2830 + $0x8] sm:$0xf]
    %v2834 = vld [vmem:[%s2830 + $0xc] sm:$0xf]
    %s2835 = scalar_lea.vmem %s17, 3
    %v2836 = vld [vmem:[%s2835] sm:$0x1]
    %v2838 = vlaneseq
    %v2839 = vshrl.u32 %v2838, 7
    %v2840 = vsub.s32 0, %v2839
    %v2841 = vrot.slane %v2836, %v2840
    %v2847 = vunpack.c.l.b16 %v2831
    %v2848 = vunpack.c.l.b16 %v2832
    %v2849 = vunpack.c.l.b16 %v2833
    %v2850 = vunpack.c.l.b16 %v2834
    %v2851 = vpack.c.b16 %v2848, %v2847
    %v2852 = vpack.c.b16 %v2850, %v2849
    %2855 = vmatprep.subr.bf16.mxu0 0
    %2856 = vmatpush1.bf16.msra.mxu0 0
    %2857 = vmatprep.subr.bf16.mxu0 0
    %2858 = vmatpush1.bf16.msra.mxu0 0
    %2859 = vmatprep.subr.bf16.mxu0 0
    %2860 = vmatpush1.bf16.msra.mxu0 0
    %2861 = vmatprep.subr.bf16.mxu0 0
    %2862 = vmatpush1.bf16.msra.mxu0 0
    %2863 = vmatprep.subr.bf16.mxu0 0
    %2864 = vmatpush1.bf16.msra.mxu0 0
    %2865 = vmatprep.subr.bf16.mxu0 0
    %2866 = vmatpush1.bf16.msra.mxu0 0
    %2867 = vmatprep.subr.bf16.mxu0 0
    %2868 = vmatpush1.bf16.msra.mxu0 %v2852
    %2869 = vmatprep.subr.bf16.mxu0 0
    %2870 = vmatpush1.bf16.msra.mxu0 %v2851
    %2871 = vmatprep.subr.bf16.mxu0 0
    %2872 = vmatpush2.bf16.msra.mxu0 0
    %2873 = vmatprep.subr.bf16.mxu0 0
    %2874 = vmatpush2.bf16.msra.mxu0 0
    %2875 = vmatprep.subr.bf16.mxu0 0
    %2876 = vmatpush2.bf16.msra.mxu0 0
    %2877 = vmatprep.subr.bf16.mxu0 0
    %2878 = vmatpush2.bf16.msra.mxu0 0
    %2879 = vmatprep.subr.bf16.mxu0 0
    %2880 = vmatpush2.bf16.msra.mxu0 0
    %2881 = vmatprep.subr.bf16.mxu0 0
    %2882 = vmatpush2.bf16.msra.mxu0 0
    %2883 = vmatprep.subr.bf16.mxu0 0
    %2884 = vmatpush2.bf16.msra.mxu0 0
    %2885 = vmatprep.subr.bf16.mxu0 0
    %2886 = vmatpush2.bf16.msra.mxu0 0
    %2887 = vmatprep.mubr.bf16.mxu0 0
    %2888 = vmatmul.mubr.bf16.gmra.mxu0 %v1629
    %v2889 = vpop.f32.mrf.mxu0
    %v2890 = vadd.f32 %v2841, %v2889
    %v2891 = vpop.f32.mrf.mxu0
    %v2892 = vpop.f32.mrf.mxu0
    %v2893 = vadd.f32 %v2841, %v2892
    %v2894 = vpop.f32.mrf.mxu0
    %2895 = vdwg.mxu0
    %v2896 = vpack.c.bf16 %v2761, %v2758
    %v2897 = vpack.c.bf16 %v2827, %v2824
    %v2899 = vsel %vm282, %v2896, 0
    %v2902 = vsel %vm282, %v2897, 0
    %2904 = vmatprep.subr.bf16.mxu0 0
    %2905 = vmatpush1.bf16.xpose.msra.mxu0 0
    %2906 = vmatprep.subr.bf16.mxu0 0
    %2907 = vmatpush1.bf16.xpose.msra.mxu0 0
    %2908 = vmatprep.subr.bf16.mxu0 0
    %2909 = vmatpush1.bf16.xpose.msra.mxu0 0
    %2910 = vmatprep.subr.bf16.mxu0 0
    %2911 = vmatpush1.bf16.xpose.msra.mxu0 0
    %2912 = vmatprep.subr.bf16.mxu0 0
    %2913 = vmatpush1.bf16.xpose.msra.mxu0 0
    %2914 = vmatprep.subr.bf16.mxu0 0
    %2915 = vmatpush1.bf16.xpose.msra.mxu0 0
    %2916 = vmatprep.subr.bf16.mxu0 0
    %2917 = vmatpush1.bf16.xpose.msra.mxu0 0
    %2918 = vmatprep.subr.bf16.mxu0 0
    %2919 = vmatpush1.bf16.xpose.msra.mxu0 %v2902
    %2920 = vmatprep.subr.bf16.mxu0 0
    %2921 = vmatpush2.bf16.xpose.msra.mxu0 0
    %2922 = vmatprep.subr.bf16.mxu0 0
    %2923 = vmatpush2.bf16.xpose.msra.mxu0 0
    %2924 = vmatprep.subr.bf16.mxu0 0
    %2925 = vmatpush2.bf16.xpose.msra.mxu0 0
    %2926 = vmatprep.subr.bf16.mxu0 0
    %2927 = vmatpush2.bf16.xpose.msra.mxu0 0
    %2928 = vmatprep.subr.bf16.mxu0 0
    %2929 = vmatpush2.bf16.xpose.msra.mxu0 0
    %2930 = vmatprep.subr.bf16.mxu0 0
    %2931 = vmatpush2.bf16.xpose.msra.mxu0 0
    %2932 = vmatprep.subr.bf16.mxu0 0
    %2933 = vmatpush2.bf16.xpose.msra.mxu0 0
    %2934 = vmatprep.subr.bf16.mxu0 0
    %2935 = vmatpush2.bf16.xpose.msra.mxu0 0
    %2936 = vmatprep.mubr.bf16.mxu0 0
    %2937 = vmatmul.mubr.bf16.gmra.mxu0 %v2899
    %v2938 = vpop.f32.mrf.mxu0
    %v2939 = vadd.f32 %v81, %v2938
    %v2940 = vpop.f32.mrf.mxu0
    %v2941 = vpop.f32.mrf.mxu0
    %v2942 = vadd.f32 %v82, %v2941
    %v2943 = vpop.f32.mrf.mxu0
    %2944 = vdwg.mxu0
    %v2945 = vsel %vm330, %v2939, -inf
    %2946 = vmax.xlane.f32.xlu0 %v2945
    %v2947 = vpop.xlane.xlu0 %2946
    %v2948 = vsel %vm330, %v2942, -inf
    %2949 = vmax.xlane.f32.xlu0 %v2948
    %v2950 = vpop.xlane.xlu0 %2949
    %v2951 = vsub.f32 %v2939, %v2947
    %v2952 = vsub.f32 %v2942, %v2950
    %v2953 = vmul.f32 %v2951, 1.442695
    %v2954 = vpow.pop %v2953
    %v2955 = vmul.f32 %v2952, 1.442695
    %v2956 = vpow.pop %v2955
    %v2957 = vsel %vm330, %v2954, 0.0
    %2958 = vadd.xlane.f32.xlu0 %v2957
    %v2959 = vpop.xlane.xlu0 %2958
    %v2960 = vsel %vm330, %v2956, 0.0
    %2961 = vadd.xlane.f32.xlu0 %v2960
    %v2962 = vpop.xlane.xlu0 %2961
    %v2963 = vrcp.pop %v2959
    %v2964 = vrcp.pop %v2962
    %v2965 = vmul.f32 %v2954, %v2963
    %v2966 = vmul.f32 %v2956, %v2964
    %v2967 = vpack.c.bf16 %v2966, %v2965
    %v2968 = vpack.c.bf16 %v2893, %v2890
    %v2970 = vsel %vm330, %v2967, 0
    %2972 = vmatprep.subr.bf16.mxu0 0
    %2973 = vmatpush1.bf16.msra.mxu0 0
    %2974 = vmatprep.subr.bf16.mxu0 0
    %2975 = vmatpush1.bf16.msra.mxu0 0
    %2976 = vmatprep.subr.bf16.mxu0 0
    %2977 = vmatpush1.bf16.msra.mxu0 0
    %2978 = vmatprep.subr.bf16.mxu0 0
    %2979 = vmatpush1.bf16.msra.mxu0 0
    %2980 = vmatprep.subr.bf16.mxu0 0
    %2981 = vmatpush1.bf16.msra.mxu0 0
    %2982 = vmatprep.subr.bf16.mxu0 0
    %2983 = vmatpush1.bf16.msra.mxu0 0
    %2984 = vmatprep.subr.bf16.mxu0 0
    %2985 = vmatpush1.bf16.msra.mxu0 0
    %2986 = vmatprep.subr.bf16.mxu0 0
    %2987 = vmatpush1.bf16.msra.mxu0 %v2968
    %2988 = vmatprep.subr.bf16.mxu0 0
    %2989 = vmatpush2.bf16.msra.mxu0 0
    %2990 = vmatprep.subr.bf16.mxu0 0
    %2991 = vmatpush2.bf16.msra.mxu0 0
    %2992 = vmatprep.subr.bf16.mxu0 0
    %2993 = vmatpush2.bf16.msra.mxu0 0
    %2994 = vmatprep.subr.bf16.mxu0 0
    %2995 = vmatpush2.bf16.msra.mxu0 0
    %2996 = vmatprep.subr.bf16.mxu0 0
    %2997 = vmatpush2.bf16.msra.mxu0 0
    %2998 = vmatprep.subr.bf16.mxu0 0
    %2999 = vmatpush2.bf16.msra.mxu0 0
    %3000 = vmatprep.subr.bf16.mxu0 0
    %3001 = vmatpush2.bf16.msra.mxu0 0
    %3002 = vmatprep.subr.bf16.mxu0 0
    %3003 = vmatpush2.bf16.msra.mxu0 0
    %3004 = vmatprep.mubr.bf16.mxu0 0
    %3005 = vmatmul.mubr.bf16.gmra.mxu0 %v2970
    %v3006 = vpop.f32.mrf.mxu0
    %v3007 = vadd.f32 0.0, %v3006
    %v3008 = vpop.f32.mrf.mxu0
    %v3009 = vpop.f32.mrf.mxu0
    %v3010 = vadd.f32 0.0, %v3009
    %v3011 = vpop.f32.mrf.mxu0
    %3012 = vdwg.mxu0
    %v3013 = vpack.c.bf16 %v3010, %v3007
    %s3014 = scalar_lea.vmem %s18, 12
    %v3015 = vld [vmem:[%s3014] sm:$0xf]
    %v3017 = vsel %vm282, %v3013, 0
    %v3020 = vsel %vm722, %v3015, 0
    %3022 = vmatprep.subr.bf16.mxu0 0
    %3023 = vmatpush1.bf16.msra.mxu0 0
    %3024 = vmatprep.subr.bf16.mxu0 0
    %3025 = vmatpush1.bf16.msra.mxu0 0
    %3026 = vmatprep.subr.bf16.mxu0 0
    %3027 = vmatpush1.bf16.msra.mxu0 0
    %3028 = vmatprep.subr.bf16.mxu0 0
    %3029 = vmatpush1.bf16.msra.mxu0 0
    %3030 = vmatprep.subr.bf16.mxu0 0
    %3031 = vmatpush1.bf16.msra.mxu0 0
    %3032 = vmatprep.subr.bf16.mxu0 0
    %3033 = vmatpush1.bf16.msra.mxu0 0
    %3034 = vmatprep.subr.bf16.mxu0 0
    %3035 = vmatpush1.bf16.msra.mxu0 0
    %3036 = vmatprep.subr.bf16.mxu0 0
    %3037 = vmatpush1.bf16.msra.mxu0 %v3020
    %3038 = vmatprep.subr.bf16.mxu0 0
    %3039 = vmatpush2.bf16.msra.mxu0 0
    %3040 = vmatprep.subr.bf16.mxu0 0
    %3041 = vmatpush2.bf16.msra.mxu0 0
    %3042 = vmatprep.subr.bf16.mxu0 0
    %3043 = vmatpush2.bf16.msra.mxu0 0
    %3044 = vmatprep.subr.bf16.mxu0 0
    %3045 = vmatpush2.bf16.msra.mxu0 0
    %3046 = vmatprep.subr.bf16.mxu0 0
    %3047 = vmatpush2.bf16.msra.mxu0 0
    %3048 = vmatprep.subr.bf16.mxu0 0
    %3049 = vmatpush2.bf16.msra.mxu0 0
    %3050 = vmatprep.subr.bf16.mxu0 0
    %3051 = vmatpush2.bf16.msra.mxu0 0
    %3052 = vmatprep.subr.bf16.mxu0 0
    %3053 = vmatpush2.bf16.msra.mxu0 0
    %3054 = vmatprep.mubr.bf16.mxu0 0
    %3055 = vmatmul.mubr.bf16.gmra.mxu0 %v3017
    %v3056 = vpop.f32.mrf.mxu0
    %v3057 = vadd.f32 0.0, %v3056
    %v3058 = vpop.f32.mrf.mxu0
    %v3059 = vpop.f32.mrf.mxu0
    %v3060 = vadd.f32 0.0, %v3059
    %v3061 = vpop.f32.mrf.mxu0
    %3062 = vdwg.mxu0
    %v3063 = vadd.f32 %v2696, %v3057
    %v3064 = vadd.f32 %v2697, %v3060
    %v3065 = vld [vmem:[%s19] sm:$0x1]
    %v3067 = vlaneseq
    %v3068 = vshrl.u32 %v3067, 7
    %v3069 = vsub.s32 0, %v3068
    %v3070 = vrot.slane %v3065, %v3069
    %v3072 = vadd.f32 %v3063, %v3070
    %v3073 = vadd.f32 %v3064, %v3070
    %v3074 = vadd.f32 %v1602, %v3072
    %v3075 = vadd.f32 %v1603, %v3073
    %v3076 = vsel %vm107, %v3074, 0.0
    %3077 = vadd.xlane.f32.xlu0 %v3076
    %v3078 = vpop.xlane.xlu0 %3077
    %v3079 = vsel %vm107, %v3075, 0.0
    %3080 = vadd.xlane.f32.xlu0 %v3079
    %v3081 = vpop.xlane.xlu0 %3080
    %v3082 = vmul.f32 %v3078, %v1565
    %v3083 = vmul.f32 %v3081, %v1565
    %v3084 = vsub.f32 %v3074, %v3082
    %v3085 = vsub.f32 %v3075, %v3083
    %v3086 = vmul.f32 %v3084, %v3084
    %v3087 = vmul.f32 %v3085, %v3085
    %v3088 = vsel %vm107, %v3086, 0.0
    %3089 = vadd.xlane.f32.xlu0 %v3088
    %v3090 = vpop.xlane.xlu0 %3089
    %v3091 = vsel %vm107, %v3087, 0.0
    %3092 = vadd.xlane.f32.xlu0 %v3091
    %v3093 = vpop.xlane.xlu0 %3092
    %v3094 = vmul.f32 %v3090, %v1565
    %v3095 = vmul.f32 %v3093, %v1565
    %v3096 = vadd.f32 %v3094, 1e-05
    %v3097 = vadd.f32 %v3095, 1e-05
    %v3098 = vrsqrt.pop %v3096
    %v3099 = vrsqrt.pop %v3097
    %v3100 = vmul.f32 %v3084, %v3098
    %v3101 = vmul.f32 %v3085, %v3099
    %v3102 = vld [vmem:[%s20] sm:$0x1]
    %v3104 = vlaneseq
    %v3105 = vshrl.u32 %v3104, 7
    %v3106 = vsub.s32 0, %v3105
    %v3107 = vrot.slane %v3102, %v3106
    %v3109 = vmul.f32 %v3100, %v3107
    %v3110 = vmul.f32 %v3101, %v3107
    %v3111 = vld [vmem:[%s21] sm:$0x1]
    %v3113 = vlaneseq
    %v3114 = vshrl.u32 %v3113, 7
    %v3115 = vsub.s32 0, %v3114
    %v3116 = vrot.slane %v3111, %v3115
    %v3118 = vadd.f32 %v3109, %v3116
    %v3119 = vadd.f32 %v3110, %v3116
    %v3120 = vpack.c.bf16 %v3119, %v3118
    %v3121 = vld [vmem:[%s22] sm:$0xf]
    %v3122 = vld [vmem:[%s22 + $0x4] sm:$0xf]
    %v3123 = vld [vmem:[%s22 + $0x8] sm:$0xf]
    %v3124 = vld [vmem:[%s22 + $0xc] sm:$0xf]
    %v3125 = vld [vmem:[%s23] sm:$0x1]
    %v3127 = vlaneseq
    %v3128 = vshrl.u32 %v3127, 7
    %v3129 = vsub.s32 0, %v3128
    %v3130 = vrot.slane %v3125, %v3129
    %v3136 = vunpack.c.l.b16 %v3121
    %v3137 = vunpack.c.l.b16 %v3122
    %v3138 = vunpack.c.l.b16 %v3123
    %v3139 = vunpack.c.l.b16 %v3124
    %v3140 = vpack.c.b16 %v3137, %v3136
    %v3141 = vpack.c.b16 %v3139, %v3138
    %v3145 = vsel %vm107, %v3120, 0
    %3147 = vmatprep.subr.bf16.mxu0 0
    %3148 = vmatpush1.bf16.msra.mxu0 0
    %3149 = vmatprep.subr.bf16.mxu0 0
    %3150 = vmatpush1.bf16.msra.mxu0 0
    %3151 = vmatprep.subr.bf16.mxu0 0
    %3152 = vmatpush1.bf16.msra.mxu0 0
    %3153 = vmatprep.subr.bf16.mxu0 0
    %3154 = vmatpush1.bf16.msra.mxu0 0
    %3155 = vmatprep.subr.bf16.mxu0 0
    %3156 = vmatpush1.bf16.msra.mxu0 0
    %3157 = vmatprep.subr.bf16.mxu0 0
    %3158 = vmatpush1.bf16.msra.mxu0 0
    %3159 = vmatprep.subr.bf16.mxu0 0
    %3160 = vmatpush1.bf16.msra.mxu0 %v3141
    %3161 = vmatprep.subr.bf16.mxu0 0
    %3162 = vmatpush1.bf16.msra.mxu0 %v3140
    %3163 = vmatprep.subr.bf16.mxu0 0
    %3164 = vmatpush2.bf16.msra.mxu0 0
    %3165 = vmatprep.subr.bf16.mxu0 0
    %3166 = vmatpush2.bf16.msra.mxu0 0
    %3167 = vmatprep.subr.bf16.mxu0 0
    %3168 = vmatpush2.bf16.msra.mxu0 0
    %3169 = vmatprep.subr.bf16.mxu0 0
    %3170 = vmatpush2.bf16.msra.mxu0 0
    %3171 = vmatprep.subr.bf16.mxu0 0
    %3172 = vmatpush2.bf16.msra.mxu0 0
    %3173 = vmatprep.subr.bf16.mxu0 0
    %3174 = vmatpush2.bf16.msra.mxu0 0
    %3175 = vmatprep.subr.bf16.mxu0 0
    %3176 = vmatpush2.bf16.msra.mxu0 0
    %3177 = vmatprep.subr.bf16.mxu0 0
    %3178 = vmatpush2.bf16.msra.mxu0 0
    %3179 = vmatprep.mubr.bf16.mxu0 0
    %3180 = vmatmul.mubr.bf16.gmra.mxu0 %v3145
    %v3181 = vpop.f32.mrf.mxu0
    %v3182 = vadd.f32 %v3130, %v3181
    %v3183 = vpop.f32.mrf.mxu0
    %v3184 = vpop.f32.mrf.mxu0
    %v3185 = vadd.f32 %v3130, %v3184
    %v3186 = vpop.f32.mrf.mxu0
    %3187 = vdwg.mxu0
    %3188 = vst [vmem:[#allocation2] sm:$0xff] %v3182
    %3189 = vst [vmem:[#allocation2 + $0x8] sm:$0xff] %v3185
    // Predicated region
    $region98: #{tpu_custom_call.1} parent=1 // pred_check
      _
    $region99: #{tpu_custom_call.1} parent=1 // pred_check_branch
      %3191 = sbr.rel (0) target = $region101
    $region100: #{tpu_custom_call.1} parent=1 // pred_region
      %s3193 = ssub.s32 256, 256
      %3194 = vsyncadd [#allocation3], %s3193
      %s3195 = sshll.u32 [#allocation2], 4
      %s3196 = int_to_ptr.vmem [resolvable:$true] %s3195
      %3201 = dma.vmem_to_hbm [thread:$0]  %s3196, 256, %s24, [#allocation3], 128, 128, 8
    $region101: #{tpu_custom_call.1} parent=1 // pred_fallthru
      _
    // Predicated region
    $region102: #{tpu_custom_call.1} parent=1 // pred_check
      _
    $region103: #{tpu_custom_call.1} parent=1 // pred_check_branch
      %3203 = sbr.rel (0) target = $region105
    $region104: #{tpu_custom_call.1} parent=1 // pred_region
      %3204 = dma.done [#allocation3], 256
    $region105: #{tpu_custom_call.1} parent=1 // pred_fallthru
      _
    %3205 = vsyncpa [#allocation3], 1

</llo_original>
